<compile_context>
chip_gen: v7x
topology: tpu7x:2x2x1
jax: 0.10.0
libtpu: 0.0.40
codegen_flags: <defaults>
</compile_context>

<pallas_src>
import jax
import jax.numpy as jnp
from jax.experimental import pallas as pl
from jax.experimental.pallas import tpu as pltpu

LANE = 128   # each gate / direction half is padded to one full 128-lane block
BP = 8       # batch padded to 8 sublanes


# ----------------------------- Pallas kernel --------------------------------

def encoder_kernel(x_ref, wi_ref, wh_ref, bias_ref, bhn_ref, wfc_ref, bfc_ref,
                   out_ref, hid_ref, gx_ref):
    """Whole bidirectional GRU + fc/tanh in a single kernel invocation.

    x_ref:    (T*8, E)        bf16  batch-padded flattened sequence
    wi_ref:   (E, 6L)         bf16  fused input weights  [rf|zf|nf|rb|zb|nb]
    wh_ref:   (2L, 6L)        bf16  block-diag recurrent weights (fwd rows 0:L,
                                    bwd rows L:2L), same gate column layout
    bias_ref: (1, 6L)         f32   folded biases [bi_r+bh_r, bi_z+bh_z, bi_n]*2
    bhn_ref:  (1, 2L)         f32   [bh_n_fwd | bh_n_bwd] (lives inside r*(.))
    wfc_ref:  (2L, L)         bf16  fc weights as block rows (no concat needed)
    bfc_ref:  (1, L)          f32
    out_ref:  (T*8, 2L)       f32   [fwd lanes 0:L | bwd lanes L:2L]
    hid_ref:  (8, L)          f32   tanh(fc([hf_final|hb_final]))
    gx_ref:   (T*8, 6L)       f32   VMEM scratch: hoisted input projections
    """
    f32 = jnp.float32
    bf16 = jnp.bfloat16
    L = LANE
    Bp = BP
    T = x_ref.shape[0] // Bp

    # ---- Hoisted fused input projection: ONE MXU matmul for both directions.
    gx_ref[...] = (jnp.dot(x_ref[...], wi_ref[...], preferred_element_type=f32)
                   + bias_ref[...])

    wh = wh_ref[...]                                   # stays VMEM-resident
    # hoist broadcasts out of the loop (JAX does not CSE broadcast_in_dim)
    bhnf = jnp.broadcast_to(bhn_ref[:, 0:L], (Bp, L))
    bhnb = jnp.broadcast_to(bhn_ref[:, L:2 * L], (Bp, L))

    def gates(gx3, gh3, h, bhn):
        # gx3/gh3: (8, 3L) lane-aligned gate pre-activations; h, bhn: (8, L)
        r = jax.nn.sigmoid(gx3[:, 0:L] + gh3[:, 0:L])
        z = jax.nn.sigmoid(gx3[:, L:2 * L] + gh3[:, L:2 * L])
        n = jnp.tanh(gx3[:, 2 * L:3 * L] + r * (gh3[:, 2 * L:3 * L] + bhn))
        return (1.0 - z) * n + z * h

    # carried state: [hf | hb], each half padded to 128 lanes (padding stays 0)
    h2 = jnp.zeros((Bp, 2 * L), f32)

    # ---- Statically unrolled recurrence: one block-diag matmul per step. ----
    # fwd consumes timestep s, bwd consumes timestep T-1-s; both slices of the
    # gx scratch are full (8, 384) sublane/lane-aligned tiles.
    for s in range(T):
        sb = T - 1 - s
        gh = jnp.dot(h2.astype(bf16), wh, preferred_element_type=f32)  # (8, 6L)
        hf = gates(gx_ref[s * Bp:(s + 1) * Bp, 0:3 * L],
                   gh[:, 0:3 * L], h2[:, 0:L], bhnf)
        hb = gates(gx_ref[sb * Bp:(sb + 1) * Bp, 3 * L:6 * L],
                   gh[:, 3 * L:6 * L], h2[:, L:2 * L], bhnb)
        h2 = jnp.concatenate([hf, hb], axis=-1)
        # Full-vreg, unmasked, lane/sublane-aligned stores (off the dependence
        # chain); equivalent cost to a post-loop bulk store, lower reg pressure.
        out_ref[s * Bp:(s + 1) * Bp, 0:L] = hf
        out_ref[sb * Bp:(sb + 1) * Bp, L:2 * L] = hb

    # ---- Final hidden: tanh(fc([hf_final | hb_final])) — no concat/repack ----
    hid_ref[...] = jnp.tanh(
        jnp.dot(h2.astype(bf16), wfc_ref[...], preferred_element_type=f32)
        + bfc_ref[...])


# ------------------------------- wrapper -------------------------------------

def encoder_forward(src, params):
    """src: (T, B, E) float32 -> (outputs (T, B, 2H), hidden (B, D))."""
    T, B, E = src.shape
    H = params["wh_f"].shape[0]
    D = params["b_fc"].shape[-1]
    L = LANE
    Bp = BP
    bf16 = jnp.bfloat16
    f32 = jnp.float32
    assert H <= L and D <= L and B <= Bp

    def pad_gate_cols(w):
        # (rows, 3H) -> (rows, 3L): gate g's H columns land at the start of
        # its own 128-lane block.
        rows = w.shape[0]
        out = jnp.zeros((rows, 3 * L), w.dtype)
        for g in range(3):
            out = out.at[:, g * L:g * L + H].set(w[:, g * H:(g + 1) * H])
        return out

    def fold_bias(bi, bh):
        # r/z gates get bi+bh folded; n keeps only bi (bh_n stays inside r*(.))
        b = jnp.concatenate([bi[:, :2 * H] + bh[:, :2 * H], bi[:, 2 * H:]],
                            axis=-1)
        return pad_gate_cols(b)

    # Fused, lane-padded input weights / biases: fwd cols [0:3L], bwd [3L:6L].
    wi_all = jnp.concatenate(
        [pad_gate_cols(params["wi_f"]), pad_gate_cols(params["wi_b"])],
        axis=-1).astype(bf16)
    bias_all = jnp.concatenate(
        [fold_bias(params["bi_f"], params["bh_f"]),
         fold_bias(params["bi_b"], params["bh_b"])], axis=-1).astype(f32)

    # Block-diagonal fused recurrent weights (2L, 6L).
    wh_blk = jnp.zeros((2 * L, 6 * L), f32)
    wh_blk = wh_blk.at[0:H, 0:3 * L].set(pad_gate_cols(params["wh_f"]))
    wh_blk = wh_blk.at[L:L + H, 3 * L:6 * L].set(pad_gate_cols(params["wh_b"]))
    wh_blk = wh_blk.astype(bf16)

    # bh_n per direction, lane-padded: (1, 2L).
    bhn = jnp.zeros((1, 2 * L), f32)
    bhn = bhn.at[:, 0:H].set(params["bh_f"][:, 2 * H:])
    bhn = bhn.at[:, L:L + H].set(params["bh_b"][:, 2 * H:])

    # fc weights as (2L, L) block rows so the kernel needs no [hf|hb] repack.
    wfc_blk = jnp.zeros((2 * L, L), f32)
    wfc_blk = wfc_blk.at[0:H, 0:D].set(params["w_fc"][0:H])
    wfc_blk = wfc_blk.at[L:L + H, 0:D].set(params["w_fc"][H:2 * H])
    wfc_blk = wfc_blk.astype(bf16)
    bfc = jnp.zeros((1, L), f32).at[:, 0:D].set(params["b_fc"])

    # Dropout == identity (eval mode). Pad batch to 8 sublanes, flatten T*Bp,
    # cast MXU operand to bf16 (accumulation stays f32 in-kernel).
    x_pad = jnp.zeros((T, Bp, E), f32).at[:, :B, :].set(src)
    x2d = x_pad.reshape(T * Bp, E).astype(bf16)

    args = (x2d, wi_all, wh_blk, bias_all, bhn, wfc_blk, bfc)
    out_shapes = (
        jax.ShapeDtypeStruct((T * Bp, 2 * L), f32),   # lane-dense padded outputs
        jax.ShapeDtypeStruct((Bp, L), f32),           # padded final hidden
    )

    flops = int(2 * T * Bp * E * 6 * L            # hoisted input projection
                + T * 2 * Bp * (2 * L) * (6 * L)  # recurrent block-diag matmuls
                + 2 * Bp * (2 * L) * L)           # fc
    transcendentals = int(T * 2 * 3 * Bp * L + Bp * L)
    bytes_accessed = int(sum(a.size * a.dtype.itemsize for a in args)
                         + sum(s.size * s.dtype.itemsize
                               for s in jax.tree_util.tree_leaves(out_shapes)))

    out2d, hid = pl.pallas_call(
        encoder_kernel,
        out_shape=out_shapes,
        scratch_shapes=[pltpu.VMEM((T * Bp, 6 * L), f32)],
        cost_estimate=pl.CostEstimate(flops=flops,
                                      transcendentals=transcendentals,
                                      bytes_accessed=bytes_accessed),
    )(*args)

    out = out2d.reshape(T, Bp, 2 * L)
    outputs = jnp.concatenate([out[:, :B, 0:H], out[:, :B, L:L + H]], axis=-1)
    hidden = hid[:B, :D]
    return outputs, hidden


# --------------------------- deterministic init -------------------------------

def init_params(key, emb_dim, enc_hid_dim, dec_hid_dim):
    E, H, D = emb_dim, enc_hid_dim, dec_hid_dim
    ks = jax.random.split(key, 10)
    kg = 1.0 / jnp.sqrt(jnp.float32(H))       # PyTorch GRU init scale
    kf = 1.0 / jnp.sqrt(jnp.float32(2 * H))   # PyTorch Linear init scale
    u = lambda k, shape, s: jax.random.uniform(k, shape, jnp.float32, -s, s)
    return {
        # fused weights, gate column order [r | z | n] (PyTorch order)
        "wi_f": u(ks[0], (E, 3 * H), kg), "wh_f": u(ks[1], (H, 3 * H), kg),
        "bi_f": u(ks[2], (1, 3 * H), kg), "bh_f": u(ks[3], (1, 3 * H), kg),
        "wi_b": u(ks[4], (E, 3 * H), kg), "wh_b": u(ks[5], (H, 3 * H), kg),
        "bi_b": u(ks[6], (1, 3 * H), kg), "bh_b": u(ks[7], (1, 3 * H), kg),
        "w_fc": u(ks[8], (2 * H, D), kf), "b_fc": u(ks[9], (1, D), kf),
    }


# ------------------------------ JAX reference ---------------------------------
# Gate-by-gate PyTorch-semantics GRU (unfused weights, unfolded biases). MXU
# operands are rounded to bf16 exactly as in the kernel so the comparison is
# tight; elementwise math is f32.

def _gru_cell_ref(x, h, wi, wh, bi, bh, H):
    bf16 = jnp.bfloat16
    mm = lambda a, w: jnp.dot(a.astype(bf16), w.astype(bf16),
                              preferred_element_type=jnp.float32)
    r = jax.nn.sigmoid(mm(x, wi[:, 0:H]) + bi[:, 0:H]
                       + mm(h, wh[:, 0:H]) + bh[:, 0:H])
    z = jax.nn.sigmoid(mm(x, wi[:, H:2 * H]) + bi[:, H:2 * H]
                       + mm(h, wh[:, H:2 * H]) + bh[:, H:2 * H])
    n = jnp.tanh(mm(x, wi[:, 2 * H:]) + bi[:, 2 * H:]
                 + r * (mm(h, wh[:, 2 * H:]) + bh[:, 2 * H:]))
    return (1.0 - z) * n + z * h


def encoder_reference(src, params):
    T, B, E = src.shape
    H = params["wh_f"].shape[0]
    hf = jnp.zeros((B, H), jnp.float32)
    hb = jnp.zeros((B, H), jnp.float32)
    outf = []
    outb = [None] * T
    for t in range(T):
        hf = _gru_cell_ref(src[t], hf, params["wi_f"], params["wh_f"],
                           params["bi_f"], params["bh_f"], H)
        outf.append(hf)
        hb = _gru_cell_ref(src[T - 1 - t], hb, params["wi_b"], params["wh_b"],
                           params["bi_b"], params["bh_b"], H)
        outb[T - 1 - t] = hb
    outputs = jnp.concatenate([jnp.stack(outf), jnp.stack(outb)], axis=-1)
    hcat = jnp.concatenate([hf, hb], axis=-1).astype(jnp.bfloat16)
    hidden = jnp.tanh(jnp.dot(hcat, params["w_fc"].astype(jnp.bfloat16),
                              preferred_element_type=jnp.float32)
                      + params["b_fc"])
    return outputs, hidden


# ---------------------------------- main --------------------------------------

if __name__ == "__main__":
    image_h, enc_hid_dim, dec_hid_dim = 32, 32, 32
    src_len, batch = 8, 2
    emb_dim = image_h // 32 * enc_hid_dim  # = 32

    key = jax.random.PRNGKey(0)
    k_src, k_par = jax.random.split(key)
    src = jax.random.normal(k_src, (src_len, batch, emb_dim), dtype=jnp.float32)
    params = init_params(k_par, emb_dim, enc_hid_dim, dec_hid_dim)

    outputs, hidden = encoder_forward(src, params)
    jax.block_until_ready((outputs, hidden))

    ref_out, ref_hid = encoder_reference(src, params)
    assert outputs.shape == (src_len, batch, 2 * enc_hid_dim)
    assert hidden.shape == (batch, dec_hid_dim)
    # Both paths round MXU operands to bf16 identically (f32 accumulation), so
    # agreement is far tighter than this tolerance.
    assert jnp.allclose(outputs, ref_out, atol=1e-2, rtol=1e-2)
    assert jnp.allclose(hidden, ref_hid, atol=1e-2, rtol=1e-2)

    print("KERNEL_OK")
</pallas_src>

<mosaic_0001>
module attributes {stable_mosaic.version = 11 : i64} {
  func.func @encoder_kernel(%arg0: memref<64x32xbf16, #tpu.memory_space<vmem>>, %arg1: memref<32x768xbf16, #tpu.memory_space<vmem>>, %arg2: memref<256x768xbf16, #tpu.memory_space<vmem>>, %arg3: memref<1x768xf32, #tpu.memory_space<vmem>>, %arg4: memref<1x256xf32, #tpu.memory_space<vmem>>, %arg5: memref<256x128xbf16, #tpu.memory_space<vmem>>, %arg6: memref<1x128xf32, #tpu.memory_space<vmem>>, %arg7: memref<64x256xf32, #tpu.memory_space<vmem>>, %arg8: memref<8x128xf32, #tpu.memory_space<vmem>>, %arg9: memref<64x768xf32, #tpu.memory_space<vmem>>) attributes {dimension_semantics = [], scalar_prefetch = 0 : i64, scratch_operands = 1 : i64, tpu.core_type = #tpu.core_type<tc>} {
    %c0 = arith.constant 0 : index
    %c0_0 = arith.constant 0 : index
    %0 = vector.load %arg0[%c0, %c0_0] : memref<64x32xbf16, #tpu.memory_space<vmem>>, vector<64x32xbf16>
    %c0_1 = arith.constant 0 : index
    %c0_2 = arith.constant 0 : index
    %1 = vector.load %arg1[%c0_1, %c0_2] : memref<32x768xbf16, #tpu.memory_space<vmem>>, vector<32x768xbf16>
    %cst = arith.constant dense<0.000000e+00> : vector<64x768xf32>
    %2 = tpu.matmul %0, %1, %cst {dimension_numbers = #tpu.dot_dimension_numbers<[1], [0], [0], [1], [0, 0, 1, 1], [], []>} : vector<64x32xbf16>, vector<32x768xbf16>, vector<64x768xf32> -> vector<64x768xf32>
    %c0_3 = arith.constant 0 : index
    %c0_4 = arith.constant 0 : index
    %3 = vector.load %arg3[%c0_3, %c0_4] : memref<1x768xf32, #tpu.memory_space<vmem>>, vector<1x768xf32>
    %4 = vector.broadcast %3 : vector<1x768xf32> to vector<64x768xf32>
    %5 = arith.addf %2, %4 : vector<64x768xf32>
    %c0_5 = arith.constant 0 : index
    %c0_6 = arith.constant 0 : index
    %6 = vector.load %arg9[%c0_5, %c0_6] : memref<64x768xf32, #tpu.memory_space<vmem>>, vector<64x768xf32>
    tpu.vector_store %arg9[%c0_5, %c0_6], %5 {strides = array<i32>} : memref<64x768xf32, #tpu.memory_space<vmem>>, vector<64x768xf32>,
    %c0_7 = arith.constant 0 : index
    %c0_8 = arith.constant 0 : index
    %7 = vector.load %arg2[%c0_7, %c0_8] : memref<256x768xbf16, #tpu.memory_space<vmem>>, vector<256x768xbf16>
    %c0_9 = arith.constant 0 : index
    %c0_10 = arith.constant 0 : index
    %8 = vector.load %arg4[%c0_9, %c0_10] : memref<1x256xf32, #tpu.memory_space<vmem>>, vector<1x128xf32>
    %9 = vector.shape_cast %8 : vector<1x128xf32> to vector<1x128xf32>
    %10 = vector.broadcast %9 : vector<1x128xf32> to vector<8x128xf32>
    %c0_11 = arith.constant 0 : index
    %c128 = arith.constant 128 : index
    %11 = vector.load %arg4[%c0_11, %c128] : memref<1x256xf32, #tpu.memory_space<vmem>>, vector<1x128xf32>
    %12 = vector.shape_cast %11 : vector<1x128xf32> to vector<1x128xf32>
    %13 = vector.broadcast %12 : vector<1x128xf32> to vector<8x128xf32>
    %cst_12 = arith.constant 0.000000e+00 : f32
    %14 = vector.broadcast %cst_12 : f32 to vector<8x256xf32>
    %15 = arith.truncf %14 : vector<8x256xf32> to vector<8x256xbf16>
    %cst_13 = arith.constant dense<0.000000e+00> : vector<8x768xf32>
    %16 = tpu.matmul %15, %7, %cst_13 {dimension_numbers = #tpu.dot_dimension_numbers<[1], [0], [0], [1], [0, 0, 1, 1], [], []>} : vector<8x256xbf16>, vector<256x768xbf16>, vector<8x768xf32> -> vector<8x768xf32>
    %c0_14 = arith.constant 0 : index
    %c0_15 = arith.constant 0 : index
    %17 = vector.load %arg9[%c0_14, %c0_15] : memref<64x768xf32, #tpu.memory_space<vmem>>, vector<8x384xf32>
    %18 = vector.extract_strided_slice %16 {offsets = [0, 0], sizes = [8, 384], strides = [1, 1]} : vector<8x768xf32> to vector<8x384xf32>
    %19 = vector.extract_strided_slice %14 {offsets = [0, 0], sizes = [8, 128], strides = [1, 1]} : vector<8x256xf32> to vector<8x128xf32>
    %20 = vector.extract_strided_slice %17 {offsets = [0, 0], sizes = [8, 128], strides = [1, 1]} : vector<8x384xf32> to vector<8x128xf32>
    %21 = vector.extract_strided_slice %18 {offsets = [0, 0], sizes = [8, 128], strides = [1, 1]} : vector<8x384xf32> to vector<8x128xf32>
    %22 = arith.addf %20, %21 : vector<8x128xf32>
    %23 = arith.negf %22 : vector<8x128xf32>
    %24 = math.exp %23 : vector<8x128xf32>
    %cst_16 = arith.constant 1.000000e+00 : f32
    %25 = vector.broadcast %cst_16 : f32 to vector<8x128xf32>
    %26 = arith.addf %25, %24 : vector<8x128xf32>
    %27 = arith.divf %25, %26 : vector<8x128xf32>
    %28 = vector.extract_strided_slice %17 {offsets = [0, 128], sizes = [8, 128], strides = [1, 1]} : vector<8x384xf32> to vector<8x128xf32>
    %29 = vector.extract_strided_slice %18 {offsets = [0, 128], sizes = [8, 128], strides = [1, 1]} : vector<8x384xf32> to vector<8x128xf32>
    %30 = arith.addf %28, %29 : vector<8x128xf32>
    %31 = arith.negf %30 : vector<8x128xf32>
    %32 = math.exp %31 : vector<8x128xf32>
    %cst_17 = arith.constant 1.000000e+00 : f32
    %33 = vector.broadcast %cst_17 : f32 to vector<8x128xf32>
    %34 = arith.addf %33, %32 : vector<8x128xf32>
    %35 = arith.divf %33, %34 : vector<8x128xf32>
    %36 = vector.extract_strided_slice %17 {offsets = [0, 256], sizes = [8, 128], strides = [1, 1]} : vector<8x384xf32> to vector<8x128xf32>
    %37 = vector.extract_strided_slice %18 {offsets = [0, 256], sizes = [8, 128], strides = [1, 1]} : vector<8x384xf32> to vector<8x128xf32>
    %38 = arith.addf %37, %10 : vector<8x128xf32>
    %39 = arith.mulf %27, %38 : vector<8x128xf32>
    %40 = arith.addf %36, %39 : vector<8x128xf32>
    %41 = math.tanh %40 : vector<8x128xf32>
    %cst_18 = arith.constant 1.000000e+00 : f32
    %42 = vector.broadcast %cst_18 : f32 to vector<8x128xf32>
    %43 = arith.subf %42, %35 : vector<8x128xf32>
    %44 = arith.mulf %43, %41 : vector<8x128xf32>
    %45 = arith.mulf %35, %19 : vector<8x128xf32>
    %46 = arith.addf %44, %45 : vector<8x128xf32>
    %c56 = arith.constant 56 : index
    %c384 = arith.constant 384 : index
    %47 = vector.load %arg9[%c56, %c384] : memref<64x768xf32, #tpu.memory_space<vmem>>, vector<8x384xf32>
    %48 = vector.extract_strided_slice %16 {offsets = [0, 384], sizes = [8, 384], strides = [1, 1]} : vector<8x768xf32> to vector<8x384xf32>
    %49 = vector.extract_strided_slice %14 {offsets = [0, 128], sizes = [8, 128], strides = [1, 1]} : vector<8x256xf32> to vector<8x128xf32>
    %50 = vector.extract_strided_slice %47 {offsets = [0, 0], sizes = [8, 128], strides = [1, 1]} : vector<8x384xf32> to vector<8x128xf32>
    %51 = vector.extract_strided_slice %48 {offsets = [0, 0], sizes = [8, 128], strides = [1, 1]} : vector<8x384xf32> to vector<8x128xf32>
    %52 = arith.addf %50, %51 : vector<8x128xf32>
    %53 = arith.negf %52 : vector<8x128xf32>
    %54 = math.exp %53 : vector<8x128xf32>
    %cst_19 = arith.constant 1.000000e+00 : f32
    %55 = vector.broadcast %cst_19 : f32 to vector<8x128xf32>
    %56 = arith.addf %55, %54 : vector<8x128xf32>
    %57 = arith.divf %55, %56 : vector<8x128xf32>
    %58 = vector.extract_strided_slice %47 {offsets = [0, 128], sizes = [8, 128], strides = [1, 1]} : vector<8x384xf32> to vector<8x128xf32>
    %59 = vector.extract_strided_slice %48 {offsets = [0, 128], sizes = [8, 128], strides = [1, 1]} : vector<8x384xf32> to vector<8x128xf32>
    %60 = arith.addf %58, %59 : vector<8x128xf32>
    %61 = arith.negf %60 : vector<8x128xf32>
    %62 = math.exp %61 : vector<8x128xf32>
    %cst_20 = arith.constant 1.000000e+00 : f32
    %63 = vector.broadcast %cst_20 : f32 to vector<8x128xf32>
    %64 = arith.addf %63, %62 : vector<8x128xf32>
    %65 = arith.divf %63, %64 : vector<8x128xf32>
    %66 = vector.extract_strided_slice %47 {offsets = [0, 256], sizes = [8, 128], strides = [1, 1]} : vector<8x384xf32> to vector<8x128xf32>
    %67 = vector.extract_strided_slice %48 {offsets = [0, 256], sizes = [8, 128], strides = [1, 1]} : vector<8x384xf32> to vector<8x128xf32>
    %68 = arith.addf %67, %13 : vector<8x128xf32>
    %69 = arith.mulf %57, %68 : vector<8x128xf32>
    %70 = arith.addf %66, %69 : vector<8x128xf32>
    %71 = math.tanh %70 : vector<8x128xf32>
    %cst_21 = arith.constant 1.000000e+00 : f32
    %72 = vector.broadcast %cst_21 : f32 to vector<8x128xf32>
    %73 = arith.subf %72, %65 : vector<8x128xf32>
    %74 = arith.mulf %73, %71 : vector<8x128xf32>
    %75 = arith.mulf %65, %49 : vector<8x128xf32>
    %76 = arith.addf %74, %75 : vector<8x128xf32>
    %77 = tpu.concatenate %46, %76 in 1 : vector<8x128xf32>, vector<8x128xf32> -> vector<8x256xf32>
    %c0_22 = arith.constant 0 : index
    %c0_23 = arith.constant 0 : index
    %78 = vector.load %arg7[%c0_22, %c0_23] : memref<64x256xf32, #tpu.memory_space<vmem>>, vector<8x128xf32>
    tpu.vector_store %arg7[%c0_22, %c0_23], %46 {strides = array<i32>} : memref<64x256xf32, #tpu.memory_space<vmem>>, vector<8x128xf32>,
    %c56_24 = arith.constant 56 : index
    %c128_25 = arith.constant 128 : index
    %79 = vector.load %arg7[%c56_24, %c128_25] : memref<64x256xf32, #tpu.memory_space<vmem>>, vector<8x128xf32>
    tpu.vector_store %arg7[%c56_24, %c128_25], %76 {strides = array<i32>} : memref<64x256xf32, #tpu.memory_space<vmem>>, vector<8x128xf32>,
    %80 = arith.truncf %77 : vector<8x256xf32> to vector<8x256xbf16>
    %cst_26 = arith.constant dense<0.000000e+00> : vector<8x768xf32>
    %81 = tpu.matmul %80, %7, %cst_26 {dimension_numbers = #tpu.dot_dimension_numbers<[1], [0], [0], [1], [0, 0, 1, 1], [], []>} : vector<8x256xbf16>, vector<256x768xbf16>, vector<8x768xf32> -> vector<8x768xf32>
    %c8 = arith.constant 8 : index
    %c0_27 = arith.constant 0 : index
    %82 = vector.load %arg9[%c8, %c0_27] : memref<64x768xf32, #tpu.memory_space<vmem>>, vector<8x384xf32>
    %83 = vector.extract_strided_slice %81 {offsets = [0, 0], sizes = [8, 384], strides = [1, 1]} : vector<8x768xf32> to vector<8x384xf32>
    %84 = vector.extract_strided_slice %77 {offsets = [0, 0], sizes = [8, 128], strides = [1, 1]} : vector<8x256xf32> to vector<8x128xf32>
    %85 = vector.extract_strided_slice %82 {offsets = [0, 0], sizes = [8, 128], strides = [1, 1]} : vector<8x384xf32> to vector<8x128xf32>
    %86 = vector.extract_strided_slice %83 {offsets = [0, 0], sizes = [8, 128], strides = [1, 1]} : vector<8x384xf32> to vector<8x128xf32>
    %87 = arith.addf %85, %86 : vector<8x128xf32>
    %88 = arith.negf %87 : vector<8x128xf32>
    %89 = math.exp %88 : vector<8x128xf32>
    %cst_28 = arith.constant 1.000000e+00 : f32
    %90 = vector.broadcast %cst_28 : f32 to vector<8x128xf32>
    %91 = arith.addf %90, %89 : vector<8x128xf32>
    %92 = arith.divf %90, %91 : vector<8x128xf32>
    %93 = vector.extract_strided_slice %82 {offsets = [0, 128], sizes = [8, 128], strides = [1, 1]} : vector<8x384xf32> to vector<8x128xf32>
    %94 = vector.extract_strided_slice %83 {offsets = [0, 128], sizes = [8, 128], strides = [1, 1]} : vector<8x384xf32> to vector<8x128xf32>
    %95 = arith.addf %93, %94 : vector<8x128xf32>
    %96 = arith.negf %95 : vector<8x128xf32>
    %97 = math.exp %96 : vector<8x128xf32>
    %cst_29 = arith.constant 1.000000e+00 : f32
    %98 = vector.broadcast %cst_29 : f32 to vector<8x128xf32>
    %99 = arith.addf %98, %97 : vector<8x128xf32>
    %100 = arith.divf %98, %99 : vector<8x128xf32>
    %101 = vector.extract_strided_slice %82 {offsets = [0, 256], sizes = [8, 128], strides = [1, 1]} : vector<8x384xf32> to vector<8x128xf32>
    %102 = vector.extract_strided_slice %83 {offsets = [0, 256], sizes = [8, 128], strides = [1, 1]} : vector<8x384xf32> to vector<8x128xf32>
    %103 = arith.addf %102, %10 : vector<8x128xf32>
    %104 = arith.mulf %92, %103 : vector<8x128xf32>
    %105 = arith.addf %101, %104 : vector<8x128xf32>
    %106 = math.tanh %105 : vector<8x128xf32>
    %cst_30 = arith.constant 1.000000e+00 : f32
    %107 = vector.broadcast %cst_30 : f32 to vector<8x128xf32>
    %108 = arith.subf %107, %100 : vector<8x128xf32>
    %109 = arith.mulf %108, %106 : vector<8x128xf32>
    %110 = arith.mulf %100, %84 : vector<8x128xf32>
    %111 = arith.addf %109, %110 : vector<8x128xf32>
    %c48 = arith.constant 48 : index
    %c384_31 = arith.constant 384 : index
    %112 = vector.load %arg9[%c48, %c384_31] : memref<64x768xf32, #tpu.memory_space<vmem>>, vector<8x384xf32>
    %113 = vector.extract_strided_slice %81 {offsets = [0, 384], sizes = [8, 384], strides = [1, 1]} : vector<8x768xf32> to vector<8x384xf32>
    %114 = vector.extract_strided_slice %77 {offsets = [0, 128], sizes = [8, 128], strides = [1, 1]} : vector<8x256xf32> to vector<8x128xf32>
    %115 = vector.extract_strided_slice %112 {offsets = [0, 0], sizes = [8, 128], strides = [1, 1]} : vector<8x384xf32> to vector<8x128xf32>
    %116 = vector.extract_strided_slice %113 {offsets = [0, 0], sizes = [8, 128], strides = [1, 1]} : vector<8x384xf32> to vector<8x128xf32>
    %117 = arith.addf %115, %116 : vector<8x128xf32>
    %118 = arith.negf %117 : vector<8x128xf32>
    %119 = math.exp %118 : vector<8x128xf32>
    %cst_32 = arith.constant 1.000000e+00 : f32
    %120 = vector.broadcast %cst_32 : f32 to vector<8x128xf32>
    %121 = arith.addf %120, %119 : vector<8x128xf32>
    %122 = arith.divf %120, %121 : vector<8x128xf32>
    %123 = vector.extract_strided_slice %112 {offsets = [0, 128], sizes = [8, 128], strides = [1, 1]} : vector<8x384xf32> to vector<8x128xf32>
    %124 = vector.extract_strided_slice %113 {offsets = [0, 128], sizes = [8, 128], strides = [1, 1]} : vector<8x384xf32> to vector<8x128xf32>
    %125 = arith.addf %123, %124 : vector<8x128xf32>
    %126 = arith.negf %125 : vector<8x128xf32>
    %127 = math.exp %126 : vector<8x128xf32>
    %cst_33 = arith.constant 1.000000e+00 : f32
    %128 = vector.broadcast %cst_33 : f32 to vector<8x128xf32>
    %129 = arith.addf %128, %127 : vector<8x128xf32>
    %130 = arith.divf %128, %129 : vector<8x128xf32>
    %131 = vector.extract_strided_slice %112 {offsets = [0, 256], sizes = [8, 128], strides = [1, 1]} : vector<8x384xf32> to vector<8x128xf32>
    %132 = vector.extract_strided_slice %113 {offsets = [0, 256], sizes = [8, 128], strides = [1, 1]} : vector<8x384xf32> to vector<8x128xf32>
    %133 = arith.addf %132, %13 : vector<8x128xf32>
    %134 = arith.mulf %122, %133 : vector<8x128xf32>
    %135 = arith.addf %131, %134 : vector<8x128xf32>
    %136 = math.tanh %135 : vector<8x128xf32>
    %cst_34 = arith.constant 1.000000e+00 : f32
    %137 = vector.broadcast %cst_34 : f32 to vector<8x128xf32>
    %138 = arith.subf %137, %130 : vector<8x128xf32>
    %139 = arith.mulf %138, %136 : vector<8x128xf32>
    %140 = arith.mulf %130, %114 : vector<8x128xf32>
    %141 = arith.addf %139, %140 : vector<8x128xf32>
    %142 = tpu.concatenate %111, %141 in 1 : vector<8x128xf32>, vector<8x128xf32> -> vector<8x256xf32>
    %c8_35 = arith.constant 8 : index
    %c0_36 = arith.constant 0 : index
    %143 = vector.load %arg7[%c8_35, %c0_36] : memref<64x256xf32, #tpu.memory_space<vmem>>, vector<8x128xf32>
    tpu.vector_store %arg7[%c8_35, %c0_36], %111 {strides = array<i32>} : memref<64x256xf32, #tpu.memory_space<vmem>>, vector<8x128xf32>,
    %c48_37 = arith.constant 48 : index
    %c128_38 = arith.constant 128 : index
    %144 = vector.load %arg7[%c48_37, %c128_38] : memref<64x256xf32, #tpu.memory_space<vmem>>, vector<8x128xf32>
    tpu.vector_store %arg7[%c48_37, %c128_38], %141 {strides = array<i32>} : memref<64x256xf32, #tpu.memory_space<vmem>>, vector<8x128xf32>,
    %145 = arith.truncf %142 : vector<8x256xf32> to vector<8x256xbf16>
    %cst_39 = arith.constant dense<0.000000e+00> : vector<8x768xf32>
    %146 = tpu.matmul %145, %7, %cst_39 {dimension_numbers = #tpu.dot_dimension_numbers<[1], [0], [0], [1], [0, 0, 1, 1], [], []>} : vector<8x256xbf16>, vector<256x768xbf16>, vector<8x768xf32> -> vector<8x768xf32>
    %c16 = arith.constant 16 : index
    %c0_40 = arith.constant 0 : index
    %147 = vector.load %arg9[%c16, %c0_40] : memref<64x768xf32, #tpu.memory_space<vmem>>, vector<8x384xf32>
    %148 = vector.extract_strided_slice %146 {offsets = [0, 0], sizes = [8, 384], strides = [1, 1]} : vector<8x768xf32> to vector<8x384xf32>
    %149 = vector.extract_strided_slice %142 {offsets = [0, 0], sizes = [8, 128], strides = [1, 1]} : vector<8x256xf32> to vector<8x128xf32>
    %150 = vector.extract_strided_slice %147 {offsets = [0, 0], sizes = [8, 128], strides = [1, 1]} : vector<8x384xf32> to vector<8x128xf32>
    %151 = vector.extract_strided_slice %148 {offsets = [0, 0], sizes = [8, 128], strides = [1, 1]} : vector<8x384xf32> to vector<8x128xf32>
    %152 = arith.addf %150, %151 : vector<8x128xf32>
    %153 = arith.negf %152 : vector<8x128xf32>
    %154 = math.exp %153 : vector<8x128xf32>
    %cst_41 = arith.constant 1.000000e+00 : f32
    %155 = vector.broadcast %cst_41 : f32 to vector<8x128xf32>
    %156 = arith.addf %155, %154 : vector<8x128xf32>
    %157 = arith.divf %155, %156 : vector<8x128xf32>
    %158 = vector.extract_strided_slice %147 {offsets = [0, 128], sizes = [8, 128], strides = [1, 1]} : vector<8x384xf32> to vector<8x128xf32>
    %159 = vector.extract_strided_slice %148 {offsets = [0, 128], sizes = [8, 128], strides = [1, 1]} : vector<8x384xf32> to vector<8x128xf32>
    %160 = arith.addf %158, %159 : vector<8x128xf32>
    %161 = arith.negf %160 : vector<8x128xf32>
    %162 = math.exp %161 : vector<8x128xf32>
    %cst_42 = arith.constant 1.000000e+00 : f32
    %163 = vector.broadcast %cst_42 : f32 to vector<8x128xf32>
    %164 = arith.addf %163, %162 : vector<8x128xf32>
    %165 = arith.divf %163, %164 : vector<8x128xf32>
    %166 = vector.extract_strided_slice %147 {offsets = [0, 256], sizes = [8, 128], strides = [1, 1]} : vector<8x384xf32> to vector<8x128xf32>
    %167 = vector.extract_strided_slice %148 {offsets = [0, 256], sizes = [8, 128], strides = [1, 1]} : vector<8x384xf32> to vector<8x128xf32>
    %168 = arith.addf %167, %10 : vector<8x128xf32>
    %169 = arith.mulf %157, %168 : vector<8x128xf32>
    %170 = arith.addf %166, %169 : vector<8x128xf32>
    %171 = math.tanh %170 : vector<8x128xf32>
    %cst_43 = arith.constant 1.000000e+00 : f32
    %172 = vector.broadcast %cst_43 : f32 to vector<8x128xf32>
    %173 = arith.subf %172, %165 : vector<8x128xf32>
    %174 = arith.mulf %173, %171 : vector<8x128xf32>
    %175 = arith.mulf %165, %149 : vector<8x128xf32>
    %176 = arith.addf %174, %175 : vector<8x128xf32>
    %c40 = arith.constant 40 : index
    %c384_44 = arith.constant 384 : index
    %177 = vector.load %arg9[%c40, %c384_44] : memref<64x768xf32, #tpu.memory_space<vmem>>, vector<8x384xf32>
    %178 = vector.extract_strided_slice %146 {offsets = [0, 384], sizes = [8, 384], strides = [1, 1]} : vector<8x768xf32> to vector<8x384xf32>
    %179 = vector.extract_strided_slice %142 {offsets = [0, 128], sizes = [8, 128], strides = [1, 1]} : vector<8x256xf32> to vector<8x128xf32>
    %180 = vector.extract_strided_slice %177 {offsets = [0, 0], sizes = [8, 128], strides = [1, 1]} : vector<8x384xf32> to vector<8x128xf32>
    %181 = vector.extract_strided_slice %178 {offsets = [0, 0], sizes = [8, 128], strides = [1, 1]} : vector<8x384xf32> to vector<8x128xf32>
    %182 = arith.addf %180, %181 : vector<8x128xf32>
    %183 = arith.negf %182 : vector<8x128xf32>
    %184 = math.exp %183 : vector<8x128xf32>
    %cst_45 = arith.constant 1.000000e+00 : f32
    %185 = vector.broadcast %cst_45 : f32 to vector<8x128xf32>
    %186 = arith.addf %185, %184 : vector<8x128xf32>
    %187 = arith.divf %185, %186 : vector<8x128xf32>
    %188 = vector.extract_strided_slice %177 {offsets = [0, 128], sizes = [8, 128], strides = [1, 1]} : vector<8x384xf32> to vector<8x128xf32>
    %189 = vector.extract_strided_slice %178 {offsets = [0, 128], sizes = [8, 128], strides = [1, 1]} : vector<8x384xf32> to vector<8x128xf32>
    %190 = arith.addf %188, %189 : vector<8x128xf32>
    %191 = arith.negf %190 : vector<8x128xf32>
    %192 = math.exp %191 : vector<8x128xf32>
    %cst_46 = arith.constant 1.000000e+00 : f32
    %193 = vector.broadcast %cst_46 : f32 to vector<8x128xf32>
    %194 = arith.addf %193, %192 : vector<8x128xf32>
    %195 = arith.divf %193, %194 : vector<8x128xf32>
    %196 = vector.extract_strided_slice %177 {offsets = [0, 256], sizes = [8, 128], strides = [1, 1]} : vector<8x384xf32> to vector<8x128xf32>
    %197 = vector.extract_strided_slice %178 {offsets = [0, 256], sizes = [8, 128], strides = [1, 1]} : vector<8x384xf32> to vector<8x128xf32>
    %198 = arith.addf %197, %13 : vector<8x128xf32>
    %199 = arith.mulf %187, %198 : vector<8x128xf32>
    %200 = arith.addf %196, %199 : vector<8x128xf32>
    %201 = math.tanh %200 : vector<8x128xf32>
    %cst_47 = arith.constant 1.000000e+00 : f32
    %202 = vector.broadcast %cst_47 : f32 to vector<8x128xf32>
    %203 = arith.subf %202, %195 : vector<8x128xf32>
    %204 = arith.mulf %203, %201 : vector<8x128xf32>
    %205 = arith.mulf %195, %179 : vector<8x128xf32>
    %206 = arith.addf %204, %205 : vector<8x128xf32>
    %207 = tpu.concatenate %176, %206 in 1 : vector<8x128xf32>, vector<8x128xf32> -> vector<8x256xf32>
    %c16_48 = arith.constant 16 : index
    %c0_49 = arith.constant 0 : index
    %208 = vector.load %arg7[%c16_48, %c0_49] : memref<64x256xf32, #tpu.memory_space<vmem>>, vector<8x128xf32>
    tpu.vector_store %arg7[%c16_48, %c0_49], %176 {strides = array<i32>} : memref<64x256xf32, #tpu.memory_space<vmem>>, vector<8x128xf32>,
    %c40_50 = arith.constant 40 : index
    %c128_51 = arith.constant 128 : index
    %209 = vector.load %arg7[%c40_50, %c128_51] : memref<64x256xf32, #tpu.memory_space<vmem>>, vector<8x128xf32>
    tpu.vector_store %arg7[%c40_50, %c128_51], %206 {strides = array<i32>} : memref<64x256xf32, #tpu.memory_space<vmem>>, vector<8x128xf32>,
    %210 = arith.truncf %207 : vector<8x256xf32> to vector<8x256xbf16>
    %cst_52 = arith.constant dense<0.000000e+00> : vector<8x768xf32>
    %211 = tpu.matmul %210, %7, %cst_52 {dimension_numbers = #tpu.dot_dimension_numbers<[1], [0], [0], [1], [0, 0, 1, 1], [], []>} : vector<8x256xbf16>, vector<256x768xbf16>, vector<8x768xf32> -> vector<8x768xf32>
    %c24 = arith.constant 24 : index
    %c0_53 = arith.constant 0 : index
    %212 = vector.load %arg9[%c24, %c0_53] : memref<64x768xf32, #tpu.memory_space<vmem>>, vector<8x384xf32>
    %213 = vector.extract_strided_slice %211 {offsets = [0, 0], sizes = [8, 384], strides = [1, 1]} : vector<8x768xf32> to vector<8x384xf32>
    %214 = vector.extract_strided_slice %207 {offsets = [0, 0], sizes = [8, 128], strides = [1, 1]} : vector<8x256xf32> to vector<8x128xf32>
    %215 = vector.extract_strided_slice %212 {offsets = [0, 0], sizes = [8, 128], strides = [1, 1]} : vector<8x384xf32> to vector<8x128xf32>
    %216 = vector.extract_strided_slice %213 {offsets = [0, 0], sizes = [8, 128], strides = [1, 1]} : vector<8x384xf32> to vector<8x128xf32>
    %217 = arith.addf %215, %216 : vector<8x128xf32>
    %218 = arith.negf %217 : vector<8x128xf32>
    %219 = math.exp %218 : vector<8x128xf32>
    %cst_54 = arith.constant 1.000000e+00 : f32
    %220 = vector.broadcast %cst_54 : f32 to vector<8x128xf32>
    %221 = arith.addf %220, %219 : vector<8x128xf32>
    %222 = arith.divf %220, %221 : vector<8x128xf32>
    %223 = vector.extract_strided_slice %212 {offsets = [0, 128], sizes = [8, 128], strides = [1, 1]} : vector<8x384xf32> to vector<8x128xf32>
    %224 = vector.extract_strided_slice %213 {offsets = [0, 128], sizes = [8, 128], strides = [1, 1]} : vector<8x384xf32> to vector<8x128xf32>
    %225 = arith.addf %223, %224 : vector<8x128xf32>
    %226 = arith.negf %225 : vector<8x128xf32>
    %227 = math.exp %226 : vector<8x128xf32>
    %cst_55 = arith.constant 1.000000e+00 : f32
    %228 = vector.broadcast %cst_55 : f32 to vector<8x128xf32>
    %229 = arith.addf %228, %227 : vector<8x128xf32>
    %230 = arith.divf %228, %229 : vector<8x128xf32>
    %231 = vector.extract_strided_slice %212 {offsets = [0, 256], sizes = [8, 128], strides = [1, 1]} : vector<8x384xf32> to vector<8x128xf32>
    %232 = vector.extract_strided_slice %213 {offsets = [0, 256], sizes = [8, 128], strides = [1, 1]} : vector<8x384xf32> to vector<8x128xf32>
    %233 = arith.addf %232, %10 : vector<8x128xf32>
    %234 = arith.mulf %222, %233 : vector<8x128xf32>
    %235 = arith.addf %231, %234 : vector<8x128xf32>
    %236 = math.tanh %235 : vector<8x128xf32>
    %cst_56 = arith.constant 1.000000e+00 : f32
    %237 = vector.broadcast %cst_56 : f32 to vector<8x128xf32>
    %238 = arith.subf %237, %230 : vector<8x128xf32>
    %239 = arith.mulf %238, %236 : vector<8x128xf32>
    %240 = arith.mulf %230, %214 : vector<8x128xf32>
    %241 = arith.addf %239, %240 : vector<8x128xf32>
    %c32 = arith.constant 32 : index
    %c384_57 = arith.constant 384 : index
    %242 = vector.load %arg9[%c32, %c384_57] : memref<64x768xf32, #tpu.memory_space<vmem>>, vector<8x384xf32>
    %243 = vector.extract_strided_slice %211 {offsets = [0, 384], sizes = [8, 384], strides = [1, 1]} : vector<8x768xf32> to vector<8x384xf32>
    %244 = vector.extract_strided_slice %207 {offsets = [0, 128], sizes = [8, 128], strides = [1, 1]} : vector<8x256xf32> to vector<8x128xf32>
    %245 = vector.extract_strided_slice %242 {offsets = [0, 0], sizes = [8, 128], strides = [1, 1]} : vector<8x384xf32> to vector<8x128xf32>
    %246 = vector.extract_strided_slice %243 {offsets = [0, 0], sizes = [8, 128], strides = [1, 1]} : vector<8x384xf32> to vector<8x128xf32>
    %247 = arith.addf %245, %246 : vector<8x128xf32>
    %248 = arith.negf %247 : vector<8x128xf32>
    %249 = math.exp %248 : vector<8x128xf32>
    %cst_58 = arith.constant 1.000000e+00 : f32
    %250 = vector.broadcast %cst_58 : f32 to vector<8x128xf32>
    %251 = arith.addf %250, %249 : vector<8x128xf32>
    %252 = arith.divf %250, %251 : vector<8x128xf32>
    %253 = vector.extract_strided_slice %242 {offsets = [0, 128], sizes = [8, 128], strides = [1, 1]} : vector<8x384xf32> to vector<8x128xf32>
    %254 = vector.extract_strided_slice %243 {offsets = [0, 128], sizes = [8, 128], strides = [1, 1]} : vector<8x384xf32> to vector<8x128xf32>
    %255 = arith.addf %253, %254 : vector<8x128xf32>
    %256 = arith.negf %255 : vector<8x128xf32>
    %257 = math.exp %256 : vector<8x128xf32>
    %cst_59 = arith.constant 1.000000e+00 : f32
    %258 = vector.broadcast %cst_59 : f32 to vector<8x128xf32>
    %259 = arith.addf %258, %257 : vector<8x128xf32>
    %260 = arith.divf %258, %259 : vector<8x128xf32>
    %261 = vector.extract_strided_slice %242 {offsets = [0, 256], sizes = [8, 128], strides = [1, 1]} : vector<8x384xf32> to vector<8x128xf32>
    %262 = vector.extract_strided_slice %243 {offsets = [0, 256], sizes = [8, 128], strides = [1, 1]} : vector<8x384xf32> to vector<8x128xf32>
    %263 = arith.addf %262, %13 : vector<8x128xf32>
    %264 = arith.mulf %252, %263 : vector<8x128xf32>
    %265 = arith.addf %261, %264 : vector<8x128xf32>
    %266 = math.tanh %265 : vector<8x128xf32>
    %cst_60 = arith.constant 1.000000e+00 : f32
    %267 = vector.broadcast %cst_60 : f32 to vector<8x128xf32>
    %268 = arith.subf %267, %260 : vector<8x128xf32>
    %269 = arith.mulf %268, %266 : vector<8x128xf32>
    %270 = arith.mulf %260, %244 : vector<8x128xf32>
    %271 = arith.addf %269, %270 : vector<8x128xf32>
    %272 = tpu.concatenate %241, %271 in 1 : vector<8x128xf32>, vector<8x128xf32> -> vector<8x256xf32>
    %c24_61 = arith.constant 24 : index
    %c0_62 = arith.constant 0 : index
    %273 = vector.load %arg7[%c24_61, %c0_62] : memref<64x256xf32, #tpu.memory_space<vmem>>, vector<8x128xf32>
    tpu.vector_store %arg7[%c24_61, %c0_62], %241 {strides = array<i32>} : memref<64x256xf32, #tpu.memory_space<vmem>>, vector<8x128xf32>,
    %c32_63 = arith.constant 32 : index
    %c128_64 = arith.constant 128 : index
    %274 = vector.load %arg7[%c32_63, %c128_64] : memref<64x256xf32, #tpu.memory_space<vmem>>, vector<8x128xf32>
    tpu.vector_store %arg7[%c32_63, %c128_64], %271 {strides = array<i32>} : memref<64x256xf32, #tpu.memory_space<vmem>>, vector<8x128xf32>,
    %275 = arith.truncf %272 : vector<8x256xf32> to vector<8x256xbf16>
    %cst_65 = arith.constant dense<0.000000e+00> : vector<8x768xf32>
    %276 = tpu.matmul %275, %7, %cst_65 {dimension_numbers = #tpu.dot_dimension_numbers<[1], [0], [0], [1], [0, 0, 1, 1], [], []>} : vector<8x256xbf16>, vector<256x768xbf16>, vector<8x768xf32> -> vector<8x768xf32>
    %c32_66 = arith.constant 32 : index
    %c0_67 = arith.constant 0 : index
    %277 = vector.load %arg9[%c32_66, %c0_67] : memref<64x768xf32, #tpu.memory_space<vmem>>, vector<8x384xf32>
    %278 = vector.extract_strided_slice %276 {offsets = [0, 0], sizes = [8, 384], strides = [1, 1]} : vector<8x768xf32> to vector<8x384xf32>
    %279 = vector.extract_strided_slice %272 {offsets = [0, 0], sizes = [8, 128], strides = [1, 1]} : vector<8x256xf32> to vector<8x128xf32>
    %280 = vector.extract_strided_slice %277 {offsets = [0, 0], sizes = [8, 128], strides = [1, 1]} : vector<8x384xf32> to vector<8x128xf32>
    %281 = vector.extract_strided_slice %278 {offsets = [0, 0], sizes = [8, 128], strides = [1, 1]} : vector<8x384xf32> to vector<8x128xf32>
    %282 = arith.addf %280, %281 : vector<8x128xf32>
    %283 = arith.negf %282 : vector<8x128xf32>
    %284 = math.exp %283 : vector<8x128xf32>
    %cst_68 = arith.constant 1.000000e+00 : f32
    %285 = vector.broadcast %cst_68 : f32 to vector<8x128xf32>
    %286 = arith.addf %285, %284 : vector<8x128xf32>
    %287 = arith.divf %285, %286 : vector<8x128xf32>
    %288 = vector.extract_strided_slice %277 {offsets = [0, 128], sizes = [8, 128], strides = [1, 1]} : vector<8x384xf32> to vector<8x128xf32>
    %289 = vector.extract_strided_slice %278 {offsets = [0, 128], sizes = [8, 128], strides = [1, 1]} : vector<8x384xf32> to vector<8x128xf32>
    %290 = arith.addf %288, %289 : vector<8x128xf32>
    %291 = arith.negf %290 : vector<8x128xf32>
    %292 = math.exp %291 : vector<8x128xf32>
    %cst_69 = arith.constant 1.000000e+00 : f32
    %293 = vector.broadcast %cst_69 : f32 to vector<8x128xf32>
    %294 = arith.addf %293, %292 : vector<8x128xf32>
    %295 = arith.divf %293, %294 : vector<8x128xf32>
    %296 = vector.extract_strided_slice %277 {offsets = [0, 256], sizes = [8, 128], strides = [1, 1]} : vector<8x384xf32> to vector<8x128xf32>
    %297 = vector.extract_strided_slice %278 {offsets = [0, 256], sizes = [8, 128], strides = [1, 1]} : vector<8x384xf32> to vector<8x128xf32>
    %298 = arith.addf %297, %10 : vector<8x128xf32>
    %299 = arith.mulf %287, %298 : vector<8x128xf32>
    %300 = arith.addf %296, %299 : vector<8x128xf32>
    %301 = math.tanh %300 : vector<8x128xf32>
    %cst_70 = arith.constant 1.000000e+00 : f32
    %302 = vector.broadcast %cst_70 : f32 to vector<8x128xf32>
    %303 = arith.subf %302, %295 : vector<8x128xf32>
    %304 = arith.mulf %303, %301 : vector<8x128xf32>
    %305 = arith.mulf %295, %279 : vector<8x128xf32>
    %306 = arith.addf %304, %305 : vector<8x128xf32>
    %c24_71 = arith.constant 24 : index
    %c384_72 = arith.constant 384 : index
    %307 = vector.load %arg9[%c24_71, %c384_72] : memref<64x768xf32, #tpu.memory_space<vmem>>, vector<8x384xf32>
    %308 = vector.extract_strided_slice %276 {offsets = [0, 384], sizes = [8, 384], strides = [1, 1]} : vector<8x768xf32> to vector<8x384xf32>
    %309 = vector.extract_strided_slice %272 {offsets = [0, 128], sizes = [8, 128], strides = [1, 1]} : vector<8x256xf32> to vector<8x128xf32>
    %310 = vector.extract_strided_slice %307 {offsets = [0, 0], sizes = [8, 128], strides = [1, 1]} : vector<8x384xf32> to vector<8x128xf32>
    %311 = vector.extract_strided_slice %308 {offsets = [0, 0], sizes = [8, 128], strides = [1, 1]} : vector<8x384xf32> to vector<8x128xf32>
    %312 = arith.addf %310, %311 : vector<8x128xf32>
    %313 = arith.negf %312 : vector<8x128xf32>
    %314 = math.exp %313 : vector<8x128xf32>
    %cst_73 = arith.constant 1.000000e+00 : f32
    %315 = vector.broadcast %cst_73 : f32 to vector<8x128xf32>
    %316 = arith.addf %315, %314 : vector<8x128xf32>
    %317 = arith.divf %315, %316 : vector<8x128xf32>
    %318 = vector.extract_strided_slice %307 {offsets = [0, 128], sizes = [8, 128], strides = [1, 1]} : vector<8x384xf32> to vector<8x128xf32>
    %319 = vector.extract_strided_slice %308 {offsets = [0, 128], sizes = [8, 128], strides = [1, 1]} : vector<8x384xf32> to vector<8x128xf32>
    %320 = arith.addf %318, %319 : vector<8x128xf32>
    %321 = arith.negf %320 : vector<8x128xf32>
    %322 = math.exp %321 : vector<8x128xf32>
    %cst_74 = arith.constant 1.000000e+00 : f32
    %323 = vector.broadcast %cst_74 : f32 to vector<8x128xf32>
    %324 = arith.addf %323, %322 : vector<8x128xf32>
    %325 = arith.divf %323, %324 : vector<8x128xf32>
    %326 = vector.extract_strided_slice %307 {offsets = [0, 256], sizes = [8, 128], strides = [1, 1]} : vector<8x384xf32> to vector<8x128xf32>
    %327 = vector.extract_strided_slice %308 {offsets = [0, 256], sizes = [8, 128], strides = [1, 1]} : vector<8x384xf32> to vector<8x128xf32>
    %328 = arith.addf %327, %13 : vector<8x128xf32>
    %329 = arith.mulf %317, %328 : vector<8x128xf32>
    %330 = arith.addf %326, %329 : vector<8x128xf32>
    %331 = math.tanh %330 : vector<8x128xf32>
    %cst_75 = arith.constant 1.000000e+00 : f32
    %332 = vector.broadcast %cst_75 : f32 to vector<8x128xf32>
    %333 = arith.subf %332, %325 : vector<8x128xf32>
    %334 = arith.mulf %333, %331 : vector<8x128xf32>
    %335 = arith.mulf %325, %309 : vector<8x128xf32>
    %336 = arith.addf %334, %335 : vector<8x128xf32>
    %337 = tpu.concatenate %306, %336 in 1 : vector<8x128xf32>, vector<8x128xf32> -> vector<8x256xf32>
    %c32_76 = arith.constant 32 : index
    %c0_77 = arith.constant 0 : index
    %338 = vector.load %arg7[%c32_76, %c0_77] : memref<64x256xf32, #tpu.memory_space<vmem>>, vector<8x128xf32>
    tpu.vector_store %arg7[%c32_76, %c0_77], %306 {strides = array<i32>} : memref<64x256xf32, #tpu.memory_space<vmem>>, vector<8x128xf32>,
    %c24_78 = arith.constant 24 : index
    %c128_79 = arith.constant 128 : index
    %339 = vector.load %arg7[%c24_78, %c128_79] : memref<64x256xf32, #tpu.memory_space<vmem>>, vector<8x128xf32>
    tpu.vector_store %arg7[%c24_78, %c128_79], %336 {strides = array<i32>} : memref<64x256xf32, #tpu.memory_space<vmem>>, vector<8x128xf32>,
    %340 = arith.truncf %337 : vector<8x256xf32> to vector<8x256xbf16>
    %cst_80 = arith.constant dense<0.000000e+00> : vector<8x768xf32>
    %341 = tpu.matmul %340, %7, %cst_80 {dimension_numbers = #tpu.dot_dimension_numbers<[1], [0], [0], [1], [0, 0, 1, 1], [], []>} : vector<8x256xbf16>, vector<256x768xbf16>, vector<8x768xf32> -> vector<8x768xf32>
    %c40_81 = arith.constant 40 : index
    %c0_82 = arith.constant 0 : index
    %342 = vector.load %arg9[%c40_81, %c0_82] : memref<64x768xf32, #tpu.memory_space<vmem>>, vector<8x384xf32>
    %343 = vector.extract_strided_slice %341 {offsets = [0, 0], sizes = [8, 384], strides = [1, 1]} : vector<8x768xf32> to vector<8x384xf32>
    %344 = vector.extract_strided_slice %337 {offsets = [0, 0], sizes = [8, 128], strides = [1, 1]} : vector<8x256xf32> to vector<8x128xf32>
    %345 = vector.extract_strided_slice %342 {offsets = [0, 0], sizes = [8, 128], strides = [1, 1]} : vector<8x384xf32> to vector<8x128xf32>
    %346 = vector.extract_strided_slice %343 {offsets = [0, 0], sizes = [8, 128], strides = [1, 1]} : vector<8x384xf32> to vector<8x128xf32>
    %347 = arith.addf %345, %346 : vector<8x128xf32>
    %348 = arith.negf %347 : vector<8x128xf32>
    %349 = math.exp %348 : vector<8x128xf32>
    %cst_83 = arith.constant 1.000000e+00 : f32
    %350 = vector.broadcast %cst_83 : f32 to vector<8x128xf32>
    %351 = arith.addf %350, %349 : vector<8x128xf32>
    %352 = arith.divf %350, %351 : vector<8x128xf32>
    %353 = vector.extract_strided_slice %342 {offsets = [0, 128], sizes = [8, 128], strides = [1, 1]} : vector<8x384xf32> to vector<8x128xf32>
    %354 = vector.extract_strided_slice %343 {offsets = [0, 128], sizes = [8, 128], strides = [1, 1]} : vector<8x384xf32> to vector<8x128xf32>
    %355 = arith.addf %353, %354 : vector<8x128xf32>
    %356 = arith.negf %355 : vector<8x128xf32>
    %357 = math.exp %356 : vector<8x128xf32>
    %cst_84 = arith.constant 1.000000e+00 : f32
    %358 = vector.broadcast %cst_84 : f32 to vector<8x128xf32>
    %359 = arith.addf %358, %357 : vector<8x128xf32>
    %360 = arith.divf %358, %359 : vector<8x128xf32>
    %361 = vector.extract_strided_slice %342 {offsets = [0, 256], sizes = [8, 128], strides = [1, 1]} : vector<8x384xf32> to vector<8x128xf32>
    %362 = vector.extract_strided_slice %343 {offsets = [0, 256], sizes = [8, 128], strides = [1, 1]} : vector<8x384xf32> to vector<8x128xf32>
    %363 = arith.addf %362, %10 : vector<8x128xf32>
    %364 = arith.mulf %352, %363 : vector<8x128xf32>
    %365 = arith.addf %361, %364 : vector<8x128xf32>
    %366 = math.tanh %365 : vector<8x128xf32>
    %cst_85 = arith.constant 1.000000e+00 : f32
    %367 = vector.broadcast %cst_85 : f32 to vector<8x128xf32>
    %368 = arith.subf %367, %360 : vector<8x128xf32>
    %369 = arith.mulf %368, %366 : vector<8x128xf32>
    %370 = arith.mulf %360, %344 : vector<8x128xf32>
    %371 = arith.addf %369, %370 : vector<8x128xf32>
    %c16_86 = arith.constant 16 : index
    %c384_87 = arith.constant 384 : index
    %372 = vector.load %arg9[%c16_86, %c384_87] : memref<64x768xf32, #tpu.memory_space<vmem>>, vector<8x384xf32>
    %373 = vector.extract_strided_slice %341 {offsets = [0, 384], sizes = [8, 384], strides = [1, 1]} : vector<8x768xf32> to vector<8x384xf32>
    %374 = vector.extract_strided_slice %337 {offsets = [0, 128], sizes = [8, 128], strides = [1, 1]} : vector<8x256xf32> to vector<8x128xf32>
    %375 = vector.extract_strided_slice %372 {offsets = [0, 0], sizes = [8, 128], strides = [1, 1]} : vector<8x384xf32> to vector<8x128xf32>
    %376 = vector.extract_strided_slice %373 {offsets = [0, 0], sizes = [8, 128], strides = [1, 1]} : vector<8x384xf32> to vector<8x128xf32>
    %377 = arith.addf %375, %376 : vector<8x128xf32>
    %378 = arith.negf %377 : vector<8x128xf32>
    %379 = math.exp %378 : vector<8x128xf32>
    %cst_88 = arith.constant 1.000000e+00 : f32
    %380 = vector.broadcast %cst_88 : f32 to vector<8x128xf32>
    %381 = arith.addf %380, %379 : vector<8x128xf32>
    %382 = arith.divf %380, %381 : vector<8x128xf32>
    %383 = vector.extract_strided_slice %372 {offsets = [0, 128], sizes = [8, 128], strides = [1, 1]} : vector<8x384xf32> to vector<8x128xf32>
    %384 = vector.extract_strided_slice %373 {offsets = [0, 128], sizes = [8, 128], strides = [1, 1]} : vector<8x384xf32> to vector<8x128xf32>
    %385 = arith.addf %383, %384 : vector<8x128xf32>
    %386 = arith.negf %385 : vector<8x128xf32>
    %387 = math.exp %386 : vector<8x128xf32>
    %cst_89 = arith.constant 1.000000e+00 : f32
    %388 = vector.broadcast %cst_89 : f32 to vector<8x128xf32>
    %389 = arith.addf %388, %387 : vector<8x128xf32>
    %390 = arith.divf %388, %389 : vector<8x128xf32>
    %391 = vector.extract_strided_slice %372 {offsets = [0, 256], sizes = [8, 128], strides = [1, 1]} : vector<8x384xf32> to vector<8x128xf32>
    %392 = vector.extract_strided_slice %373 {offsets = [0, 256], sizes = [8, 128], strides = [1, 1]} : vector<8x384xf32> to vector<8x128xf32>
    %393 = arith.addf %392, %13 : vector<8x128xf32>
    %394 = arith.mulf %382, %393 : vector<8x128xf32>
    %395 = arith.addf %391, %394 : vector<8x128xf32>
    %396 = math.tanh %395 : vector<8x128xf32>
    %cst_90 = arith.constant 1.000000e+00 : f32
    %397 = vector.broadcast %cst_90 : f32 to vector<8x128xf32>
    %398 = arith.subf %397, %390 : vector<8x128xf32>
    %399 = arith.mulf %398, %396 : vector<8x128xf32>
    %400 = arith.mulf %390, %374 : vector<8x128xf32>
    %401 = arith.addf %399, %400 : vector<8x128xf32>
    %402 = tpu.concatenate %371, %401 in 1 : vector<8x128xf32>, vector<8x128xf32> -> vector<8x256xf32>
    %c40_91 = arith.constant 40 : index
    %c0_92 = arith.constant 0 : index
    %403 = vector.load %arg7[%c40_91, %c0_92] : memref<64x256xf32, #tpu.memory_space<vmem>>, vector<8x128xf32>
    tpu.vector_store %arg7[%c40_91, %c0_92], %371 {strides = array<i32>} : memref<64x256xf32, #tpu.memory_space<vmem>>, vector<8x128xf32>,
    %c16_93 = arith.constant 16 : index
    %c128_94 = arith.constant 128 : index
    %404 = vector.load %arg7[%c16_93, %c128_94] : memref<64x256xf32, #tpu.memory_space<vmem>>, vector<8x128xf32>
    tpu.vector_store %arg7[%c16_93, %c128_94], %401 {strides = array<i32>} : memref<64x256xf32, #tpu.memory_space<vmem>>, vector<8x128xf32>,
    %405 = arith.truncf %402 : vector<8x256xf32> to vector<8x256xbf16>
    %cst_95 = arith.constant dense<0.000000e+00> : vector<8x768xf32>
    %406 = tpu.matmul %405, %7, %cst_95 {dimension_numbers = #tpu.dot_dimension_numbers<[1], [0], [0], [1], [0, 0, 1, 1], [], []>} : vector<8x256xbf16>, vector<256x768xbf16>, vector<8x768xf32> -> vector<8x768xf32>
    %c48_96 = arith.constant 48 : index
    %c0_97 = arith.constant 0 : index
    %407 = vector.load %arg9[%c48_96, %c0_97] : memref<64x768xf32, #tpu.memory_space<vmem>>, vector<8x384xf32>
    %408 = vector.extract_strided_slice %406 {offsets = [0, 0], sizes = [8, 384], strides = [1, 1]} : vector<8x768xf32> to vector<8x384xf32>
    %409 = vector.extract_strided_slice %402 {offsets = [0, 0], sizes = [8, 128], strides = [1, 1]} : vector<8x256xf32> to vector<8x128xf32>
    %410 = vector.extract_strided_slice %407 {offsets = [0, 0], sizes = [8, 128], strides = [1, 1]} : vector<8x384xf32> to vector<8x128xf32>
    %411 = vector.extract_strided_slice %408 {offsets = [0, 0], sizes = [8, 128], strides = [1, 1]} : vector<8x384xf32> to vector<8x128xf32>
    %412 = arith.addf %410, %411 : vector<8x128xf32>
    %413 = arith.negf %412 : vector<8x128xf32>
    %414 = math.exp %413 : vector<8x128xf32>
    %cst_98 = arith.constant 1.000000e+00 : f32
    %415 = vector.broadcast %cst_98 : f32 to vector<8x128xf32>
    %416 = arith.addf %415, %414 : vector<8x128xf32>
    %417 = arith.divf %415, %416 : vector<8x128xf32>
    %418 = vector.extract_strided_slice %407 {offsets = [0, 128], sizes = [8, 128], strides = [1, 1]} : vector<8x384xf32> to vector<8x128xf32>
    %419 = vector.extract_strided_slice %408 {offsets = [0, 128], sizes = [8, 128], strides = [1, 1]} : vector<8x384xf32> to vector<8x128xf32>
    %420 = arith.addf %418, %419 : vector<8x128xf32>
    %421 = arith.negf %420 : vector<8x128xf32>
    %422 = math.exp %421 : vector<8x128xf32>
    %cst_99 = arith.constant 1.000000e+00 : f32
    %423 = vector.broadcast %cst_99 : f32 to vector<8x128xf32>
    %424 = arith.addf %423, %422 : vector<8x128xf32>
    %425 = arith.divf %423, %424 : vector<8x128xf32>
    %426 = vector.extract_strided_slice %407 {offsets = [0, 256], sizes = [8, 128], strides = [1, 1]} : vector<8x384xf32> to vector<8x128xf32>
    %427 = vector.extract_strided_slice %408 {offsets = [0, 256], sizes = [8, 128], strides = [1, 1]} : vector<8x384xf32> to vector<8x128xf32>
    %428 = arith.addf %427, %10 : vector<8x128xf32>
    %429 = arith.mulf %417, %428 : vector<8x128xf32>
    %430 = arith.addf %426, %429 : vector<8x128xf32>
    %431 = math.tanh %430 : vector<8x128xf32>
    %cst_100 = arith.constant 1.000000e+00 : f32
    %432 = vector.broadcast %cst_100 : f32 to vector<8x128xf32>
    %433 = arith.subf %432, %425 : vector<8x128xf32>
    %434 = arith.mulf %433, %431 : vector<8x128xf32>
    %435 = arith.mulf %425, %409 : vector<8x128xf32>
    %436 = arith.addf %434, %435 : vector<8x128xf32>
    %c8_101 = arith.constant 8 : index
    %c384_102 = arith.constant 384 : index
    %437 = vector.load %arg9[%c8_101, %c384_102] : memref<64x768xf32, #tpu.memory_space<vmem>>, vector<8x384xf32>
    %438 = vector.extract_strided_slice %406 {offsets = [0, 384], sizes = [8, 384], strides = [1, 1]} : vector<8x768xf32> to vector<8x384xf32>
    %439 = vector.extract_strided_slice %402 {offsets = [0, 128], sizes = [8, 128], strides = [1, 1]} : vector<8x256xf32> to vector<8x128xf32>
    %440 = vector.extract_strided_slice %437 {offsets = [0, 0], sizes = [8, 128], strides = [1, 1]} : vector<8x384xf32> to vector<8x128xf32>
    %441 = vector.extract_strided_slice %438 {offsets = [0, 0], sizes = [8, 128], strides = [1, 1]} : vector<8x384xf32> to vector<8x128xf32>
    %442 = arith.addf %440, %441 : vector<8x128xf32>
    %443 = arith.negf %442 : vector<8x128xf32>
    %444 = math.exp %443 : vector<8x128xf32>
    %cst_103 = arith.constant 1.000000e+00 : f32
    %445 = vector.broadcast %cst_103 : f32 to vector<8x128xf32>
    %446 = arith.addf %445, %444 : vector<8x128xf32>
    %447 = arith.divf %445, %446 : vector<8x128xf32>
    %448 = vector.extract_strided_slice %437 {offsets = [0, 128], sizes = [8, 128], strides = [1, 1]} : vector<8x384xf32> to vector<8x128xf32>
    %449 = vector.extract_strided_slice %438 {offsets = [0, 128], sizes = [8, 128], strides = [1, 1]} : vector<8x384xf32> to vector<8x128xf32>
    %450 = arith.addf %448, %449 : vector<8x128xf32>
    %451 = arith.negf %450 : vector<8x128xf32>
    %452 = math.exp %451 : vector<8x128xf32>
    %cst_104 = arith.constant 1.000000e+00 : f32
    %453 = vector.broadcast %cst_104 : f32 to vector<8x128xf32>
    %454 = arith.addf %453, %452 : vector<8x128xf32>
    %455 = arith.divf %453, %454 : vector<8x128xf32>
    %456 = vector.extract_strided_slice %437 {offsets = [0, 256], sizes = [8, 128], strides = [1, 1]} : vector<8x384xf32> to vector<8x128xf32>
    %457 = vector.extract_strided_slice %438 {offsets = [0, 256], sizes = [8, 128], strides = [1, 1]} : vector<8x384xf32> to vector<8x128xf32>
    %458 = arith.addf %457, %13 : vector<8x128xf32>
    %459 = arith.mulf %447, %458 : vector<8x128xf32>
    %460 = arith.addf %456, %459 : vector<8x128xf32>
    %461 = math.tanh %460 : vector<8x128xf32>
    %cst_105 = arith.constant 1.000000e+00 : f32
    %462 = vector.broadcast %cst_105 : f32 to vector<8x128xf32>
    %463 = arith.subf %462, %455 : vector<8x128xf32>
    %464 = arith.mulf %463, %461 : vector<8x128xf32>
    %465 = arith.mulf %455, %439 : vector<8x128xf32>
    %466 = arith.addf %464, %465 : vector<8x128xf32>
    %467 = tpu.concatenate %436, %466 in 1 : vector<8x128xf32>, vector<8x128xf32> -> vector<8x256xf32>
    %c48_106 = arith.constant 48 : index
    %c0_107 = arith.constant 0 : index
    %468 = vector.load %arg7[%c48_106, %c0_107] : memref<64x256xf32, #tpu.memory_space<vmem>>, vector<8x128xf32>
    tpu.vector_store %arg7[%c48_106, %c0_107], %436 {strides = array<i32>} : memref<64x256xf32, #tpu.memory_space<vmem>>, vector<8x128xf32>,
    %c8_108 = arith.constant 8 : index
    %c128_109 = arith.constant 128 : index
    %469 = vector.load %arg7[%c8_108, %c128_109] : memref<64x256xf32, #tpu.memory_space<vmem>>, vector<8x128xf32>
    tpu.vector_store %arg7[%c8_108, %c128_109], %466 {strides = array<i32>} : memref<64x256xf32, #tpu.memory_space<vmem>>, vector<8x128xf32>,
    %470 = arith.truncf %467 : vector<8x256xf32> to vector<8x256xbf16>
    %cst_110 = arith.constant dense<0.000000e+00> : vector<8x768xf32>
    %471 = tpu.matmul %470, %7, %cst_110 {dimension_numbers = #tpu.dot_dimension_numbers<[1], [0], [0], [1], [0, 0, 1, 1], [], []>} : vector<8x256xbf16>, vector<256x768xbf16>, vector<8x768xf32> -> vector<8x768xf32>
    %c56_111 = arith.constant 56 : index
    %c0_112 = arith.constant 0 : index
    %472 = vector.load %arg9[%c56_111, %c0_112] : memref<64x768xf32, #tpu.memory_space<vmem>>, vector<8x384xf32>
    %473 = vector.extract_strided_slice %471 {offsets = [0, 0], sizes = [8, 384], strides = [1, 1]} : vector<8x768xf32> to vector<8x384xf32>
    %474 = vector.extract_strided_slice %467 {offsets = [0, 0], sizes = [8, 128], strides = [1, 1]} : vector<8x256xf32> to vector<8x128xf32>
    %475 = vector.extract_strided_slice %472 {offsets = [0, 0], sizes = [8, 128], strides = [1, 1]} : vector<8x384xf32> to vector<8x128xf32>
    %476 = vector.extract_strided_slice %473 {offsets = [0, 0], sizes = [8, 128], strides = [1, 1]} : vector<8x384xf32> to vector<8x128xf32>
    %477 = arith.addf %475, %476 : vector<8x128xf32>
    %478 = arith.negf %477 : vector<8x128xf32>
    %479 = math.exp %478 : vector<8x128xf32>
    %cst_113 = arith.constant 1.000000e+00 : f32
    %480 = vector.broadcast %cst_113 : f32 to vector<8x128xf32>
    %481 = arith.addf %480, %479 : vector<8x128xf32>
    %482 = arith.divf %480, %481 : vector<8x128xf32>
    %483 = vector.extract_strided_slice %472 {offsets = [0, 128], sizes = [8, 128], strides = [1, 1]} : vector<8x384xf32> to vector<8x128xf32>
    %484 = vector.extract_strided_slice %473 {offsets = [0, 128], sizes = [8, 128], strides = [1, 1]} : vector<8x384xf32> to vector<8x128xf32>
    %485 = arith.addf %483, %484 : vector<8x128xf32>
    %486 = arith.negf %485 : vector<8x128xf32>
    %487 = math.exp %486 : vector<8x128xf32>
    %cst_114 = arith.constant 1.000000e+00 : f32
    %488 = vector.broadcast %cst_114 : f32 to vector<8x128xf32>
    %489 = arith.addf %488, %487 : vector<8x128xf32>
    %490 = arith.divf %488, %489 : vector<8x128xf32>
    %491 = vector.extract_strided_slice %472 {offsets = [0, 256], sizes = [8, 128], strides = [1, 1]} : vector<8x384xf32> to vector<8x128xf32>
    %492 = vector.extract_strided_slice %473 {offsets = [0, 256], sizes = [8, 128], strides = [1, 1]} : vector<8x384xf32> to vector<8x128xf32>
    %493 = arith.addf %492, %10 : vector<8x128xf32>
    %494 = arith.mulf %482, %493 : vector<8x128xf32>
    %495 = arith.addf %491, %494 : vector<8x128xf32>
    %496 = math.tanh %495 : vector<8x128xf32>
    %cst_115 = arith.constant 1.000000e+00 : f32
    %497 = vector.broadcast %cst_115 : f32 to vector<8x128xf32>
    %498 = arith.subf %497, %490 : vector<8x128xf32>
    %499 = arith.mulf %498, %496 : vector<8x128xf32>
    %500 = arith.mulf %490, %474 : vector<8x128xf32>
    %501 = arith.addf %499, %500 : vector<8x128xf32>
    %c0_116 = arith.constant 0 : index
    %c384_117 = arith.constant 384 : index
    %502 = vector.load %arg9[%c0_116, %c384_117] : memref<64x768xf32, #tpu.memory_space<vmem>>, vector<8x384xf32>
    %503 = vector.extract_strided_slice %471 {offsets = [0, 384], sizes = [8, 384], strides = [1, 1]} : vector<8x768xf32> to vector<8x384xf32>
    %504 = vector.extract_strided_slice %467 {offsets = [0, 128], sizes = [8, 128], strides = [1, 1]} : vector<8x256xf32> to vector<8x128xf32>
    %505 = vector.extract_strided_slice %502 {offsets = [0, 0], sizes = [8, 128], strides = [1, 1]} : vector<8x384xf32> to vector<8x128xf32>
    %506 = vector.extract_strided_slice %503 {offsets = [0, 0], sizes = [8, 128], strides = [1, 1]} : vector<8x384xf32> to vector<8x128xf32>
    %507 = arith.addf %505, %506 : vector<8x128xf32>
    %508 = arith.negf %507 : vector<8x128xf32>
    %509 = math.exp %508 : vector<8x128xf32>
    %cst_118 = arith.constant 1.000000e+00 : f32
    %510 = vector.broadcast %cst_118 : f32 to vector<8x128xf32>
    %511 = arith.addf %510, %509 : vector<8x128xf32>
    %512 = arith.divf %510, %511 : vector<8x128xf32>
    %513 = vector.extract_strided_slice %502 {offsets = [0, 128], sizes = [8, 128], strides = [1, 1]} : vector<8x384xf32> to vector<8x128xf32>
    %514 = vector.extract_strided_slice %503 {offsets = [0, 128], sizes = [8, 128], strides = [1, 1]} : vector<8x384xf32> to vector<8x128xf32>
    %515 = arith.addf %513, %514 : vector<8x128xf32>
    %516 = arith.negf %515 : vector<8x128xf32>
    %517 = math.exp %516 : vector<8x128xf32>
    %cst_119 = arith.constant 1.000000e+00 : f32
    %518 = vector.broadcast %cst_119 : f32 to vector<8x128xf32>
    %519 = arith.addf %518, %517 : vector<8x128xf32>
    %520 = arith.divf %518, %519 : vector<8x128xf32>
    %521 = vector.extract_strided_slice %502 {offsets = [0, 256], sizes = [8, 128], strides = [1, 1]} : vector<8x384xf32> to vector<8x128xf32>
    %522 = vector.extract_strided_slice %503 {offsets = [0, 256], sizes = [8, 128], strides = [1, 1]} : vector<8x384xf32> to vector<8x128xf32>
    %523 = arith.addf %522, %13 : vector<8x128xf32>
    %524 = arith.mulf %512, %523 : vector<8x128xf32>
    %525 = arith.addf %521, %524 : vector<8x128xf32>
    %526 = math.tanh %525 : vector<8x128xf32>
    %cst_120 = arith.constant 1.000000e+00 : f32
    %527 = vector.broadcast %cst_120 : f32 to vector<8x128xf32>
    %528 = arith.subf %527, %520 : vector<8x128xf32>
    %529 = arith.mulf %528, %526 : vector<8x128xf32>
    %530 = arith.mulf %520, %504 : vector<8x128xf32>
    %531 = arith.addf %529, %530 : vector<8x128xf32>
    %532 = tpu.concatenate %501, %531 in 1 : vector<8x128xf32>, vector<8x128xf32> -> vector<8x256xf32>
    %c56_121 = arith.constant 56 : index
    %c0_122 = arith.constant 0 : index
    %533 = vector.load %arg7[%c56_121, %c0_122] : memref<64x256xf32, #tpu.memory_space<vmem>>, vector<8x128xf32>
    tpu.vector_store %arg7[%c56_121, %c0_122], %501 {strides = array<i32>} : memref<64x256xf32, #tpu.memory_space<vmem>>, vector<8x128xf32>,
    %c0_123 = arith.constant 0 : index
    %c128_124 = arith.constant 128 : index
    %534 = vector.load %arg7[%c0_123, %c128_124] : memref<64x256xf32, #tpu.memory_space<vmem>>, vector<8x128xf32>
    tpu.vector_store %arg7[%c0_123, %c128_124], %531 {strides = array<i32>} : memref<64x256xf32, #tpu.memory_space<vmem>>, vector<8x128xf32>,
    %535 = arith.truncf %532 : vector<8x256xf32> to vector<8x256xbf16>
    %c0_125 = arith.constant 0 : index
    %c0_126 = arith.constant 0 : index
    %536 = vector.load %arg5[%c0_125, %c0_126] : memref<256x128xbf16, #tpu.memory_space<vmem>>, vector<256x128xbf16>
    %cst_127 = arith.constant dense<0.000000e+00> : vector<8x128xf32>
    %537 = tpu.matmul %535, %536, %cst_127 {dimension_numbers = #tpu.dot_dimension_numbers<[1], [0], [0], [1], [0, 0, 1, 1], [], []>} : vector<8x256xbf16>, vector<256x128xbf16>, vector<8x128xf32> -> vector<8x128xf32>
    %c0_128 = arith.constant 0 : index
    %c0_129 = arith.constant 0 : index
    %538 = vector.load %arg6[%c0_128, %c0_129] : memref<1x128xf32, #tpu.memory_space<vmem>>, vector<1x128xf32>
    %539 = vector.broadcast %538 : vector<1x128xf32> to vector<8x128xf32>
    %540 = arith.addf %537, %539 : vector<8x128xf32>
    %541 = math.tanh %540 : vector<8x128xf32>
    %c0_130 = arith.constant 0 : index
    %c0_131 = arith.constant 0 : index
    %542 = vector.load %arg8[%c0_130, %c0_131] : memref<8x128xf32, #tpu.memory_space<vmem>>, vector<8x128xf32>
    tpu.vector_store %arg8[%c0_130, %c0_131], %541 {strides = array<i32>} : memref<8x128xf32, #tpu.memory_space<vmem>>, vector<8x128xf32>,
    return
  }
}

</mosaic_0001>

<llo_original>
// kernel: tpu_custom_call.1
$region0: #{tpu_custom_call.1}
  #allocation0 [shape = 'u32[]', space=smem, size = 0x4, offset = 0x4, fixed_abs, tag = 'smem constant byte address 0x4 - core index']
  #allocation1 [shape = 'u32[144,128]{1,0:T(1,128)}', space=vmem, size = 0x12000, scoped, tag = 'internal scratch']
  #allocation2 [shape = 'f32[64,768]{1,0:T(8,128)}', space=vmem, size = 0x30000, scoped, tag = 'scratch operand']
  %s0 = inlined_call_operand.vmem [shape: bf16[64,32], index: 0, kind: input, shape index: {}]
  %s1 = inlined_call_operand.hbm [shape: bf16[32,768], index: 1, kind: input, shape index: {}]
  %s2 = inlined_call_operand.hbm [shape: bf16[256,768], index: 2, kind: input, shape index: {}]
  %s3 = inlined_call_operand.vmem [shape: f32[1,768], index: 3, kind: input, shape index: {}]
  %s4 = inlined_call_operand.vmem [shape: f32[1,256], index: 4, kind: input, shape index: {}]
  %s5 = inlined_call_operand.hbm [shape: bf16[256,128], index: 5, kind: input, shape index: {}]
  %s6 = inlined_call_operand.vmem [shape: f32[1,128], index: 6, kind: input, shape index: {}]
  %s7 = inlined_call_operand.hbm [shape: f32[64,256], index: 7, kind: output, shape index: {0}]
  %s8 = inlined_call_operand.hbm [shape: f32[8,128], index: 8, kind: output, shape index: {1}]
  %9 = xla_tuple %s7, %s8
  %s10 = sld [smem:[#allocation0]]
  $region58: #{tpu_custom_call.1} parent=0
    _
  %s12 = ssub.s32 1, %s10
  %s13 = scalar_select 0, %s12, %s10
  $region1: #{tpu_custom_call.1} parent=0
    #allocation3 [shape = 'u8[49152]{0}', space=vmem, size = 0xc000, scoped, tag = 'input window, operand 1, single buffered']
    #allocation4 [shape = 's32[1]{0}', space=sflag, size = 0x4, scoped, tag = 'scoped memory for tpu_custom_call.1']
    #allocation5 [shape = 's32[1]{0}', space=sflag, size = 0x4, scoped, tag = 'scoped memory for tpu_custom_call.1']
    #allocation6 [shape = 'u8[393216]{0}', space=vmem, size = 0x60000, scoped, tag = 'input window, operand 2, single buffered']
    #allocation7 [shape = 's32[1]{0}', space=sflag, size = 0x4, scoped, tag = 'scoped memory for tpu_custom_call.1']
    #allocation8 [shape = 'u8[65536]{0}', space=vmem, size = 0x10000, scoped, tag = 'input window, operand 5, single buffered']
    #allocation9 [shape = 'u8[65536]{0}', space=vmem, size = 0x10000, scoped, tag = 'output window, operand 0, single buffered']
    #allocation10 [shape = 'u8[4096]{0}', space=vmem, size = 0x1000, scoped, tag = 'output window, operand 1, single buffered']
    #allocation11 [shape = 's32[1]{0}', space=sflag, size = 0x4, scoped, tag = 'scoped memory for tpu_custom_call.1']
    %14 = vsyncpa [#allocation4], 0
    %15 = vsyncpa [#allocation7], 0
    %16 = vsyncpa [#allocation5], 0
    %17 = vsyncpa [#allocation11], 0
    // Predicated region
    $region2: #{tpu_custom_call.1} parent=1 // pred_check
      _
    $region3: #{tpu_custom_call.1} parent=1 // pred_check_branch
      %19 = sbr.rel (0) target = $region5
    $region4: #{tpu_custom_call.1} parent=1 // pred_region
      _
    $region5: #{tpu_custom_call.1} parent=1 // pred_fallthru
      _
    // Predicated region
    $region6: #{tpu_custom_call.1} parent=1 // pred_check
      _
    $region7: #{tpu_custom_call.1} parent=1 // pred_check_branch
      %21 = sbr.rel (0) target = $region9
    $region8: #{tpu_custom_call.1} parent=1 // pred_region
      %s23 = ssub.s32 1536, 1536
      %24 = vsyncadd [#allocation4], %s23
      %s25 = sshll.u32 [#allocation3], 4
      %s26 = int_to_ptr.vmem [resolvable:$true] %s25
      %31 = dma.hbm_to_vmem [thread:$0]  %s1, 1536, %s26, [#allocation4], 384, 384, 24
    $region9: #{tpu_custom_call.1} parent=1 // pred_fallthru
      _
    // Predicated region
    $region10: #{tpu_custom_call.1} parent=1 // pred_check
      _
    $region11: #{tpu_custom_call.1} parent=1 // pred_check_branch
      %33 = sbr.rel (0) target = $region13
    $region12: #{tpu_custom_call.1} parent=1 // pred_region
      %s35 = ssub.s32 12288, 12288
      %36 = vsyncadd [#allocation7], %s35
      %s37 = sshll.u32 [#allocation6], 4
      %s38 = int_to_ptr.vmem [resolvable:$true] %s37
      %43 = dma.hbm_to_vmem [thread:$0]  %s2, 12288, %s38, [#allocation7], 384, 384, 24
    $region13: #{tpu_custom_call.1} parent=1 // pred_fallthru
      _
    // Predicated region
    $region14: #{tpu_custom_call.1} parent=1 // pred_check
      _
    $region15: #{tpu_custom_call.1} parent=1 // pred_check_branch
      %45 = sbr.rel (0) target = $region17
    $region16: #{tpu_custom_call.1} parent=1 // pred_region
      _
    $region17: #{tpu_custom_call.1} parent=1 // pred_fallthru
      _
    // Predicated region
    $region18: #{tpu_custom_call.1} parent=1 // pred_check
      _
    $region19: #{tpu_custom_call.1} parent=1 // pred_check_branch
      %47 = sbr.rel (0) target = $region21
    $region20: #{tpu_custom_call.1} parent=1 // pred_region
      _
    $region21: #{tpu_custom_call.1} parent=1 // pred_fallthru
      _
    // Predicated region
    $region22: #{tpu_custom_call.1} parent=1 // pred_check
      _
    $region23: #{tpu_custom_call.1} parent=1 // pred_check_branch
      %49 = sbr.rel (0) target = $region25
    $region24: #{tpu_custom_call.1} parent=1 // pred_region
      %s51 = ssub.s32 2048, 2048
      %52 = vsyncadd [#allocation7], %s51
      %s53 = sshll.u32 [#allocation8], 4
      %s54 = int_to_ptr.vmem [resolvable:$true] %s53
      %59 = dma.hbm_to_vmem [thread:$0]  %s5, 2048, %s54, [#allocation7], 64, 64, 4
    $region25: #{tpu_custom_call.1} parent=1 // pred_fallthru
      _
    // Predicated region
    $region26: #{tpu_custom_call.1} parent=1 // pred_check
      _
    $region27: #{tpu_custom_call.1} parent=1 // pred_check_branch
      %61 = sbr.rel (0) target = $region29
    $region28: #{tpu_custom_call.1} parent=1 // pred_region
      _
    $region29: #{tpu_custom_call.1} parent=1 // pred_fallthru
      _
    // Predicated region
    $region30: #{tpu_custom_call.1} parent=1 // pred_check
      _
    $region31: #{tpu_custom_call.1} parent=1 // pred_check_branch
      %63 = sbr.rel (0) target = $region33
    $region32: #{tpu_custom_call.1} parent=1 // pred_region
      %64 = dma.done [#allocation4], 1536
    $region33: #{tpu_custom_call.1} parent=1 // pred_fallthru
      _
    // Predicated region
    $region34: #{tpu_custom_call.1} parent=1 // pred_check
      _
    $region35: #{tpu_custom_call.1} parent=1 // pred_check_branch
      %66 = sbr.rel (0) target = $region37
    $region36: #{tpu_custom_call.1} parent=1 // pred_region
      %67 = dma.done [#allocation7], 12288
    $region37: #{tpu_custom_call.1} parent=1 // pred_fallthru
      _
    // Predicated region
    $region38: #{tpu_custom_call.1} parent=1 // pred_check
      _
    $region39: #{tpu_custom_call.1} parent=1 // pred_check_branch
      %69 = sbr.rel (0) target = $region41
    $region40: #{tpu_custom_call.1} parent=1 // pred_region
      %70 = dma.done [#allocation7], 2048
    $region41: #{tpu_custom_call.1} parent=1 // pred_fallthru
      _
    %v72 = vld [vmem:[%s0] sm:$0xf]
    %v73 = vld [vmem:[%s0 + $0x4] sm:$0xf]
    %v74 = vld [vmem:[%s0 + $0x8] sm:$0xf]
    %v75 = vld [vmem:[%s0 + $0xc] sm:$0xf]
    %v76 = vld [vmem:[%s0 + $0x10] sm:$0xf]
    %v77 = vld [vmem:[%s0 + $0x14] sm:$0xf]
    %v78 = vld [vmem:[%s0 + $0x18] sm:$0xf]
    %v79 = vld [vmem:[%s0 + $0x1c] sm:$0xf]
    %v80 = vld [vmem:[#allocation3] sm:$0xff]
    %v81 = vld [vmem:[#allocation3 + $0x8] sm:$0xff]
    %v82 = vld [vmem:[#allocation3 + $0x10] sm:$0xff]
    %v83 = vld [vmem:[#allocation3 + $0x18] sm:$0xff]
    %v84 = vld [vmem:[#allocation3 + $0x20] sm:$0xff]
    %v85 = vld [vmem:[#allocation3 + $0x28] sm:$0xff]
    %v86 = vld [vmem:[#allocation3 + $0x30] sm:$0xff]
    %v87 = vld [vmem:[#allocation3 + $0x38] sm:$0xff]
    %v88 = vld [vmem:[#allocation3 + $0x40] sm:$0xff]
    %v89 = vld [vmem:[#allocation3 + $0x48] sm:$0xff]
    %v90 = vld [vmem:[#allocation3 + $0x50] sm:$0xff]
    %v91 = vld [vmem:[#allocation3 + $0x58] sm:$0xff]
    %v92 = vld [vmem:[%s3] sm:$0x3f]
    %v94 = vlaneseq
    %v95 = vshrl.u32 %v94, 7
    %v96 = vsub.s32 0, %v95
    %v97 = vrot.slane %v92, %v96
    %v98 = vlaneseq
    %v99 = vshrl.u32 %v98, 7
    %v100 = vsub.s32 1, %v99
    %v101 = vrot.slane %v92, %v100
    %v102 = vlaneseq
    %v103 = vshrl.u32 %v102, 7
    %v104 = vsub.s32 2, %v103
    %v105 = vrot.slane %v92, %v104
    %v106 = vlaneseq
    %v107 = vshrl.u32 %v106, 7
    %v108 = vsub.s32 3, %v107
    %v109 = vrot.slane %v92, %v108
    %v110 = vlaneseq
    %v111 = vshrl.u32 %v110, 7
    %v112 = vsub.s32 4, %v111
    %v113 = vrot.slane %v92, %v112
    %v114 = vlaneseq
    %v115 = vshrl.u32 %v114, 7
    %v116 = vsub.s32 5, %v115
    %v117 = vrot.slane %v92, %v116
    %v132 = vunpack.c.l.b16 %v72
    %v133 = vunpack.c.l.b16 %v73
    %v134 = vunpack.c.l.b16 %v74
    %v135 = vunpack.c.l.b16 %v75
    %v136 = vunpack.c.l.b16 %v76
    %v137 = vunpack.c.l.b16 %v77
    %v138 = vunpack.c.l.b16 %v78
    %v139 = vunpack.c.l.b16 %v79
    %v140 = vpack.c.b16 %v133, %v132
    %v141 = vpack.c.b16 %v135, %v134
    %v142 = vpack.c.b16 %v137, %v136
    %v143 = vpack.c.b16 %v139, %v138
    %v156 = vunpack.c.l.b16 %v80
    %v157 = vunpack.c.h.b16 %v80
    %v158 = vunpack.c.l.b16 %v81
    %v159 = vunpack.c.h.b16 %v81
    %v160 = vunpack.c.l.b16 %v82
    %v161 = vunpack.c.h.b16 %v82
    %v162 = vunpack.c.l.b16 %v83
    %v163 = vunpack.c.h.b16 %v83
    %v164 = vunpack.c.l.b16 %v84
    %v165 = vunpack.c.h.b16 %v84
    %v166 = vunpack.c.l.b16 %v85
    %v167 = vunpack.c.h.b16 %v85
    %v168 = vunpack.c.l.b16 %v86
    %v169 = vunpack.c.h.b16 %v86
    %v170 = vunpack.c.l.b16 %v87
    %v171 = vunpack.c.h.b16 %v87
    %v172 = vunpack.c.l.b16 %v88
    %v173 = vunpack.c.h.b16 %v88
    %v174 = vunpack.c.l.b16 %v89
    %v175 = vunpack.c.h.b16 %v89
    %v176 = vunpack.c.l.b16 %v90
    %v177 = vunpack.c.h.b16 %v90
    %v178 = vunpack.c.l.b16 %v91
    %v179 = vunpack.c.h.b16 %v91
    %v180 = vpack.c.b16 %v162, %v156
    %v181 = vpack.c.b16 %v163, %v157
    %v182 = vpack.c.b16 %v164, %v158
    %v183 = vpack.c.b16 %v165, %v159
    %v184 = vpack.c.b16 %v166, %v160
    %v185 = vpack.c.b16 %v167, %v161
    %v186 = vpack.c.b16 %v174, %v168
    %v187 = vpack.c.b16 %v175, %v169
    %v188 = vpack.c.b16 %v176, %v170
    %v189 = vpack.c.b16 %v177, %v171
    %v190 = vpack.c.b16 %v178, %v172
    %v191 = vpack.c.b16 %v179, %v173
    %vm204 = vcmask 261120
    %v206 = vsel %vm204, %v140, 0
    %v209 = vsel %vm204, %v141, 0
    %v212 = vsel %vm204, %v142, 0
    %v215 = vsel %vm204, %v143, 0
    %217 = vmatprep.subr.bf16.mxu0 %v181
    %218 = vmatpush1.bf16.msra.mxu0 %v180
    %219 = vmatprep.subr.bf16.mxu0 %v187
    %220 = vmatpush1.bf16.msra.mxu0 %v186
    %221 = vmatprep.subr.bf16.mxu0 0
    %222 = vmatpush1.bf16.msra.mxu0 0
    %223 = vmatprep.subr.bf16.mxu0 0
    %224 = vmatpush1.bf16.msra.mxu0 0
    %225 = vmatprep.subr.bf16.mxu0 0
    %226 = vmatpush1.bf16.msra.mxu0 0
    %227 = vmatprep.subr.bf16.mxu0 0
    %228 = vmatpush1.bf16.msra.mxu0 0
    %229 = vmatprep.subr.bf16.mxu0 0
    %230 = vmatpush1.bf16.msra.mxu0 0
    %231 = vmatprep.subr.bf16.mxu0 0
    %232 = vmatpush1.bf16.msra.mxu0 0
    %233 = vmatprep.subr.bf16.mxu0 0
    %234 = vmatpush1.bf16.msra.mxu0 0
    %235 = vmatprep.subr.bf16.mxu0 0
    %236 = vmatpush1.bf16.msra.mxu0 0
    %237 = vmatprep.subr.bf16.mxu0 0
    %238 = vmatpush1.bf16.msra.mxu0 0
    %239 = vmatprep.subr.bf16.mxu0 0
    %240 = vmatpush1.bf16.msra.mxu0 0
    %241 = vmatprep.subr.bf16.mxu0 0
    %242 = vmatpush1.bf16.msra.mxu0 0
    %243 = vmatprep.subr.bf16.mxu0 0
    %244 = vmatpush1.bf16.msra.mxu0 0
    %245 = vmatprep.subr.bf16.mxu0 0
    %246 = vmatpush1.bf16.msra.mxu0 0
    %247 = vmatprep.subr.bf16.mxu0 0
    %248 = vmatpush1.bf16.msra.mxu0 0
    %249 = vmatprep.mubr.bf16.mxu0 0
    %250 = vmatmul.mubr.bf16.gmra.mrb[0].mxu0 %v206
    %v251 = vpop.f32.mrb[0].mxu0
    %v252 = vadd.f32 %v97, %v251
    %v253 = vpop.f32.mrb[0].mxu0
    %v254 = vadd.f32 %v101, %v253
    %v255 = vpop.f32.mrb[0].mxu0
    %v256 = vadd.f32 %v97, %v255
    %v257 = vpop.f32.mrb[0].mxu0
    %v258 = vadd.f32 %v101, %v257
    %259 = vmatprep.mubr.bf16.mxu0 0
    %260 = vmatmul.mubr.bf16.gmra.mrb[0].mxu0 %v209
    %v261 = vpop.f32.mrb[0].mxu0
    %v262 = vadd.f32 %v97, %v261
    %v263 = vpop.f32.mrb[0].mxu0
    %v264 = vadd.f32 %v101, %v263
    %v265 = vpop.f32.mrb[0].mxu0
    %v266 = vadd.f32 %v97, %v265
    %v267 = vpop.f32.mrb[0].mxu0
    %v268 = vadd.f32 %v101, %v267
    %269 = vmatprep.mubr.bf16.mxu0 0
    %270 = vmatmul.mubr.bf16.gmra.mrb[0].mxu0 %v212
    %v271 = vpop.f32.mrb[0].mxu0
    %v272 = vadd.f32 %v97, %v271
    %v273 = vpop.f32.mrb[0].mxu0
    %v274 = vadd.f32 %v101, %v273
    %v275 = vpop.f32.mrb[0].mxu0
    %v276 = vadd.f32 %v97, %v275
    %v277 = vpop.f32.mrb[0].mxu0
    %v278 = vadd.f32 %v101, %v277
    %279 = vmatprep.mubr.bf16.mxu0 0
    %280 = vmatmul.mubr.bf16.gmra.mrb[0].mxu0 %v215
    %v281 = vpop.f32.mrb[0].mxu0
    %v282 = vadd.f32 %v97, %v281
    %v283 = vpop.f32.mrb[0].mxu0
    %v284 = vadd.f32 %v101, %v283
    %v285 = vpop.f32.mrb[0].mxu0
    %v286 = vadd.f32 %v97, %v285
    %v287 = vpop.f32.mrb[0].mxu0
    %v288 = vadd.f32 %v101, %v287
    %289 = vdwg.mxu0
    %290 = vmatprep.subr.bf16.mxu0 %v183
    %291 = vmatpush1.bf16.msra.mxu0 %v182
    %292 = vmatprep.subr.bf16.mxu0 %v189
    %293 = vmatpush1.bf16.msra.mxu0 %v188
    %294 = vmatprep.subr.bf16.mxu0 0
    %295 = vmatpush1.bf16.msra.mxu0 0
    %296 = vmatprep.subr.bf16.mxu0 0
    %297 = vmatpush1.bf16.msra.mxu0 0
    %298 = vmatprep.subr.bf16.mxu0 0
    %299 = vmatpush1.bf16.msra.mxu0 0
    %300 = vmatprep.subr.bf16.mxu0 0
    %301 = vmatpush1.bf16.msra.mxu0 0
    %302 = vmatprep.subr.bf16.mxu0 0
    %303 = vmatpush1.bf16.msra.mxu0 0
    %304 = vmatprep.subr.bf16.mxu0 0
    %305 = vmatpush1.bf16.msra.mxu0 0
    %306 = vmatprep.subr.bf16.mxu0 0
    %307 = vmatpush1.bf16.msra.mxu0 0
    %308 = vmatprep.subr.bf16.mxu0 0
    %309 = vmatpush1.bf16.msra.mxu0 0
    %310 = vmatprep.subr.bf16.mxu0 0
    %311 = vmatpush1.bf16.msra.mxu0 0
    %312 = vmatprep.subr.bf16.mxu0 0
    %313 = vmatpush1.bf16.msra.mxu0 0
    %314 = vmatprep.subr.bf16.mxu0 0
    %315 = vmatpush1.bf16.msra.mxu0 0
    %316 = vmatprep.subr.bf16.mxu0 0
    %317 = vmatpush1.bf16.msra.mxu0 0
    %318 = vmatprep.subr.bf16.mxu0 0
    %319 = vmatpush1.bf16.msra.mxu0 0
    %320 = vmatprep.subr.bf16.mxu0 0
    %321 = vmatpush1.bf16.msra.mxu0 0
    %322 = vmatprep.mubr.bf16.mxu0 0
    %323 = vmatmul.mubr.bf16.gmra.mrb[0].mxu0 %v206
    %v324 = vpop.f32.mrb[0].mxu0
    %v325 = vadd.f32 %v105, %v324
    %v326 = vpop.f32.mrb[0].mxu0
    %v327 = vadd.f32 %v109, %v326
    %v328 = vpop.f32.mrb[0].mxu0
    %v329 = vadd.f32 %v105, %v328
    %v330 = vpop.f32.mrb[0].mxu0
    %v331 = vadd.f32 %v109, %v330
    %332 = vmatprep.mubr.bf16.mxu0 0
    %333 = vmatmul.mubr.bf16.gmra.mrb[0].mxu0 %v209
    %v334 = vpop.f32.mrb[0].mxu0
    %v335 = vadd.f32 %v105, %v334
    %v336 = vpop.f32.mrb[0].mxu0
    %v337 = vadd.f32 %v109, %v336
    %v338 = vpop.f32.mrb[0].mxu0
    %v339 = vadd.f32 %v105, %v338
    %v340 = vpop.f32.mrb[0].mxu0
    %v341 = vadd.f32 %v109, %v340
    %342 = vmatprep.mubr.bf16.mxu0 0
    %343 = vmatmul.mubr.bf16.gmra.mrb[0].mxu0 %v212
    %v344 = vpop.f32.mrb[0].mxu0
    %v345 = vadd.f32 %v105, %v344
    %v346 = vpop.f32.mrb[0].mxu0
    %v347 = vadd.f32 %v109, %v346
    %v348 = vpop.f32.mrb[0].mxu0
    %v349 = vadd.f32 %v105, %v348
    %v350 = vpop.f32.mrb[0].mxu0
    %v351 = vadd.f32 %v109, %v350
    %352 = vmatprep.mubr.bf16.mxu0 0
    %353 = vmatmul.mubr.bf16.gmra.mrb[0].mxu0 %v215
    %v354 = vpop.f32.mrb[0].mxu0
    %v355 = vadd.f32 %v105, %v354
    %v356 = vpop.f32.mrb[0].mxu0
    %v357 = vadd.f32 %v109, %v356
    %v358 = vpop.f32.mrb[0].mxu0
    %v359 = vadd.f32 %v105, %v358
    %v360 = vpop.f32.mrb[0].mxu0
    %v361 = vadd.f32 %v109, %v360
    %362 = vdwg.mxu0
    %363 = vmatprep.subr.bf16.mxu0 %v185
    %364 = vmatpush1.bf16.msra.mxu0 %v184
    %365 = vmatprep.subr.bf16.mxu0 %v191
    %366 = vmatpush1.bf16.msra.mxu0 %v190
    %367 = vmatprep.subr.bf16.mxu0 0
    %368 = vmatpush1.bf16.msra.mxu0 0
    %369 = vmatprep.subr.bf16.mxu0 0
    %370 = vmatpush1.bf16.msra.mxu0 0
    %371 = vmatprep.subr.bf16.mxu0 0
    %372 = vmatpush1.bf16.msra.mxu0 0
    %373 = vmatprep.subr.bf16.mxu0 0
    %374 = vmatpush1.bf16.msra.mxu0 0
    %375 = vmatprep.subr.bf16.mxu0 0
    %376 = vmatpush1.bf16.msra.mxu0 0
    %377 = vmatprep.subr.bf16.mxu0 0
    %378 = vmatpush1.bf16.msra.mxu0 0
    %379 = vmatprep.subr.bf16.mxu0 0
    %380 = vmatpush1.bf16.msra.mxu0 0
    %381 = vmatprep.subr.bf16.mxu0 0
    %382 = vmatpush1.bf16.msra.mxu0 0
    %383 = vmatprep.subr.bf16.mxu0 0
    %384 = vmatpush1.bf16.msra.mxu0 0
    %385 = vmatprep.subr.bf16.mxu0 0
    %386 = vmatpush1.bf16.msra.mxu0 0
    %387 = vmatprep.subr.bf16.mxu0 0
    %388 = vmatpush1.bf16.msra.mxu0 0
    %389 = vmatprep.subr.bf16.mxu0 0
    %390 = vmatpush1.bf16.msra.mxu0 0
    %391 = vmatprep.subr.bf16.mxu0 0
    %392 = vmatpush1.bf16.msra.mxu0 0
    %393 = vmatprep.subr.bf16.mxu0 0
    %394 = vmatpush1.bf16.msra.mxu0 0
    %395 = vmatprep.mubr.bf16.mxu0 0
    %396 = vmatmul.mubr.bf16.gmra.mrb[0].mxu0 %v206
    %v397 = vpop.f32.mrb[0].mxu0
    %v398 = vadd.f32 %v113, %v397
    %v399 = vpop.f32.mrb[0].mxu0
    %v400 = vadd.f32 %v117, %v399
    %v401 = vpop.f32.mrb[0].mxu0
    %v402 = vadd.f32 %v113, %v401
    %v403 = vpop.f32.mrb[0].mxu0
    %v404 = vadd.f32 %v117, %v403
    %405 = vmatprep.mubr.bf16.mxu0 0
    %406 = vmatmul.mubr.bf16.gmra.mrb[0].mxu0 %v209
    %v407 = vpop.f32.mrb[0].mxu0
    %v408 = vadd.f32 %v113, %v407
    %v409 = vpop.f32.mrb[0].mxu0
    %v410 = vadd.f32 %v117, %v409
    %v411 = vpop.f32.mrb[0].mxu0
    %v412 = vadd.f32 %v113, %v411
    %v413 = vpop.f32.mrb[0].mxu0
    %v414 = vadd.f32 %v117, %v413
    %415 = vmatprep.mubr.bf16.mxu0 0
    %416 = vmatmul.mubr.bf16.gmra.mrb[0].mxu0 %v212
    %v417 = vpop.f32.mrb[0].mxu0
    %v418 = vadd.f32 %v113, %v417
    %v419 = vpop.f32.mrb[0].mxu0
    %v420 = vadd.f32 %v117, %v419
    %v421 = vpop.f32.mrb[0].mxu0
    %v422 = vadd.f32 %v113, %v421
    %v423 = vpop.f32.mrb[0].mxu0
    %v424 = vadd.f32 %v117, %v423
    %425 = vmatprep.mubr.bf16.mxu0 0
    %426 = vmatmul.mubr.bf16.gmra.mrb[0].mxu0 %v215
    %v427 = vpop.f32.mrb[0].mxu0
    %v428 = vadd.f32 %v113, %v427
    %v429 = vpop.f32.mrb[0].mxu0
    %v430 = vadd.f32 %v117, %v429
    %v431 = vpop.f32.mrb[0].mxu0
    %v432 = vadd.f32 %v113, %v431
    %v433 = vpop.f32.mrb[0].mxu0
    %v434 = vadd.f32 %v117, %v433
    %435 = vdwg.mxu0
    %436 = vst [vmem:[#allocation2] sm:$0xff] %v252
    %437 = vst [vmem:[#allocation2 + $0x8] sm:$0xff] %v254
    %438 = vst [vmem:[#allocation2 + $0x10] sm:$0xff] %v325
    %439 = vst [vmem:[#allocation2 + $0x18] sm:$0xff] %v327
    %440 = vst [vmem:[#allocation2 + $0x20] sm:$0xff] %v398
    %441 = vst [vmem:[#allocation2 + $0x28] sm:$0xff] %v400
    %442 = vst [vmem:[#allocation2 + $0x30] sm:$0xff] %v256
    %443 = vst [vmem:[#allocation2 + $0x38] sm:$0xff] %v258
    %444 = vst [vmem:[#allocation2 + $0x40] sm:$0xff] %v329
    %445 = vst [vmem:[#allocation2 + $0x48] sm:$0xff] %v331
    %446 = vst [vmem:[#allocation2 + $0x50] sm:$0xff] %v402
    %447 = vst [vmem:[#allocation2 + $0x58] sm:$0xff] %v404
    %448 = vst [vmem:[#allocation2 + $0x60] sm:$0xff] %v262
    %449 = vst [vmem:[#allocation2 + $0x68] sm:$0xff] %v264
    %450 = vst [vmem:[#allocation2 + $0x70] sm:$0xff] %v335
    %451 = vst [vmem:[#allocation2 + $0x78] sm:$0xff] %v337
    %452 = vst [vmem:[#allocation2 + $0x80] sm:$0xff] %v408
    %453 = vst [vmem:[#allocation2 + $0x88] sm:$0xff] %v410
    %454 = vst [vmem:[#allocation2 + $0x90] sm:$0xff] %v266
    %455 = vst [vmem:[#allocation2 + $0x98] sm:$0xff] %v268
    %456 = vst [vmem:[#allocation2 + $0xa0] sm:$0xff] %v339
    %457 = vst [vmem:[#allocation2 + $0xa8] sm:$0xff] %v341
    %458 = vst [vmem:[#allocation2 + $0xb0] sm:$0xff] %v412
    %459 = vst [vmem:[#allocation2 + $0xb8] sm:$0xff] %v414
    %460 = vst [vmem:[#allocation2 + $0xc0] sm:$0xff] %v272
    %461 = vst [vmem:[#allocation2 + $0xc8] sm:$0xff] %v274
    %462 = vst [vmem:[#allocation2 + $0xd0] sm:$0xff] %v345
    %463 = vst [vmem:[#allocation2 + $0xd8] sm:$0xff] %v347
    %464 = vst [vmem:[#allocation2 + $0xe0] sm:$0xff] %v418
    %465 = vst [vmem:[#allocation2 + $0xe8] sm:$0xff] %v420
    %466 = vst [vmem:[#allocation2 + $0xf0] sm:$0xff] %v276
    %467 = vst [vmem:[#allocation2 + $0xf8] sm:$0xff] %v278
    %468 = vst [vmem:[#allocation2 + $0x100] sm:$0xff] %v349
    %469 = vst [vmem:[#allocation2 + $0x108] sm:$0xff] %v351
    %470 = vst [vmem:[#allocation2 + $0x110] sm:$0xff] %v422
    %471 = vst [vmem:[#allocation2 + $0x118] sm:$0xff] %v424
    %472 = vst [vmem:[#allocation2 + $0x120] sm:$0xff] %v282
    %473 = vst [vmem:[#allocation2 + $0x128] sm:$0xff] %v284
    %474 = vst [vmem:[#allocation2 + $0x130] sm:$0xff] %v355
    %475 = vst [vmem:[#allocation2 + $0x138] sm:$0xff] %v357
    %476 = vst [vmem:[#allocation2 + $0x140] sm:$0xff] %v428
    %477 = vst [vmem:[#allocation2 + $0x148] sm:$0xff] %v430
    %478 = vst [vmem:[#allocation2 + $0x150] sm:$0xff] %v286
    %479 = vst [vmem:[#allocation2 + $0x158] sm:$0xff] %v288
    %480 = vst [vmem:[#allocation2 + $0x160] sm:$0xff] %v359
    %481 = vst [vmem:[#allocation2 + $0x168] sm:$0xff] %v361
    %482 = vst [vmem:[#allocation2 + $0x170] sm:$0xff] %v432
    %483 = vst [vmem:[#allocation2 + $0x178] sm:$0xff] %v434
    %v484 = vld [vmem:[#allocation6] sm:$0xff]
    %v485 = vld [vmem:[#allocation6 + $0x8] sm:$0xff]
    %v486 = vld [vmem:[#allocation6 + $0x10] sm:$0xff]
    %v487 = vld [vmem:[#allocation6 + $0x18] sm:$0xff]
    %v488 = vld [vmem:[#allocation6 + $0x20] sm:$0xff]
    %v489 = vld [vmem:[#allocation6 + $0x28] sm:$0xff]
    %v490 = vld [vmem:[#allocation6 + $0x30] sm:$0xff]
    %v491 = vld [vmem:[#allocation6 + $0x38] sm:$0xff]
    %v492 = vld [vmem:[#allocation6 + $0x40] sm:$0xff]
    %v493 = vld [vmem:[#allocation6 + $0x48] sm:$0xff]
    %v494 = vld [vmem:[#allocation6 + $0x50] sm:$0xff]
    %v495 = vld [vmem:[#allocation6 + $0x58] sm:$0xff]
    %v496 = vld [vmem:[#allocation6 + $0x60] sm:$0xff]
    %v497 = vld [vmem:[#allocation6 + $0x68] sm:$0xff]
    %v498 = vld [vmem:[#allocation6 + $0x70] sm:$0xff]
    %v499 = vld [vmem:[#allocation6 + $0x78] sm:$0xff]
    %v500 = vld [vmem:[#allocation6 + $0x80] sm:$0xff]
    %v501 = vld [vmem:[#allocation6 + $0x88] sm:$0xff]
    %v502 = vld [vmem:[#allocation6 + $0x90] sm:$0xff]
    %v503 = vld [vmem:[#allocation6 + $0x98] sm:$0xff]
    %v504 = vld [vmem:[#allocation6 + $0xa0] sm:$0xff]
    %v505 = vld [vmem:[#allocation6 + $0xa8] sm:$0xff]
    %v506 = vld [vmem:[#allocation6 + $0xb0] sm:$0xff]
    %v507 = vld [vmem:[#allocation6 + $0xb8] sm:$0xff]
    %v508 = vld [vmem:[#allocation6 + $0xc0] sm:$0xff]
    %v509 = vld [vmem:[#allocation6 + $0xc8] sm:$0xff]
    %v510 = vld [vmem:[#allocation6 + $0xd0] sm:$0xff]
    %v511 = vld [vmem:[#allocation6 + $0xd8] sm:$0xff]
    %v512 = vld [vmem:[#allocation6 + $0xe0] sm:$0xff]
    %v513 = vld [vmem:[#allocation6 + $0xe8] sm:$0xff]
    %v514 = vld [vmem:[#allocation6 + $0xf0] sm:$0xff]
    %v515 = vld [vmem:[#allocation6 + $0xf8] sm:$0xff]
    %v516 = vld [vmem:[#allocation6 + $0x100] sm:$0xff]
    %v517 = vld [vmem:[#allocation6 + $0x108] sm:$0xff]
    %v518 = vld [vmem:[#allocation6 + $0x110] sm:$0xff]
    %v519 = vld [vmem:[#allocation6 + $0x118] sm:$0xff]
    %v520 = vld [vmem:[#allocation6 + $0x120] sm:$0xff]
    %v521 = vld [vmem:[#allocation6 + $0x128] sm:$0xff]
    %v522 = vld [vmem:[#allocation6 + $0x130] sm:$0xff]
    %v523 = vld [vmem:[#allocation6 + $0x138] sm:$0xff]
    %v524 = vld [vmem:[#allocation6 + $0x140] sm:$0xff]
    %v525 = vld [vmem:[#allocation6 + $0x148] sm:$0xff]
    %v526 = vld [vmem:[#allocation6 + $0x150] sm:$0xff]
    %v527 = vld [vmem:[#allocation6 + $0x158] sm:$0xff]
    %v528 = vld [vmem:[#allocation6 + $0x160] sm:$0xff]
    %v529 = vld [vmem:[#allocation6 + $0x168] sm:$0xff]
    %v530 = vld [vmem:[#allocation6 + $0x170] sm:$0xff]
    %v531 = vld [vmem:[#allocation6 + $0x178] sm:$0xff]
    %v532 = vld [vmem:[#allocation6 + $0x180] sm:$0xff]
    %v533 = vld [vmem:[#allocation6 + $0x188] sm:$0xff]
    %v534 = vld [vmem:[#allocation6 + $0x190] sm:$0xff]
    %v535 = vld [vmem:[#allocation6 + $0x198] sm:$0xff]
    %v536 = vld [vmem:[#allocation6 + $0x1a0] sm:$0xff]
    %v537 = vld [vmem:[#allocation6 + $0x1a8] sm:$0xff]
    %v538 = vld [vmem:[#allocation6 + $0x1b0] sm:$0xff]
    %v539 = vld [vmem:[#allocation6 + $0x1b8] sm:$0xff]
    %v540 = vld [vmem:[#allocation6 + $0x1c0] sm:$0xff]
    %v541 = vld [vmem:[#allocation6 + $0x1c8] sm:$0xff]
    %v542 = vld [vmem:[#allocation6 + $0x1d0] sm:$0xff]
    %v543 = vld [vmem:[#allocation6 + $0x1d8] sm:$0xff]
    %v544 = vld [vmem:[#allocation6 + $0x1e0] sm:$0xff]
    %v545 = vld [vmem:[#allocation6 + $0x1e8] sm:$0xff]
    %v546 = vld [vmem:[#allocation6 + $0x1f0] sm:$0xff]
    %v547 = vld [vmem:[#allocation6 + $0x1f8] sm:$0xff]
    %v548 = vld [vmem:[#allocation6 + $0x200] sm:$0xff]
    %v549 = vld [vmem:[#allocation6 + $0x208] sm:$0xff]
    %v550 = vld [vmem:[#allocation6 + $0x210] sm:$0xff]
    %v551 = vld [vmem:[#allocation6 + $0x218] sm:$0xff]
    %v552 = vld [vmem:[#allocation6 + $0x220] sm:$0xff]
    %v553 = vld [vmem:[#allocation6 + $0x228] sm:$0xff]
    %v554 = vld [vmem:[#allocation6 + $0x230] sm:$0xff]
    %v555 = vld [vmem:[#allocation6 + $0x238] sm:$0xff]
    %v556 = vld [vmem:[#allocation6 + $0x240] sm:$0xff]
    %v557 = vld [vmem:[#allocation6 + $0x248] sm:$0xff]
    %v558 = vld [vmem:[#allocation6 + $0x250] sm:$0xff]
    %v559 = vld [vmem:[#allocation6 + $0x258] sm:$0xff]
    %v560 = vld [vmem:[#allocation6 + $0x260] sm:$0xff]
    %v561 = vld [vmem:[#allocation6 + $0x268] sm:$0xff]
    %v562 = vld [vmem:[#allocation6 + $0x270] sm:$0xff]
    %v563 = vld [vmem:[#allocation6 + $0x278] sm:$0xff]
    %v564 = vld [vmem:[#allocation6 + $0x280] sm:$0xff]
    %v565 = vld [vmem:[#allocation6 + $0x288] sm:$0xff]
    %v566 = vld [vmem:[#allocation6 + $0x290] sm:$0xff]
    %v567 = vld [vmem:[#allocation6 + $0x298] sm:$0xff]
    %v568 = vld [vmem:[#allocation6 + $0x2a0] sm:$0xff]
    %v569 = vld [vmem:[#allocation6 + $0x2a8] sm:$0xff]
    %v570 = vld [vmem:[#allocation6 + $0x2b0] sm:$0xff]
    %v571 = vld [vmem:[#allocation6 + $0x2b8] sm:$0xff]
    %v572 = vld [vmem:[#allocation6 + $0x2c0] sm:$0xff]
    %v573 = vld [vmem:[#allocation6 + $0x2c8] sm:$0xff]
    %v574 = vld [vmem:[#allocation6 + $0x2d0] sm:$0xff]
    %v575 = vld [vmem:[#allocation6 + $0x2d8] sm:$0xff]
    %v576 = vld [vmem:[#allocation6 + $0x2e0] sm:$0xff]
    %v577 = vld [vmem:[#allocation6 + $0x2e8] sm:$0xff]
    %v578 = vld [vmem:[#allocation6 + $0x2f0] sm:$0xff]
    %v579 = vld [vmem:[#allocation6 + $0x2f8] sm:$0xff]
    %v580 = vld [vmem:[%s4] sm:$0x1]
    %v582 = vlaneseq
    %v583 = vshrl.u32 %v582, 7
    %v584 = vsub.s32 0, %v583
    %v585 = vrot.slane %v580, %v584
    %v587 = vld [vmem:[%s4 + $0x1] sm:$0x1]
    %v589 = vlaneseq
    %v590 = vshrl.u32 %v589, 7
    %v591 = vsub.s32 0, %v590
    %v592 = vrot.slane %v587, %v591
    %v690 = vunpack.c.l.b16 %v484
    %v691 = vunpack.c.h.b16 %v484
    %v692 = vunpack.c.l.b16 %v485
    %v693 = vunpack.c.h.b16 %v485
    %v694 = vunpack.c.l.b16 %v486
    %v695 = vunpack.c.h.b16 %v486
    %v696 = vunpack.c.l.b16 %v487
    %v697 = vunpack.c.h.b16 %v487
    %v698 = vunpack.c.l.b16 %v488
    %v699 = vunpack.c.h.b16 %v488
    %v700 = vunpack.c.l.b16 %v489
    %v701 = vunpack.c.h.b16 %v489
    %v702 = vunpack.c.l.b16 %v490
    %v703 = vunpack.c.h.b16 %v490
    %v704 = vunpack.c.l.b16 %v491
    %v705 = vunpack.c.h.b16 %v491
    %v706 = vunpack.c.l.b16 %v492
    %v707 = vunpack.c.h.b16 %v492
    %v708 = vunpack.c.l.b16 %v493
    %v709 = vunpack.c.h.b16 %v493
    %v710 = vunpack.c.l.b16 %v494
    %v711 = vunpack.c.h.b16 %v494
    %v712 = vunpack.c.l.b16 %v495
    %v713 = vunpack.c.h.b16 %v495
    %v714 = vunpack.c.l.b16 %v496
    %v715 = vunpack.c.h.b16 %v496
    %v716 = vunpack.c.l.b16 %v497
    %v717 = vunpack.c.h.b16 %v497
    %v718 = vunpack.c.l.b16 %v498
    %v719 = vunpack.c.h.b16 %v498
    %v720 = vunpack.c.l.b16 %v499
    %v721 = vunpack.c.h.b16 %v499
    %v722 = vunpack.c.l.b16 %v500
    %v723 = vunpack.c.h.b16 %v500
    %v724 = vunpack.c.l.b16 %v501
    %v725 = vunpack.c.h.b16 %v501
    %v726 = vunpack.c.l.b16 %v502
    %v727 = vunpack.c.h.b16 %v502
    %v728 = vunpack.c.l.b16 %v503
    %v729 = vunpack.c.h.b16 %v503
    %v730 = vunpack.c.l.b16 %v504
    %v731 = vunpack.c.h.b16 %v504
    %v732 = vunpack.c.l.b16 %v505
    %v733 = vunpack.c.h.b16 %v505
    %v734 = vunpack.c.l.b16 %v506
    %v735 = vunpack.c.h.b16 %v506
    %v736 = vunpack.c.l.b16 %v507
    %v737 = vunpack.c.h.b16 %v507
    %v738 = vunpack.c.l.b16 %v508
    %v739 = vunpack.c.h.b16 %v508
    %v740 = vunpack.c.l.b16 %v509
    %v741 = vunpack.c.h.b16 %v509
    %v742 = vunpack.c.l.b16 %v510
    %v743 = vunpack.c.h.b16 %v510
    %v744 = vunpack.c.l.b16 %v511
    %v745 = vunpack.c.h.b16 %v511
    %v746 = vunpack.c.l.b16 %v512
    %v747 = vunpack.c.h.b16 %v512
    %v748 = vunpack.c.l.b16 %v513
    %v749 = vunpack.c.h.b16 %v513
    %v750 = vunpack.c.l.b16 %v514
    %v751 = vunpack.c.h.b16 %v514
    %v752 = vunpack.c.l.b16 %v515
    %v753 = vunpack.c.h.b16 %v515
    %v754 = vunpack.c.l.b16 %v516
    %v755 = vunpack.c.h.b16 %v516
    %v756 = vunpack.c.l.b16 %v517
    %v757 = vunpack.c.h.b16 %v517
    %v758 = vunpack.c.l.b16 %v518
    %v759 = vunpack.c.h.b16 %v518
    %v760 = vunpack.c.l.b16 %v519
    %v761 = vunpack.c.h.b16 %v519
    %v762 = vunpack.c.l.b16 %v520
    %v763 = vunpack.c.h.b16 %v520
    %v764 = vunpack.c.l.b16 %v521
    %v765 = vunpack.c.h.b16 %v521
    %v766 = vunpack.c.l.b16 %v522
    %v767 = vunpack.c.h.b16 %v522
    %v768 = vunpack.c.l.b16 %v523
    %v769 = vunpack.c.h.b16 %v523
    %v770 = vunpack.c.l.b16 %v524
    %v771 = vunpack.c.h.b16 %v524
    %v772 = vunpack.c.l.b16 %v525
    %v773 = vunpack.c.h.b16 %v525
    %v774 = vunpack.c.l.b16 %v526
    %v775 = vunpack.c.h.b16 %v526
    %v776 = vunpack.c.l.b16 %v527
    %v777 = vunpack.c.h.b16 %v527
    %v778 = vunpack.c.l.b16 %v528
    %v779 = vunpack.c.h.b16 %v528
    %v780 = vunpack.c.l.b16 %v529
    %v781 = vunpack.c.h.b16 %v529
    %v782 = vunpack.c.l.b16 %v530
    %v783 = vunpack.c.h.b16 %v530
    %v784 = vunpack.c.l.b16 %v531
    %v785 = vunpack.c.h.b16 %v531
    %v786 = vunpack.c.l.b16 %v532
    %v787 = vunpack.c.h.b16 %v532
    %v788 = vunpack.c.l.b16 %v533
    %v789 = vunpack.c.h.b16 %v533
    %v790 = vunpack.c.l.b16 %v534
    %v791 = vunpack.c.h.b16 %v534
    %v792 = vunpack.c.l.b16 %v535
    %v793 = vunpack.c.h.b16 %v535
    %v794 = vunpack.c.l.b16 %v536
    %v795 = vunpack.c.h.b16 %v536
    %v796 = vunpack.c.l.b16 %v537
    %v797 = vunpack.c.h.b16 %v537
    %v798 = vunpack.c.l.b16 %v538
    %v799 = vunpack.c.h.b16 %v538
    %v800 = vunpack.c.l.b16 %v539
    %v801 = vunpack.c.h.b16 %v539
    %v802 = vunpack.c.l.b16 %v540
    %v803 = vunpack.c.h.b16 %v540
    %v804 = vunpack.c.l.b16 %v541
    %v805 = vunpack.c.h.b16 %v541
    %v806 = vunpack.c.l.b16 %v542
    %v807 = vunpack.c.h.b16 %v542
    %v808 = vunpack.c.l.b16 %v543
    %v809 = vunpack.c.h.b16 %v543
    %v810 = vunpack.c.l.b16 %v544
    %v811 = vunpack.c.h.b16 %v544
    %v812 = vunpack.c.l.b16 %v545
    %v813 = vunpack.c.h.b16 %v545
    %v814 = vunpack.c.l.b16 %v546
    %v815 = vunpack.c.h.b16 %v546
    %v816 = vunpack.c.l.b16 %v547
    %v817 = vunpack.c.h.b16 %v547
    %v818 = vunpack.c.l.b16 %v548
    %v819 = vunpack.c.h.b16 %v548
    %v820 = vunpack.c.l.b16 %v549
    %v821 = vunpack.c.h.b16 %v549
    %v822 = vunpack.c.l.b16 %v550
    %v823 = vunpack.c.h.b16 %v550
    %v824 = vunpack.c.l.b16 %v551
    %v825 = vunpack.c.h.b16 %v551
    %v826 = vunpack.c.l.b16 %v552
    %v827 = vunpack.c.h.b16 %v552
    %v828 = vunpack.c.l.b16 %v553
    %v829 = vunpack.c.h.b16 %v553
    %v830 = vunpack.c.l.b16 %v554
    %v831 = vunpack.c.h.b16 %v554
    %v832 = vunpack.c.l.b16 %v555
    %v833 = vunpack.c.h.b16 %v555
    %v834 = vunpack.c.l.b16 %v556
    %v835 = vunpack.c.h.b16 %v556
    %v836 = vunpack.c.l.b16 %v557
    %v837 = vunpack.c.h.b16 %v557
    %v838 = vunpack.c.l.b16 %v558
    %v839 = vunpack.c.h.b16 %v558
    %v840 = vunpack.c.l.b16 %v559
    %v841 = vunpack.c.h.b16 %v559
    %v842 = vunpack.c.l.b16 %v560
    %v843 = vunpack.c.h.b16 %v560
    %v844 = vunpack.c.l.b16 %v561
    %v845 = vunpack.c.h.b16 %v561
    %v846 = vunpack.c.l.b16 %v562
    %v847 = vunpack.c.h.b16 %v562
    %v848 = vunpack.c.l.b16 %v563
    %v849 = vunpack.c.h.b16 %v563
    %v850 = vunpack.c.l.b16 %v564
    %v851 = vunpack.c.h.b16 %v564
    %v852 = vunpack.c.l.b16 %v565
    %v853 = vunpack.c.h.b16 %v565
    %v854 = vunpack.c.l.b16 %v566
    %v855 = vunpack.c.h.b16 %v566
    %v856 = vunpack.c.l.b16 %v567
    %v857 = vunpack.c.h.b16 %v567
    %v858 = vunpack.c.l.b16 %v568
    %v859 = vunpack.c.h.b16 %v568
    %v860 = vunpack.c.l.b16 %v569
    %v861 = vunpack.c.h.b16 %v569
    %v862 = vunpack.c.l.b16 %v570
    %v863 = vunpack.c.h.b16 %v570
    %v864 = vunpack.c.l.b16 %v571
    %v865 = vunpack.c.h.b16 %v571
    %v866 = vunpack.c.l.b16 %v572
    %v867 = vunpack.c.h.b16 %v572
    %v868 = vunpack.c.l.b16 %v573
    %v869 = vunpack.c.h.b16 %v573
    %v870 = vunpack.c.l.b16 %v574
    %v871 = vunpack.c.h.b16 %v574
    %v872 = vunpack.c.l.b16 %v575
    %v873 = vunpack.c.h.b16 %v575
    %v874 = vunpack.c.l.b16 %v576
    %v875 = vunpack.c.h.b16 %v576
    %v876 = vunpack.c.l.b16 %v577
    %v877 = vunpack.c.h.b16 %v577
    %v878 = vunpack.c.l.b16 %v578
    %v879 = vunpack.c.h.b16 %v578
    %v880 = vunpack.c.l.b16 %v579
    %v881 = vunpack.c.h.b16 %v579
    %v882 = vpack.c.b16 %v696, %v690
    %v883 = vpack.c.b16 %v697, %v691
    %v884 = vpack.c.b16 %v698, %v692
    %v885 = vpack.c.b16 %v699, %v693
    %v886 = vpack.c.b16 %v700, %v694
    %v887 = vpack.c.b16 %v701, %v695
    %v888 = vpack.c.b16 %v708, %v702
    %v889 = vpack.c.b16 %v709, %v703
    %v890 = vpack.c.b16 %v710, %v704
    %v891 = vpack.c.b16 %v711, %v705
    %v892 = vpack.c.b16 %v712, %v706
    %v893 = vpack.c.b16 %v713, %v707
    %v894 = vpack.c.b16 %v720, %v714
    %v895 = vpack.c.b16 %v721, %v715
    %v896 = vpack.c.b16 %v722, %v716
    %v897 = vpack.c.b16 %v723, %v717
    %v898 = vpack.c.b16 %v724, %v718
    %v899 = vpack.c.b16 %v725, %v719
    %v900 = vpack.c.b16 %v732, %v726
    %v901 = vpack.c.b16 %v733, %v727
    %v902 = vpack.c.b16 %v734, %v728
    %v903 = vpack.c.b16 %v735, %v729
    %v904 = vpack.c.b16 %v736, %v730
    %v905 = vpack.c.b16 %v737, %v731
    %v906 = vpack.c.b16 %v744, %v738
    %v907 = vpack.c.b16 %v745, %v739
    %v908 = vpack.c.b16 %v746, %v740
    %v909 = vpack.c.b16 %v747, %v741
    %v910 = vpack.c.b16 %v748, %v742
    %v911 = vpack.c.b16 %v749, %v743
    %v912 = vpack.c.b16 %v756, %v750
    %v913 = vpack.c.b16 %v757, %v751
    %v914 = vpack.c.b16 %v758, %v752
    %v915 = vpack.c.b16 %v759, %v753
    %v916 = vpack.c.b16 %v760, %v754
    %v917 = vpack.c.b16 %v761, %v755
    %v918 = vpack.c.b16 %v768, %v762
    %v919 = vpack.c.b16 %v769, %v763
    %v920 = vpack.c.b16 %v770, %v764
    %v921 = vpack.c.b16 %v771, %v765
    %v922 = vpack.c.b16 %v772, %v766
    %v923 = vpack.c.b16 %v773, %v767
    %v924 = vpack.c.b16 %v780, %v774
    %v925 = vpack.c.b16 %v781, %v775
    %v926 = vpack.c.b16 %v782, %v776
    %v927 = vpack.c.b16 %v783, %v777
    %v928 = vpack.c.b16 %v784, %v778
    %v929 = vpack.c.b16 %v785, %v779
    %v930 = vpack.c.b16 %v792, %v786
    %v931 = vpack.c.b16 %v793, %v787
    %v932 = vpack.c.b16 %v794, %v788
    %v933 = vpack.c.b16 %v795, %v789
    %v934 = vpack.c.b16 %v796, %v790
    %v935 = vpack.c.b16 %v797, %v791
    %v936 = vpack.c.b16 %v804, %v798
    %v937 = vpack.c.b16 %v805, %v799
    %v938 = vpack.c.b16 %v806, %v800
    %v939 = vpack.c.b16 %v807, %v801
    %v940 = vpack.c.b16 %v808, %v802
    %v941 = vpack.c.b16 %v809, %v803
    %v942 = vpack.c.b16 %v816, %v810
    %v943 = vpack.c.b16 %v817, %v811
    %v944 = vpack.c.b16 %v818, %v812
    %v945 = vpack.c.b16 %v819, %v813
    %v946 = vpack.c.b16 %v820, %v814
    %v947 = vpack.c.b16 %v821, %v815
    %v948 = vpack.c.b16 %v828, %v822
    %v949 = vpack.c.b16 %v829, %v823
    %v950 = vpack.c.b16 %v830, %v824
    %v951 = vpack.c.b16 %v831, %v825
    %v952 = vpack.c.b16 %v832, %v826
    %v953 = vpack.c.b16 %v833, %v827
    %v954 = vpack.c.b16 %v840, %v834
    %v955 = vpack.c.b16 %v841, %v835
    %v956 = vpack.c.b16 %v842, %v836
    %v957 = vpack.c.b16 %v843, %v837
    %v958 = vpack.c.b16 %v844, %v838
    %v959 = vpack.c.b16 %v845, %v839
    %v960 = vpack.c.b16 %v852, %v846
    %v961 = vpack.c.b16 %v853, %v847
    %v962 = vpack.c.b16 %v854, %v848
    %v963 = vpack.c.b16 %v855, %v849
    %v964 = vpack.c.b16 %v856, %v850
    %v965 = vpack.c.b16 %v857, %v851
    %v966 = vpack.c.b16 %v864, %v858
    %v967 = vpack.c.b16 %v865, %v859
    %v968 = vpack.c.b16 %v866, %v860
    %v969 = vpack.c.b16 %v867, %v861
    %v970 = vpack.c.b16 %v868, %v862
    %v971 = vpack.c.b16 %v869, %v863
    %v972 = vpack.c.b16 %v876, %v870
    %v973 = vpack.c.b16 %v877, %v871
    %v974 = vpack.c.b16 %v878, %v872
    %v975 = vpack.c.b16 %v879, %v873
    %v976 = vpack.c.b16 %v880, %v874
    %v977 = vpack.c.b16 %v881, %v875
    %1074 = vmatprep.subr.bf16.mxu0 %v883
    %1075 = vmatpush1.bf16.msra.mxu0 %v882
    %1076 = vmatprep.subr.bf16.mxu0 %v889
    %1077 = vmatpush1.bf16.msra.mxu0 %v888
    %1078 = vmatprep.subr.bf16.mxu0 %v895
    %1079 = vmatpush1.bf16.msra.mxu0 %v894
    %1080 = vmatprep.subr.bf16.mxu0 %v901
    %1081 = vmatpush1.bf16.msra.mxu0 %v900
    %1082 = vmatprep.subr.bf16.mxu0 %v907
    %1083 = vmatpush1.bf16.msra.mxu0 %v906
    %1084 = vmatprep.subr.bf16.mxu0 %v913
    %1085 = vmatpush1.bf16.msra.mxu0 %v912
    %1086 = vmatprep.subr.bf16.mxu0 %v919
    %1087 = vmatpush1.bf16.msra.mxu0 %v918
    %1088 = vmatprep.subr.bf16.mxu0 %v925
    %1089 = vmatpush1.bf16.msra.mxu0 %v924
    %1090 = vmatprep.subr.bf16.mxu0 %v931
    %1091 = vmatpush1.bf16.msra.mxu0 %v930
    %1092 = vmatprep.subr.bf16.mxu0 %v937
    %1093 = vmatpush1.bf16.msra.mxu0 %v936
    %1094 = vmatprep.subr.bf16.mxu0 %v943
    %1095 = vmatpush1.bf16.msra.mxu0 %v942
    %1096 = vmatprep.subr.bf16.mxu0 %v949
    %1097 = vmatpush1.bf16.msra.mxu0 %v948
    %1098 = vmatprep.subr.bf16.mxu0 %v955
    %1099 = vmatpush1.bf16.msra.mxu0 %v954
    %1100 = vmatprep.subr.bf16.mxu0 %v961
    %1101 = vmatpush1.bf16.msra.mxu0 %v960
    %1102 = vmatprep.subr.bf16.mxu0 %v967
    %1103 = vmatpush1.bf16.msra.mxu0 %v966
    %1104 = vmatprep.subr.bf16.mxu0 %v973
    %1105 = vmatpush1.bf16.msra.mxu0 %v972
    %1106 = vmatprep.mubr.bf16.mxu0 0
    %1107 = vmatmul.mubr.bf16.gmra.mrb[0].mxu0 0
    %v1108 = vpop.f32.mrb[0].mxu0
    %v1109 = vadd.f32 0.0, %v1108
    %v1110 = vpop.f32.mrb[0].mxu0
    %v1111 = vadd.f32 0.0, %v1110
    %v1112 = vpop.f32.mrb[0].mxu0
    %v1113 = vpop.f32.mrb[0].mxu0
    %1114 = vdwg.mxu0
    %1115 = vmatprep.subr.bf16.mxu0 %v885
    %1116 = vmatpush1.bf16.msra.mxu0 %v884
    %1117 = vmatprep.subr.bf16.mxu0 %v891
    %1118 = vmatpush1.bf16.msra.mxu0 %v890
    %1119 = vmatprep.subr.bf16.mxu0 %v897
    %1120 = vmatpush1.bf16.msra.mxu0 %v896
    %1121 = vmatprep.subr.bf16.mxu0 %v903
    %1122 = vmatpush1.bf16.msra.mxu0 %v902
    %1123 = vmatprep.subr.bf16.mxu0 %v909
    %1124 = vmatpush1.bf16.msra.mxu0 %v908
    %1125 = vmatprep.subr.bf16.mxu0 %v915
    %1126 = vmatpush1.bf16.msra.mxu0 %v914
    %1127 = vmatprep.subr.bf16.mxu0 %v921
    %1128 = vmatpush1.bf16.msra.mxu0 %v920
    %1129 = vmatprep.subr.bf16.mxu0 %v927
    %1130 = vmatpush1.bf16.msra.mxu0 %v926
    %1131 = vmatprep.subr.bf16.mxu0 %v933
    %1132 = vmatpush1.bf16.msra.mxu0 %v932
    %1133 = vmatprep.subr.bf16.mxu0 %v939
    %1134 = vmatpush1.bf16.msra.mxu0 %v938
    %1135 = vmatprep.subr.bf16.mxu0 %v945
    %1136 = vmatpush1.bf16.msra.mxu0 %v944
    %1137 = vmatprep.subr.bf16.mxu0 %v951
    %1138 = vmatpush1.bf16.msra.mxu0 %v950
    %1139 = vmatprep.subr.bf16.mxu0 %v957
    %1140 = vmatpush1.bf16.msra.mxu0 %v956
    %1141 = vmatprep.subr.bf16.mxu0 %v963
    %1142 = vmatpush1.bf16.msra.mxu0 %v962
    %1143 = vmatprep.subr.bf16.mxu0 %v969
    %1144 = vmatpush1.bf16.msra.mxu0 %v968
    %1145 = vmatprep.subr.bf16.mxu0 %v975
    %1146 = vmatpush1.bf16.msra.mxu0 %v974
    %1147 = vmatprep.mubr.bf16.mxu0 0
    %1148 = vmatmul.mubr.bf16.gmra.mrb[0].mxu0 0
    %v1149 = vpop.f32.mrb[0].mxu0
    %v1150 = vadd.f32 0.0, %v1149
    %v1151 = vpop.f32.mrb[0].mxu0
    %v1152 = vadd.f32 0.0, %v1151
    %v1153 = vpop.f32.mrb[0].mxu0
    %v1154 = vpop.f32.mrb[0].mxu0
    %1155 = vdwg.mxu0
    %1156 = vmatprep.subr.bf16.mxu0 %v887
    %1157 = vmatpush1.bf16.msra.mxu0 %v886
    %1158 = vmatprep.subr.bf16.mxu0 %v893
    %1159 = vmatpush1.bf16.msra.mxu0 %v892
    %1160 = vmatprep.subr.bf16.mxu0 %v899
    %1161 = vmatpush1.bf16.msra.mxu0 %v898
    %1162 = vmatprep.subr.bf16.mxu0 %v905
    %1163 = vmatpush1.bf16.msra.mxu0 %v904
    %1164 = vmatprep.subr.bf16.mxu0 %v911
    %1165 = vmatpush1.bf16.msra.mxu0 %v910
    %1166 = vmatprep.subr.bf16.mxu0 %v917
    %1167 = vmatpush1.bf16.msra.mxu0 %v916
    %1168 = vmatprep.subr.bf16.mxu0 %v923
    %1169 = vmatpush1.bf16.msra.mxu0 %v922
    %1170 = vmatprep.subr.bf16.mxu0 %v929
    %1171 = vmatpush1.bf16.msra.mxu0 %v928
    %1172 = vmatprep.subr.bf16.mxu0 %v935
    %1173 = vmatpush1.bf16.msra.mxu0 %v934
    %1174 = vmatprep.subr.bf16.mxu0 %v941
    %1175 = vmatpush1.bf16.msra.mxu0 %v940
    %1176 = vmatprep.subr.bf16.mxu0 %v947
    %1177 = vmatpush1.bf16.msra.mxu0 %v946
    %1178 = vmatprep.subr.bf16.mxu0 %v953
    %1179 = vmatpush1.bf16.msra.mxu0 %v952
    %1180 = vmatprep.subr.bf16.mxu0 %v959
    %1181 = vmatpush1.bf16.msra.mxu0 %v958
    %1182 = vmatprep.subr.bf16.mxu0 %v965
    %1183 = vmatpush1.bf16.msra.mxu0 %v964
    %1184 = vmatprep.subr.bf16.mxu0 %v971
    %1185 = vmatpush1.bf16.msra.mxu0 %v970
    %1186 = vmatprep.subr.bf16.mxu0 %v977
    %1187 = vmatpush1.bf16.msra.mxu0 %v976
    %1188 = vmatprep.mubr.bf16.mxu0 0
    %1189 = vmatmul.mubr.bf16.gmra.mrb[0].mxu0 0
    %v1190 = vpop.f32.mrb[0].mxu0
    %v1191 = vadd.f32 0.0, %v1190
    %v1192 = vpop.f32.mrb[0].mxu0
    %v1193 = vadd.f32 0.0, %v1192
    %v1194 = vpop.f32.mrb[0].mxu0
    %v1195 = vpop.f32.mrb[0].mxu0
    %1196 = vdwg.mxu0
    %v1197 = vld [vmem:[#allocation2] sm:$0xff]
    %v1198 = vld [vmem:[#allocation2 + $0x8] sm:$0xff]
    %v1199 = vld [vmem:[#allocation2 + $0x10] sm:$0xff]
    %v1200 = vadd.f32 %v1197, %v1109
    %v1201 = vxor.u32 %v1200, 2147483648
    %v1202 = vmul.f32 %v1201, 1.442695
    %v1203 = vpow.pop %v1202
    %v1204 = vadd.f32 %v1203, 1.0
    %v1205 = vrcp.pop %v1204
    %v1206 = vmul.f32 1.0, %v1205
    %v1207 = vadd.f32 %v1198, %v1111
    %v1208 = vxor.u32 %v1207, 2147483648
    %v1209 = vmul.f32 %v1208, 1.442695
    %v1210 = vpow.pop %v1209
    %v1211 = vadd.f32 %v1210, 1.0
    %v1212 = vrcp.pop %v1211
    %v1213 = vmul.f32 1.0, %v1212
    %v1214 = vadd.f32 %v1150, %v585
    %v1215 = vmul.f32 %v1206, %v1214
    %v1216 = vadd.f32 %v1199, %v1215
    %v1217 = vtanh.pop %v1216
    %v1218 = vsub.f32 1.0, %v1213
    %v1219 = vmul.f32 %v1218, %v1217
    %v1220 = vmul.f32 %v1213, 0.0
    %v1221 = vadd.f32 %v1219, %v1220
    %v1222 = vld [vmem:[#allocation2 + $0x168] sm:$0xff]
    %v1223 = vld [vmem:[#allocation2 + $0x170] sm:$0xff]
    %v1224 = vld [vmem:[#allocation2 + $0x178] sm:$0xff]
    %v1225 = vadd.f32 %v1222, %v1152
    %v1226 = vxor.u32 %v1225, 2147483648
    %v1227 = vmul.f32 %v1226, 1.442695
    %v1228 = vpow.pop %v1227
    %v1229 = vadd.f32 %v1228, 1.0
    %v1230 = vrcp.pop %v1229
    %v1231 = vmul.f32 1.0, %v1230
    %v1232 = vadd.f32 %v1223, %v1191
    %v1233 = vxor.u32 %v1232, 2147483648
    %v1234 = vmul.f32 %v1233, 1.442695
    %v1235 = vpow.pop %v1234
    %v1236 = vadd.f32 %v1235, 1.0
    %v1237 = vrcp.pop %v1236
    %v1238 = vmul.f32 1.0, %v1237
    %v1239 = vadd.f32 %v1193, %v592
    %v1240 = vmul.f32 %v1231, %v1239
    %v1241 = vadd.f32 %v1224, %v1240
    %v1242 = vtanh.pop %v1241
    %v1243 = vsub.f32 1.0, %v1238
    %v1244 = vmul.f32 %v1243, %v1242
    %v1245 = vmul.f32 %v1238, 0.0
    %v1246 = vadd.f32 %v1244, %v1245
    %1247 = vst [vmem:[#allocation9] sm:$0xff] %v1221
    %1248 = vst [vmem:[#allocation9 + $0x78] sm:$0xff] %v1246
    %v1249 = vpack.c.bf16 %v1221, %v1221
    %v1250 = vpack.c.bf16 %v1246, %v1246
    %1251 = vmatprep.subr.bf16.mxu0 %v883
    %1252 = vmatpush1.bf16.msra.mxu0 %v882
    %1253 = vmatprep.subr.bf16.mxu0 %v889
    %1254 = vmatpush1.bf16.msra.mxu0 %v888
    %1255 = vmatprep.subr.bf16.mxu0 %v895
    %1256 = vmatpush1.bf16.msra.mxu0 %v894
    %1257 = vmatprep.subr.bf16.mxu0 %v901
    %1258 = vmatpush1.bf16.msra.mxu0 %v900
    %1259 = vmatprep.subr.bf16.mxu0 %v907
    %1260 = vmatpush1.bf16.msra.mxu0 %v906
    %1261 = vmatprep.subr.bf16.mxu0 %v913
    %1262 = vmatpush1.bf16.msra.mxu0 %v912
    %1263 = vmatprep.subr.bf16.mxu0 %v919
    %1264 = vmatpush1.bf16.msra.mxu0 %v918
    %1265 = vmatprep.subr.bf16.mxu0 %v925
    %1266 = vmatpush1.bf16.msra.mxu0 %v924
    %1267 = vmatprep.subr.bf16.mxu0 %v931
    %1268 = vmatpush1.bf16.msra.mxu0 %v930
    %1269 = vmatprep.subr.bf16.mxu0 %v937
    %1270 = vmatpush1.bf16.msra.mxu0 %v936
    %1271 = vmatprep.subr.bf16.mxu0 %v943
    %1272 = vmatpush1.bf16.msra.mxu0 %v942
    %1273 = vmatprep.subr.bf16.mxu0 %v949
    %1274 = vmatpush1.bf16.msra.mxu0 %v948
    %1275 = vmatprep.subr.bf16.mxu0 %v955
    %1276 = vmatpush1.bf16.msra.mxu0 %v954
    %1277 = vmatprep.subr.bf16.mxu0 %v961
    %1278 = vmatpush1.bf16.msra.mxu0 %v960
    %1279 = vmatprep.subr.bf16.mxu0 %v967
    %1280 = vmatpush1.bf16.msra.mxu0 %v966
    %1281 = vmatprep.subr.bf16.mxu0 %v973
    %1282 = vmatpush1.bf16.msra.mxu0 %v972
    %1283 = vmatprep.mubr.bf16.mxu0 %v1250
    %1284 = vmatmul.mubr.bf16.gmra.mrb[0].mxu0 %v1249
    %v1285 = vpop.f32.mrb[0].mxu0
    %v1286 = vadd.f32 0.0, %v1285
    %v1287 = vpop.f32.mrb[0].mxu0
    %v1288 = vadd.f32 0.0, %v1287
    %v1289 = vpop.f32.mrb[0].mxu0
    %v1290 = vpop.f32.mrb[0].mxu0
    %1291 = vdwg.mxu0
    %1292 = vmatprep.subr.bf16.mxu0 %v885
    %1293 = vmatpush1.bf16.msra.mxu0 %v884
    %1294 = vmatprep.subr.bf16.mxu0 %v891
    %1295 = vmatpush1.bf16.msra.mxu0 %v890
    %1296 = vmatprep.subr.bf16.mxu0 %v897
    %1297 = vmatpush1.bf16.msra.mxu0 %v896
    %1298 = vmatprep.subr.bf16.mxu0 %v903
    %1299 = vmatpush1.bf16.msra.mxu0 %v902
    %1300 = vmatprep.subr.bf16.mxu0 %v909
    %1301 = vmatpush1.bf16.msra.mxu0 %v908
    %1302 = vmatprep.subr.bf16.mxu0 %v915
    %1303 = vmatpush1.bf16.msra.mxu0 %v914
    %1304 = vmatprep.subr.bf16.mxu0 %v921
    %1305 = vmatpush1.bf16.msra.mxu0 %v920
    %1306 = vmatprep.subr.bf16.mxu0 %v927
    %1307 = vmatpush1.bf16.msra.mxu0 %v926
    %1308 = vmatprep.subr.bf16.mxu0 %v933
    %1309 = vmatpush1.bf16.msra.mxu0 %v932
    %1310 = vmatprep.subr.bf16.mxu0 %v939
    %1311 = vmatpush1.bf16.msra.mxu0 %v938
    %1312 = vmatprep.subr.bf16.mxu0 %v945
    %1313 = vmatpush1.bf16.msra.mxu0 %v944
    %1314 = vmatprep.subr.bf16.mxu0 %v951
    %1315 = vmatpush1.bf16.msra.mxu0 %v950
    %1316 = vmatprep.subr.bf16.mxu0 %v957
    %1317 = vmatpush1.bf16.msra.mxu0 %v956
    %1318 = vmatprep.subr.bf16.mxu0 %v963
    %1319 = vmatpush1.bf16.msra.mxu0 %v962
    %1320 = vmatprep.subr.bf16.mxu0 %v969
    %1321 = vmatpush1.bf16.msra.mxu0 %v968
    %1322 = vmatprep.subr.bf16.mxu0 %v975
    %1323 = vmatpush1.bf16.msra.mxu0 %v974
    %1324 = vmatprep.mubr.bf16.mxu0 %v1250
    %1325 = vmatmul.mubr.bf16.gmra.mrb[0].mxu0 %v1249
    %v1326 = vpop.f32.mrb[0].mxu0
    %v1327 = vadd.f32 0.0, %v1326
    %v1328 = vpop.f32.mrb[0].mxu0
    %v1329 = vadd.f32 0.0, %v1328
    %v1330 = vpop.f32.mrb[0].mxu0
    %v1331 = vpop.f32.mrb[0].mxu0
    %1332 = vdwg.mxu0
    %1333 = vmatprep.subr.bf16.mxu0 %v887
    %1334 = vmatpush1.bf16.msra.mxu0 %v886
    %1335 = vmatprep.subr.bf16.mxu0 %v893
    %1336 = vmatpush1.bf16.msra.mxu0 %v892
    %1337 = vmatprep.subr.bf16.mxu0 %v899
    %1338 = vmatpush1.bf16.msra.mxu0 %v898
    %1339 = vmatprep.subr.bf16.mxu0 %v905
    %1340 = vmatpush1.bf16.msra.mxu0 %v904
    %1341 = vmatprep.subr.bf16.mxu0 %v911
    %1342 = vmatpush1.bf16.msra.mxu0 %v910
    %1343 = vmatprep.subr.bf16.mxu0 %v917
    %1344 = vmatpush1.bf16.msra.mxu0 %v916
    %1345 = vmatprep.subr.bf16.mxu0 %v923
    %1346 = vmatpush1.bf16.msra.mxu0 %v922
    %1347 = vmatprep.subr.bf16.mxu0 %v929
    %1348 = vmatpush1.bf16.msra.mxu0 %v928
    %1349 = vmatprep.subr.bf16.mxu0 %v935
    %1350 = vmatpush1.bf16.msra.mxu0 %v934
    %1351 = vmatprep.subr.bf16.mxu0 %v941
    %1352 = vmatpush1.bf16.msra.mxu0 %v940
    %1353 = vmatprep.subr.bf16.mxu0 %v947
    %1354 = vmatpush1.bf16.msra.mxu0 %v946
    %1355 = vmatprep.subr.bf16.mxu0 %v953
    %1356 = vmatpush1.bf16.msra.mxu0 %v952
    %1357 = vmatprep.subr.bf16.mxu0 %v959
    %1358 = vmatpush1.bf16.msra.mxu0 %v958
    %1359 = vmatprep.subr.bf16.mxu0 %v965
    %1360 = vmatpush1.bf16.msra.mxu0 %v964
    %1361 = vmatprep.subr.bf16.mxu0 %v971
    %1362 = vmatpush1.bf16.msra.mxu0 %v970
    %1363 = vmatprep.subr.bf16.mxu0 %v977
    %1364 = vmatpush1.bf16.msra.mxu0 %v976
    %1365 = vmatprep.mubr.bf16.mxu0 %v1250
    %1366 = vmatmul.mubr.bf16.gmra.mrb[0].mxu0 %v1249
    %v1367 = vpop.f32.mrb[0].mxu0
    %v1368 = vadd.f32 0.0, %v1367
    %v1369 = vpop.f32.mrb[0].mxu0
    %v1370 = vadd.f32 0.0, %v1369
    %v1371 = vpop.f32.mrb[0].mxu0
    %v1372 = vpop.f32.mrb[0].mxu0
    %1373 = vdwg.mxu0
    %v1374 = vld [vmem:[#allocation2 + $0x30] sm:$0xff]
    %v1375 = vld [vmem:[#allocation2 + $0x38] sm:$0xff]
    %v1376 = vld [vmem:[#allocation2 + $0x40] sm:$0xff]
    %v1377 = vadd.f32 %v1374, %v1286
    %v1378 = vxor.u32 %v1377, 2147483648
    %v1379 = vmul.f32 %v1378, 1.442695
    %v1380 = vpow.pop %v1379
    %v1381 = vadd.f32 %v1380, 1.0
    %v1382 = vrcp.pop %v1381
    %v1383 = vmul.f32 1.0, %v1382
    %v1384 = vadd.f32 %v1375, %v1288
    %v1385 = vxor.u32 %v1384, 2147483648
    %v1386 = vmul.f32 %v1385, 1.442695
    %v1387 = vpow.pop %v1386
    %v1388 = vadd.f32 %v1387, 1.0
    %v1389 = vrcp.pop %v1388
    %v1390 = vmul.f32 1.0, %v1389
    %v1391 = vadd.f32 %v1327, %v585
    %v1392 = vmul.f32 %v1383, %v1391
    %v1393 = vadd.f32 %v1376, %v1392
    %v1394 = vtanh.pop %v1393
    %v1395 = vsub.f32 1.0, %v1390
    %v1396 = vmul.f32 %v1395, %v1394
    %v1397 = vmul.f32 %v1390, %v1221
    %v1398 = vadd.f32 %v1396, %v1397
    %v1399 = vld [vmem:[#allocation2 + $0x138] sm:$0xff]
    %v1400 = vld [vmem:[#allocation2 + $0x140] sm:$0xff]
    %v1401 = vld [vmem:[#allocation2 + $0x148] sm:$0xff]
    %v1402 = vadd.f32 %v1399, %v1329
    %v1403 = vxor.u32 %v1402, 2147483648
    %v1404 = vmul.f32 %v1403, 1.442695
    %v1405 = vpow.pop %v1404
    %v1406 = vadd.f32 %v1405, 1.0
    %v1407 = vrcp.pop %v1406
    %v1408 = vmul.f32 1.0, %v1407
    %v1409 = vadd.f32 %v1400, %v1368
    %v1410 = vxor.u32 %v1409, 2147483648
    %v1411 = vmul.f32 %v1410, 1.442695
    %v1412 = vpow.pop %v1411
    %v1413 = vadd.f32 %v1412, 1.0
    %v1414 = vrcp.pop %v1413
    %v1415 = vmul.f32 1.0, %v1414
    %v1416 = vadd.f32 %v1370, %v592
    %v1417 = vmul.f32 %v1408, %v1416
    %v1418 = vadd.f32 %v1401, %v1417
    %v1419 = vtanh.pop %v1418
    %v1420 = vsub.f32 1.0, %v1415
    %v1421 = vmul.f32 %v1420, %v1419
    %v1422 = vmul.f32 %v1415, %v1246
    %v1423 = vadd.f32 %v1421, %v1422
    %1424 = vst [vmem:[#allocation9 + $0x10] sm:$0xff] %v1398
    %1425 = vst [vmem:[#allocation9 + $0x68] sm:$0xff] %v1423
    %v1426 = vpack.c.bf16 %v1398, %v1398
    %v1427 = vpack.c.bf16 %v1423, %v1423
    %1428 = vmatprep.subr.bf16.mxu0 %v883
    %1429 = vmatpush1.bf16.msra.mxu0 %v882
    %1430 = vmatprep.subr.bf16.mxu0 %v889
    %1431 = vmatpush1.bf16.msra.mxu0 %v888
    %1432 = vmatprep.subr.bf16.mxu0 %v895
    %1433 = vmatpush1.bf16.msra.mxu0 %v894
    %1434 = vmatprep.subr.bf16.mxu0 %v901
    %1435 = vmatpush1.bf16.msra.mxu0 %v900
    %1436 = vmatprep.subr.bf16.mxu0 %v907
    %1437 = vmatpush1.bf16.msra.mxu0 %v906
    %1438 = vmatprep.subr.bf16.mxu0 %v913
    %1439 = vmatpush1.bf16.msra.mxu0 %v912
    %1440 = vmatprep.subr.bf16.mxu0 %v919
    %1441 = vmatpush1.bf16.msra.mxu0 %v918
    %1442 = vmatprep.subr.bf16.mxu0 %v925
    %1443 = vmatpush1.bf16.msra.mxu0 %v924
    %1444 = vmatprep.subr.bf16.mxu0 %v931
    %1445 = vmatpush1.bf16.msra.mxu0 %v930
    %1446 = vmatprep.subr.bf16.mxu0 %v937
    %1447 = vmatpush1.bf16.msra.mxu0 %v936
    %1448 = vmatprep.subr.bf16.mxu0 %v943
    %1449 = vmatpush1.bf16.msra.mxu0 %v942
    %1450 = vmatprep.subr.bf16.mxu0 %v949
    %1451 = vmatpush1.bf16.msra.mxu0 %v948
    %1452 = vmatprep.subr.bf16.mxu0 %v955
    %1453 = vmatpush1.bf16.msra.mxu0 %v954
    %1454 = vmatprep.subr.bf16.mxu0 %v961
    %1455 = vmatpush1.bf16.msra.mxu0 %v960
    %1456 = vmatprep.subr.bf16.mxu0 %v967
    %1457 = vmatpush1.bf16.msra.mxu0 %v966
    %1458 = vmatprep.subr.bf16.mxu0 %v973
    %1459 = vmatpush1.bf16.msra.mxu0 %v972
    %1460 = vmatprep.mubr.bf16.mxu0 %v1427
    %1461 = vmatmul.mubr.bf16.gmra.mrb[0].mxu0 %v1426
    %v1462 = vpop.f32.mrb[0].mxu0
    %v1463 = vadd.f32 0.0, %v1462
    %v1464 = vpop.f32.mrb[0].mxu0
    %v1465 = vadd.f32 0.0, %v1464
    %v1466 = vpop.f32.mrb[0].mxu0
    %v1467 = vpop.f32.mrb[0].mxu0
    %1468 = vdwg.mxu0
    %1469 = vmatprep.subr.bf16.mxu0 %v885
    %1470 = vmatpush1.bf16.msra.mxu0 %v884
    %1471 = vmatprep.subr.bf16.mxu0 %v891
    %1472 = vmatpush1.bf16.msra.mxu0 %v890
    %1473 = vmatprep.subr.bf16.mxu0 %v897
    %1474 = vmatpush1.bf16.msra.mxu0 %v896
    %1475 = vmatprep.subr.bf16.mxu0 %v903
    %1476 = vmatpush1.bf16.msra.mxu0 %v902
    %1477 = vmatprep.subr.bf16.mxu0 %v909
    %1478 = vmatpush1.bf16.msra.mxu0 %v908
    %1479 = vmatprep.subr.bf16.mxu0 %v915
    %1480 = vmatpush1.bf16.msra.mxu0 %v914
    %1481 = vmatprep.subr.bf16.mxu0 %v921
    %1482 = vmatpush1.bf16.msra.mxu0 %v920
    %1483 = vmatprep.subr.bf16.mxu0 %v927
    %1484 = vmatpush1.bf16.msra.mxu0 %v926
    %1485 = vmatprep.subr.bf16.mxu0 %v933
    %1486 = vmatpush1.bf16.msra.mxu0 %v932
    %1487 = vmatprep.subr.bf16.mxu0 %v939
    %1488 = vmatpush1.bf16.msra.mxu0 %v938
    %1489 = vmatprep.subr.bf16.mxu0 %v945
    %1490 = vmatpush1.bf16.msra.mxu0 %v944
    %1491 = vmatprep.subr.bf16.mxu0 %v951
    %1492 = vmatpush1.bf16.msra.mxu0 %v950
    %1493 = vmatprep.subr.bf16.mxu0 %v957
    %1494 = vmatpush1.bf16.msra.mxu0 %v956
    %1495 = vmatprep.subr.bf16.mxu0 %v963
    %1496 = vmatpush1.bf16.msra.mxu0 %v962
    %1497 = vmatprep.subr.bf16.mxu0 %v969
    %1498 = vmatpush1.bf16.msra.mxu0 %v968
    %1499 = vmatprep.subr.bf16.mxu0 %v975
    %1500 = vmatpush1.bf16.msra.mxu0 %v974
    %1501 = vmatprep.mubr.bf16.mxu0 %v1427
    %1502 = vmatmul.mubr.bf16.gmra.mrb[0].mxu0 %v1426
    %v1503 = vpop.f32.mrb[0].mxu0
    %v1504 = vadd.f32 0.0, %v1503
    %v1505 = vpop.f32.mrb[0].mxu0
    %v1506 = vadd.f32 0.0, %v1505
    %v1507 = vpop.f32.mrb[0].mxu0
    %v1508 = vpop.f32.mrb[0].mxu0
    %1509 = vdwg.mxu0
    %1510 = vmatprep.subr.bf16.mxu0 %v887
    %1511 = vmatpush1.bf16.msra.mxu0 %v886
    %1512 = vmatprep.subr.bf16.mxu0 %v893
    %1513 = vmatpush1.bf16.msra.mxu0 %v892
    %1514 = vmatprep.subr.bf16.mxu0 %v899
    %1515 = vmatpush1.bf16.msra.mxu0 %v898
    %1516 = vmatprep.subr.bf16.mxu0 %v905
    %1517 = vmatpush1.bf16.msra.mxu0 %v904
    %1518 = vmatprep.subr.bf16.mxu0 %v911
    %1519 = vmatpush1.bf16.msra.mxu0 %v910
    %1520 = vmatprep.subr.bf16.mxu0 %v917
    %1521 = vmatpush1.bf16.msra.mxu0 %v916
    %1522 = vmatprep.subr.bf16.mxu0 %v923
    %1523 = vmatpush1.bf16.msra.mxu0 %v922
    %1524 = vmatprep.subr.bf16.mxu0 %v929
    %1525 = vmatpush1.bf16.msra.mxu0 %v928
    %1526 = vmatprep.subr.bf16.mxu0 %v935
    %1527 = vmatpush1.bf16.msra.mxu0 %v934
    %1528 = vmatprep.subr.bf16.mxu0 %v941
    %1529 = vmatpush1.bf16.msra.mxu0 %v940
    %1530 = vmatprep.subr.bf16.mxu0 %v947
    %1531 = vmatpush1.bf16.msra.mxu0 %v946
    %1532 = vmatprep.subr.bf16.mxu0 %v953
    %1533 = vmatpush1.bf16.msra.mxu0 %v952
    %1534 = vmatprep.subr.bf16.mxu0 %v959
    %1535 = vmatpush1.bf16.msra.mxu0 %v958
    %1536 = vmatprep.subr.bf16.mxu0 %v965
    %1537 = vmatpush1.bf16.msra.mxu0 %v964
    %1538 = vmatprep.subr.bf16.mxu0 %v971
    %1539 = vmatpush1.bf16.msra.mxu0 %v970
    %1540 = vmatprep.subr.bf16.mxu0 %v977
    %1541 = vmatpush1.bf16.msra.mxu0 %v976
    %1542 = vmatprep.mubr.bf16.mxu0 %v1427
    %1543 = vmatmul.mubr.bf16.gmra.mrb[0].mxu0 %v1426
    %v1544 = vpop.f32.mrb[0].mxu0
    %v1545 = vadd.f32 0.0, %v1544
    %v1546 = vpop.f32.mrb[0].mxu0
    %v1547 = vadd.f32 0.0, %v1546
    %v1548 = vpop.f32.mrb[0].mxu0
    %v1549 = vpop.f32.mrb[0].mxu0
    %1550 = vdwg.mxu0
    %v1551 = vld [vmem:[#allocation2 + $0x60] sm:$0xff]
    %v1552 = vld [vmem:[#allocation2 + $0x68] sm:$0xff]
    %v1553 = vld [vmem:[#allocation2 + $0x70] sm:$0xff]
    %v1554 = vadd.f32 %v1551, %v1463
    %v1555 = vxor.u32 %v1554, 2147483648
    %v1556 = vmul.f32 %v1555, 1.442695
    %v1557 = vpow.pop %v1556
    %v1558 = vadd.f32 %v1557, 1.0
    %v1559 = vrcp.pop %v1558
    %v1560 = vmul.f32 1.0, %v1559
    %v1561 = vadd.f32 %v1552, %v1465
    %v1562 = vxor.u32 %v1561, 2147483648
    %v1563 = vmul.f32 %v1562, 1.442695
    %v1564 = vpow.pop %v1563
    %v1565 = vadd.f32 %v1564, 1.0
    %v1566 = vrcp.pop %v1565
    %v1567 = vmul.f32 1.0, %v1566
    %v1568 = vadd.f32 %v1504, %v585
    %v1569 = vmul.f32 %v1560, %v1568
    %v1570 = vadd.f32 %v1553, %v1569
    %v1571 = vtanh.pop %v1570
    %v1572 = vsub.f32 1.0, %v1567
    %v1573 = vmul.f32 %v1572, %v1571
    %v1574 = vmul.f32 %v1567, %v1398
    %v1575 = vadd.f32 %v1573, %v1574
    %v1576 = vld [vmem:[#allocation2 + $0x108] sm:$0xff]
    %v1577 = vld [vmem:[#allocation2 + $0x110] sm:$0xff]
    %v1578 = vld [vmem:[#allocation2 + $0x118] sm:$0xff]
    %v1579 = vadd.f32 %v1576, %v1506
    %v1580 = vxor.u32 %v1579, 2147483648
    %v1581 = vmul.f32 %v1580, 1.442695
    %v1582 = vpow.pop %v1581
    %v1583 = vadd.f32 %v1582, 1.0
    %v1584 = vrcp.pop %v1583
    %v1585 = vmul.f32 1.0, %v1584
    %v1586 = vadd.f32 %v1577, %v1545
    %v1587 = vxor.u32 %v1586, 2147483648
    %v1588 = vmul.f32 %v1587, 1.442695
    %v1589 = vpow.pop %v1588
    %v1590 = vadd.f32 %v1589, 1.0
    %v1591 = vrcp.pop %v1590
    %v1592 = vmul.f32 1.0, %v1591
    %v1593 = vadd.f32 %v1547, %v592
    %v1594 = vmul.f32 %v1585, %v1593
    %v1595 = vadd.f32 %v1578, %v1594
    %v1596 = vtanh.pop %v1595
    %v1597 = vsub.f32 1.0, %v1592
    %v1598 = vmul.f32 %v1597, %v1596
    %v1599 = vmul.f32 %v1592, %v1423
    %v1600 = vadd.f32 %v1598, %v1599
    %1601 = vst [vmem:[#allocation9 + $0x20] sm:$0xff] %v1575
    %1602 = vst [vmem:[#allocation9 + $0x58] sm:$0xff] %v1600
    %v1603 = vpack.c.bf16 %v1575, %v1575
    %v1604 = vpack.c.bf16 %v1600, %v1600
    %1605 = vmatprep.subr.bf16.mxu0 %v883
    %1606 = vmatpush1.bf16.msra.mxu0 %v882
    %1607 = vmatprep.subr.bf16.mxu0 %v889
    %1608 = vmatpush1.bf16.msra.mxu0 %v888
    %1609 = vmatprep.subr.bf16.mxu0 %v895
    %1610 = vmatpush1.bf16.msra.mxu0 %v894
    %1611 = vmatprep.subr.bf16.mxu0 %v901
    %1612 = vmatpush1.bf16.msra.mxu0 %v900
    %1613 = vmatprep.subr.bf16.mxu0 %v907
    %1614 = vmatpush1.bf16.msra.mxu0 %v906
    %1615 = vmatprep.subr.bf16.mxu0 %v913
    %1616 = vmatpush1.bf16.msra.mxu0 %v912
    %1617 = vmatprep.subr.bf16.mxu0 %v919
    %1618 = vmatpush1.bf16.msra.mxu0 %v918
    %1619 = vmatprep.subr.bf16.mxu0 %v925
    %1620 = vmatpush1.bf16.msra.mxu0 %v924
    %1621 = vmatprep.subr.bf16.mxu0 %v931
    %1622 = vmatpush1.bf16.msra.mxu0 %v930
    %1623 = vmatprep.subr.bf16.mxu0 %v937
    %1624 = vmatpush1.bf16.msra.mxu0 %v936
    %1625 = vmatprep.subr.bf16.mxu0 %v943
    %1626 = vmatpush1.bf16.msra.mxu0 %v942
    %1627 = vmatprep.subr.bf16.mxu0 %v949
    %1628 = vmatpush1.bf16.msra.mxu0 %v948
    %1629 = vmatprep.subr.bf16.mxu0 %v955
    %1630 = vmatpush1.bf16.msra.mxu0 %v954
    %1631 = vmatprep.subr.bf16.mxu0 %v961
    %1632 = vmatpush1.bf16.msra.mxu0 %v960
    %1633 = vmatprep.subr.bf16.mxu0 %v967
    %1634 = vmatpush1.bf16.msra.mxu0 %v966
    %1635 = vmatprep.subr.bf16.mxu0 %v973
    %1636 = vmatpush1.bf16.msra.mxu0 %v972
    %1637 = vmatprep.mubr.bf16.mxu0 %v1604
    %1638 = vmatmul.mubr.bf16.gmra.mrb[0].mxu0 %v1603
    %v1639 = vpop.f32.mrb[0].mxu0
    %v1640 = vadd.f32 0.0, %v1639
    %v1641 = vpop.f32.mrb[0].mxu0
    %v1642 = vadd.f32 0.0, %v1641
    %v1643 = vpop.f32.mrb[0].mxu0
    %v1644 = vpop.f32.mrb[0].mxu0
    %1645 = vdwg.mxu0
    %1646 = vmatprep.subr.bf16.mxu0 %v885
    %1647 = vmatpush1.bf16.msra.mxu0 %v884
    %1648 = vmatprep.subr.bf16.mxu0 %v891
    %1649 = vmatpush1.bf16.msra.mxu0 %v890
    %1650 = vmatprep.subr.bf16.mxu0 %v897
    %1651 = vmatpush1.bf16.msra.mxu0 %v896
    %1652 = vmatprep.subr.bf16.mxu0 %v903
    %1653 = vmatpush1.bf16.msra.mxu0 %v902
    %1654 = vmatprep.subr.bf16.mxu0 %v909
    %1655 = vmatpush1.bf16.msra.mxu0 %v908
    %1656 = vmatprep.subr.bf16.mxu0 %v915
    %1657 = vmatpush1.bf16.msra.mxu0 %v914
    %1658 = vmatprep.subr.bf16.mxu0 %v921
    %1659 = vmatpush1.bf16.msra.mxu0 %v920
    %1660 = vmatprep.subr.bf16.mxu0 %v927
    %1661 = vmatpush1.bf16.msra.mxu0 %v926
    %1662 = vmatprep.subr.bf16.mxu0 %v933
    %1663 = vmatpush1.bf16.msra.mxu0 %v932
    %1664 = vmatprep.subr.bf16.mxu0 %v939
    %1665 = vmatpush1.bf16.msra.mxu0 %v938
    %1666 = vmatprep.subr.bf16.mxu0 %v945
    %1667 = vmatpush1.bf16.msra.mxu0 %v944
    %1668 = vmatprep.subr.bf16.mxu0 %v951
    %1669 = vmatpush1.bf16.msra.mxu0 %v950
    %1670 = vmatprep.subr.bf16.mxu0 %v957
    %1671 = vmatpush1.bf16.msra.mxu0 %v956
    %1672 = vmatprep.subr.bf16.mxu0 %v963
    %1673 = vmatpush1.bf16.msra.mxu0 %v962
    %1674 = vmatprep.subr.bf16.mxu0 %v969
    %1675 = vmatpush1.bf16.msra.mxu0 %v968
    %1676 = vmatprep.subr.bf16.mxu0 %v975
    %1677 = vmatpush1.bf16.msra.mxu0 %v974
    %1678 = vmatprep.mubr.bf16.mxu0 %v1604
    %1679 = vmatmul.mubr.bf16.gmra.mrb[0].mxu0 %v1603
    %v1680 = vpop.f32.mrb[0].mxu0
    %v1681 = vadd.f32 0.0, %v1680
    %v1682 = vpop.f32.mrb[0].mxu0
    %v1683 = vadd.f32 0.0, %v1682
    %v1684 = vpop.f32.mrb[0].mxu0
    %v1685 = vpop.f32.mrb[0].mxu0
    %1686 = vdwg.mxu0
    %1687 = vmatprep.subr.bf16.mxu0 %v887
    %1688 = vmatpush1.bf16.msra.mxu0 %v886
    %1689 = vmatprep.subr.bf16.mxu0 %v893
    %1690 = vmatpush1.bf16.msra.mxu0 %v892
    %1691 = vmatprep.subr.bf16.mxu0 %v899
    %1692 = vmatpush1.bf16.msra.mxu0 %v898
    %1693 = vmatprep.subr.bf16.mxu0 %v905
    %1694 = vmatpush1.bf16.msra.mxu0 %v904
    %1695 = vmatprep.subr.bf16.mxu0 %v911
    %1696 = vmatpush1.bf16.msra.mxu0 %v910
    %1697 = vmatprep.subr.bf16.mxu0 %v917
    %1698 = vmatpush1.bf16.msra.mxu0 %v916
    %1699 = vmatprep.subr.bf16.mxu0 %v923
    %1700 = vmatpush1.bf16.msra.mxu0 %v922
    %1701 = vmatprep.subr.bf16.mxu0 %v929
    %1702 = vmatpush1.bf16.msra.mxu0 %v928
    %1703 = vmatprep.subr.bf16.mxu0 %v935
    %1704 = vmatpush1.bf16.msra.mxu0 %v934
    %1705 = vmatprep.subr.bf16.mxu0 %v941
    %1706 = vmatpush1.bf16.msra.mxu0 %v940
    %1707 = vmatprep.subr.bf16.mxu0 %v947
    %1708 = vmatpush1.bf16.msra.mxu0 %v946
    %1709 = vmatprep.subr.bf16.mxu0 %v953
    %1710 = vmatpush1.bf16.msra.mxu0 %v952
    %1711 = vmatprep.subr.bf16.mxu0 %v959
    %1712 = vmatpush1.bf16.msra.mxu0 %v958
    %1713 = vmatprep.subr.bf16.mxu0 %v965
    %1714 = vmatpush1.bf16.msra.mxu0 %v964
    %1715 = vmatprep.subr.bf16.mxu0 %v971
    %1716 = vmatpush1.bf16.msra.mxu0 %v970
    %1717 = vmatprep.subr.bf16.mxu0 %v977
    %1718 = vmatpush1.bf16.msra.mxu0 %v976
    %1719 = vmatprep.mubr.bf16.mxu0 %v1604
    %1720 = vmatmul.mubr.bf16.gmra.mrb[0].mxu0 %v1603
    %v1721 = vpop.f32.mrb[0].mxu0
    %v1722 = vadd.f32 0.0, %v1721
    %v1723 = vpop.f32.mrb[0].mxu0
    %v1724 = vadd.f32 0.0, %v1723
    %v1725 = vpop.f32.mrb[0].mxu0
    %v1726 = vpop.f32.mrb[0].mxu0
    %1727 = vdwg.mxu0
    %v1728 = vld [vmem:[#allocation2 + $0x90] sm:$0xff]
    %v1729 = vld [vmem:[#allocation2 + $0x98] sm:$0xff]
    %v1730 = vld [vmem:[#allocation2 + $0xa0] sm:$0xff]
    %v1731 = vadd.f32 %v1728, %v1640
    %v1732 = vxor.u32 %v1731, 2147483648
    %v1733 = vmul.f32 %v1732, 1.442695
    %v1734 = vpow.pop %v1733
    %v1735 = vadd.f32 %v1734, 1.0
    %v1736 = vrcp.pop %v1735
    %v1737 = vmul.f32 1.0, %v1736
    %v1738 = vadd.f32 %v1729, %v1642
    %v1739 = vxor.u32 %v1738, 2147483648
    %v1740 = vmul.f32 %v1739, 1.442695
    %v1741 = vpow.pop %v1740
    %v1742 = vadd.f32 %v1741, 1.0
    %v1743 = vrcp.pop %v1742
    %v1744 = vmul.f32 1.0, %v1743
    %v1745 = vadd.f32 %v1681, %v585
    %v1746 = vmul.f32 %v1737, %v1745
    %v1747 = vadd.f32 %v1730, %v1746
    %v1748 = vtanh.pop %v1747
    %v1749 = vsub.f32 1.0, %v1744
    %v1750 = vmul.f32 %v1749, %v1748
    %v1751 = vmul.f32 %v1744, %v1575
    %v1752 = vadd.f32 %v1750, %v1751
    %v1753 = vld [vmem:[#allocation2 + $0xd8] sm:$0xff]
    %v1754 = vld [vmem:[#allocation2 + $0xe0] sm:$0xff]
    %v1755 = vld [vmem:[#allocation2 + $0xe8] sm:$0xff]
    %v1756 = vadd.f32 %v1753, %v1683
    %v1757 = vxor.u32 %v1756, 2147483648
    %v1758 = vmul.f32 %v1757, 1.442695
    %v1759 = vpow.pop %v1758
    %v1760 = vadd.f32 %v1759, 1.0
    %v1761 = vrcp.pop %v1760
    %v1762 = vmul.f32 1.0, %v1761
    %v1763 = vadd.f32 %v1754, %v1722
    %v1764 = vxor.u32 %v1763, 2147483648
    %v1765 = vmul.f32 %v1764, 1.442695
    %v1766 = vpow.pop %v1765
    %v1767 = vadd.f32 %v1766, 1.0
    %v1768 = vrcp.pop %v1767
    %v1769 = vmul.f32 1.0, %v1768
    %v1770 = vadd.f32 %v1724, %v592
    %v1771 = vmul.f32 %v1762, %v1770
    %v1772 = vadd.f32 %v1755, %v1771
    %v1773 = vtanh.pop %v1772
    %v1774 = vsub.f32 1.0, %v1769
    %v1775 = vmul.f32 %v1774, %v1773
    %v1776 = vmul.f32 %v1769, %v1600
    %v1777 = vadd.f32 %v1775, %v1776
    %1778 = vst [vmem:[#allocation9 + $0x30] sm:$0xff] %v1752
    %1779 = vst [vmem:[#allocation9 + $0x48] sm:$0xff] %v1777
    %v1780 = vpack.c.bf16 %v1752, %v1752
    %v1781 = vpack.c.bf16 %v1777, %v1777
    %1782 = vmatprep.subr.bf16.mxu0 %v883
    %1783 = vmatpush1.bf16.msra.mxu0 %v882
    %1784 = vmatprep.subr.bf16.mxu0 %v889
    %1785 = vmatpush1.bf16.msra.mxu0 %v888
    %1786 = vmatprep.subr.bf16.mxu0 %v895
    %1787 = vmatpush1.bf16.msra.mxu0 %v894
    %1788 = vmatprep.subr.bf16.mxu0 %v901
    %1789 = vmatpush1.bf16.msra.mxu0 %v900
    %1790 = vmatprep.subr.bf16.mxu0 %v907
    %1791 = vmatpush1.bf16.msra.mxu0 %v906
    %1792 = vmatprep.subr.bf16.mxu0 %v913
    %1793 = vmatpush1.bf16.msra.mxu0 %v912
    %1794 = vmatprep.subr.bf16.mxu0 %v919
    %1795 = vmatpush1.bf16.msra.mxu0 %v918
    %1796 = vmatprep.subr.bf16.mxu0 %v925
    %1797 = vmatpush1.bf16.msra.mxu0 %v924
    %1798 = vmatprep.subr.bf16.mxu0 %v931
    %1799 = vmatpush1.bf16.msra.mxu0 %v930
    %1800 = vmatprep.subr.bf16.mxu0 %v937
    %1801 = vmatpush1.bf16.msra.mxu0 %v936
    %1802 = vmatprep.subr.bf16.mxu0 %v943
    %1803 = vmatpush1.bf16.msra.mxu0 %v942
    %1804 = vmatprep.subr.bf16.mxu0 %v949
    %1805 = vmatpush1.bf16.msra.mxu0 %v948
    %1806 = vmatprep.subr.bf16.mxu0 %v955
    %1807 = vmatpush1.bf16.msra.mxu0 %v954
    %1808 = vmatprep.subr.bf16.mxu0 %v961
    %1809 = vmatpush1.bf16.msra.mxu0 %v960
    %1810 = vmatprep.subr.bf16.mxu0 %v967
    %1811 = vmatpush1.bf16.msra.mxu0 %v966
    %1812 = vmatprep.subr.bf16.mxu0 %v973
    %1813 = vmatpush1.bf16.msra.mxu0 %v972
    %1814 = vmatprep.mubr.bf16.mxu0 %v1781
    %1815 = vmatmul.mubr.bf16.gmra.mrb[0].mxu0 %v1780
    %v1816 = vpop.f32.mrb[0].mxu0
    %v1817 = vadd.f32 0.0, %v1816
    %v1818 = vpop.f32.mrb[0].mxu0
    %v1819 = vadd.f32 0.0, %v1818
    %v1820 = vpop.f32.mrb[0].mxu0
    %v1821 = vpop.f32.mrb[0].mxu0
    %1822 = vdwg.mxu0
    %1823 = vmatprep.subr.bf16.mxu0 %v885
    %1824 = vmatpush1.bf16.msra.mxu0 %v884
    %1825 = vmatprep.subr.bf16.mxu0 %v891
    %1826 = vmatpush1.bf16.msra.mxu0 %v890
    %1827 = vmatprep.subr.bf16.mxu0 %v897
    %1828 = vmatpush1.bf16.msra.mxu0 %v896
    %1829 = vmatprep.subr.bf16.mxu0 %v903
    %1830 = vmatpush1.bf16.msra.mxu0 %v902
    %1831 = vmatprep.subr.bf16.mxu0 %v909
    %1832 = vmatpush1.bf16.msra.mxu0 %v908
    %1833 = vmatprep.subr.bf16.mxu0 %v915
    %1834 = vmatpush1.bf16.msra.mxu0 %v914
    %1835 = vmatprep.subr.bf16.mxu0 %v921
    %1836 = vmatpush1.bf16.msra.mxu0 %v920
    %1837 = vmatprep.subr.bf16.mxu0 %v927
    %1838 = vmatpush1.bf16.msra.mxu0 %v926
    %1839 = vmatprep.subr.bf16.mxu0 %v933
    %1840 = vmatpush1.bf16.msra.mxu0 %v932
    %1841 = vmatprep.subr.bf16.mxu0 %v939
    %1842 = vmatpush1.bf16.msra.mxu0 %v938
    %1843 = vmatprep.subr.bf16.mxu0 %v945
    %1844 = vmatpush1.bf16.msra.mxu0 %v944
    %1845 = vmatprep.subr.bf16.mxu0 %v951
    %1846 = vmatpush1.bf16.msra.mxu0 %v950
    %1847 = vmatprep.subr.bf16.mxu0 %v957
    %1848 = vmatpush1.bf16.msra.mxu0 %v956
    %1849 = vmatprep.subr.bf16.mxu0 %v963
    %1850 = vmatpush1.bf16.msra.mxu0 %v962
    %1851 = vmatprep.subr.bf16.mxu0 %v969
    %1852 = vmatpush1.bf16.msra.mxu0 %v968
    %1853 = vmatprep.subr.bf16.mxu0 %v975
    %1854 = vmatpush1.bf16.msra.mxu0 %v974
    %1855 = vmatprep.mubr.bf16.mxu0 %v1781
    %1856 = vmatmul.mubr.bf16.gmra.mrb[0].mxu0 %v1780
    %v1857 = vpop.f32.mrb[0].mxu0
    %v1858 = vadd.f32 0.0, %v1857
    %v1859 = vpop.f32.mrb[0].mxu0
    %v1860 = vadd.f32 0.0, %v1859
    %v1861 = vpop.f32.mrb[0].mxu0
    %v1862 = vpop.f32.mrb[0].mxu0
    %1863 = vdwg.mxu0
    %1864 = vmatprep.subr.bf16.mxu0 %v887
    %1865 = vmatpush1.bf16.msra.mxu0 %v886
    %1866 = vmatprep.subr.bf16.mxu0 %v893
    %1867 = vmatpush1.bf16.msra.mxu0 %v892
    %1868 = vmatprep.subr.bf16.mxu0 %v899
    %1869 = vmatpush1.bf16.msra.mxu0 %v898
    %1870 = vmatprep.subr.bf16.mxu0 %v905
    %1871 = vmatpush1.bf16.msra.mxu0 %v904
    %1872 = vmatprep.subr.bf16.mxu0 %v911
    %1873 = vmatpush1.bf16.msra.mxu0 %v910
    %1874 = vmatprep.subr.bf16.mxu0 %v917
    %1875 = vmatpush1.bf16.msra.mxu0 %v916
    %1876 = vmatprep.subr.bf16.mxu0 %v923
    %1877 = vmatpush1.bf16.msra.mxu0 %v922
    %1878 = vmatprep.subr.bf16.mxu0 %v929
    %1879 = vmatpush1.bf16.msra.mxu0 %v928
    %1880 = vmatprep.subr.bf16.mxu0 %v935
    %1881 = vmatpush1.bf16.msra.mxu0 %v934
    %1882 = vmatprep.subr.bf16.mxu0 %v941
    %1883 = vmatpush1.bf16.msra.mxu0 %v940
    %1884 = vmatprep.subr.bf16.mxu0 %v947
    %1885 = vmatpush1.bf16.msra.mxu0 %v946
    %1886 = vmatprep.subr.bf16.mxu0 %v953
    %1887 = vmatpush1.bf16.msra.mxu0 %v952
    %1888 = vmatprep.subr.bf16.mxu0 %v959
    %1889 = vmatpush1.bf16.msra.mxu0 %v958
    %1890 = vmatprep.subr.bf16.mxu0 %v965
    %1891 = vmatpush1.bf16.msra.mxu0 %v964
    %1892 = vmatprep.subr.bf16.mxu0 %v971
    %1893 = vmatpush1.bf16.msra.mxu0 %v970
    %1894 = vmatprep.subr.bf16.mxu0 %v977
    %1895 = vmatpush1.bf16.msra.mxu0 %v976
    %1896 = vmatprep.mubr.bf16.mxu0 %v1781
    %1897 = vmatmul.mubr.bf16.gmra.mrb[0].mxu0 %v1780
    %v1898 = vpop.f32.mrb[0].mxu0
    %v1899 = vadd.f32 0.0, %v1898
    %v1900 = vpop.f32.mrb[0].mxu0
    %v1901 = vadd.f32 0.0, %v1900
    %v1902 = vpop.f32.mrb[0].mxu0
    %v1903 = vpop.f32.mrb[0].mxu0
    %1904 = vdwg.mxu0
    %v1905 = vld [vmem:[#allocation2 + $0xc0] sm:$0xff]
    %v1906 = vld [vmem:[#allocation2 + $0xc8] sm:$0xff]
    %v1907 = vld [vmem:[#allocation2 + $0xd0] sm:$0xff]
    %v1908 = vadd.f32 %v1905, %v1817
    %v1909 = vxor.u32 %v1908, 2147483648
    %v1910 = vmul.f32 %v1909, 1.442695
    %v1911 = vpow.pop %v1910
    %v1912 = vadd.f32 %v1911, 1.0
    %v1913 = vrcp.pop %v1912
    %v1914 = vmul.f32 1.0, %v1913
    %v1915 = vadd.f32 %v1906, %v1819
    %v1916 = vxor.u32 %v1915, 2147483648
    %v1917 = vmul.f32 %v1916, 1.442695
    %v1918 = vpow.pop %v1917
    %v1919 = vadd.f32 %v1918, 1.0
    %v1920 = vrcp.pop %v1919
    %v1921 = vmul.f32 1.0, %v1920
    %v1922 = vadd.f32 %v1858, %v585
    %v1923 = vmul.f32 %v1914, %v1922
    %v1924 = vadd.f32 %v1907, %v1923
    %v1925 = vtanh.pop %v1924
    %v1926 = vsub.f32 1.0, %v1921
    %v1927 = vmul.f32 %v1926, %v1925
    %v1928 = vmul.f32 %v1921, %v1752
    %v1929 = vadd.f32 %v1927, %v1928
    %v1930 = vld [vmem:[#allocation2 + $0xa8] sm:$0xff]
    %v1931 = vld [vmem:[#allocation2 + $0xb0] sm:$0xff]
    %v1932 = vld [vmem:[#allocation2 + $0xb8] sm:$0xff]
    %v1933 = vadd.f32 %v1930, %v1860
    %v1934 = vxor.u32 %v1933, 2147483648
    %v1935 = vmul.f32 %v1934, 1.442695
    %v1936 = vpow.pop %v1935
    %v1937 = vadd.f32 %v1936, 1.0
    %v1938 = vrcp.pop %v1937
    %v1939 = vmul.f32 1.0, %v1938
    %v1940 = vadd.f32 %v1931, %v1899
    %v1941 = vxor.u32 %v1940, 2147483648
    %v1942 = vmul.f32 %v1941, 1.442695
    %v1943 = vpow.pop %v1942
    %v1944 = vadd.f32 %v1943, 1.0
    %v1945 = vrcp.pop %v1944
    %v1946 = vmul.f32 1.0, %v1945
    %v1947 = vadd.f32 %v1901, %v592
    %v1948 = vmul.f32 %v1939, %v1947
    %v1949 = vadd.f32 %v1932, %v1948
    %v1950 = vtanh.pop %v1949
    %v1951 = vsub.f32 1.0, %v1946
    %v1952 = vmul.f32 %v1951, %v1950
    %v1953 = vmul.f32 %v1946, %v1777
    %v1954 = vadd.f32 %v1952, %v1953
    %1955 = vst [vmem:[#allocation9 + $0x40] sm:$0xff] %v1929
    %1956 = vst [vmem:[#allocation9 + $0x38] sm:$0xff] %v1954
    %v1957 = vpack.c.bf16 %v1929, %v1929
    %v1958 = vpack.c.bf16 %v1954, %v1954
    %1959 = vmatprep.subr.bf16.mxu0 %v883
    %1960 = vmatpush1.bf16.msra.mxu0 %v882
    %1961 = vmatprep.subr.bf16.mxu0 %v889
    %1962 = vmatpush1.bf16.msra.mxu0 %v888
    %1963 = vmatprep.subr.bf16.mxu0 %v895
    %1964 = vmatpush1.bf16.msra.mxu0 %v894
    %1965 = vmatprep.subr.bf16.mxu0 %v901
    %1966 = vmatpush1.bf16.msra.mxu0 %v900
    %1967 = vmatprep.subr.bf16.mxu0 %v907
    %1968 = vmatpush1.bf16.msra.mxu0 %v906
    %1969 = vmatprep.subr.bf16.mxu0 %v913
    %1970 = vmatpush1.bf16.msra.mxu0 %v912
    %1971 = vmatprep.subr.bf16.mxu0 %v919
    %1972 = vmatpush1.bf16.msra.mxu0 %v918
    %1973 = vmatprep.subr.bf16.mxu0 %v925
    %1974 = vmatpush1.bf16.msra.mxu0 %v924
    %1975 = vmatprep.subr.bf16.mxu0 %v931
    %1976 = vmatpush1.bf16.msra.mxu0 %v930
    %1977 = vmatprep.subr.bf16.mxu0 %v937
    %1978 = vmatpush1.bf16.msra.mxu0 %v936
    %1979 = vmatprep.subr.bf16.mxu0 %v943
    %1980 = vmatpush1.bf16.msra.mxu0 %v942
    %1981 = vmatprep.subr.bf16.mxu0 %v949
    %1982 = vmatpush1.bf16.msra.mxu0 %v948
    %1983 = vmatprep.subr.bf16.mxu0 %v955
    %1984 = vmatpush1.bf16.msra.mxu0 %v954
    %1985 = vmatprep.subr.bf16.mxu0 %v961
    %1986 = vmatpush1.bf16.msra.mxu0 %v960
    %1987 = vmatprep.subr.bf16.mxu0 %v967
    %1988 = vmatpush1.bf16.msra.mxu0 %v966
    %1989 = vmatprep.subr.bf16.mxu0 %v973
    %1990 = vmatpush1.bf16.msra.mxu0 %v972
    %1991 = vmatprep.mubr.bf16.mxu0 %v1958
    %1992 = vmatmul.mubr.bf16.gmra.mrb[0].mxu0 %v1957
    %v1993 = vpop.f32.mrb[0].mxu0
    %v1994 = vadd.f32 0.0, %v1993
    %v1995 = vpop.f32.mrb[0].mxu0
    %v1996 = vadd.f32 0.0, %v1995
    %v1997 = vpop.f32.mrb[0].mxu0
    %v1998 = vpop.f32.mrb[0].mxu0
    %1999 = vdwg.mxu0
    %2000 = vmatprep.subr.bf16.mxu0 %v885
    %2001 = vmatpush1.bf16.msra.mxu0 %v884
    %2002 = vmatprep.subr.bf16.mxu0 %v891
    %2003 = vmatpush1.bf16.msra.mxu0 %v890
    %2004 = vmatprep.subr.bf16.mxu0 %v897
    %2005 = vmatpush1.bf16.msra.mxu0 %v896
    %2006 = vmatprep.subr.bf16.mxu0 %v903
    %2007 = vmatpush1.bf16.msra.mxu0 %v902
    %2008 = vmatprep.subr.bf16.mxu0 %v909
    %2009 = vmatpush1.bf16.msra.mxu0 %v908
    %2010 = vmatprep.subr.bf16.mxu0 %v915
    %2011 = vmatpush1.bf16.msra.mxu0 %v914
    %2012 = vmatprep.subr.bf16.mxu0 %v921
    %2013 = vmatpush1.bf16.msra.mxu0 %v920
    %2014 = vmatprep.subr.bf16.mxu0 %v927
    %2015 = vmatpush1.bf16.msra.mxu0 %v926
    %2016 = vmatprep.subr.bf16.mxu0 %v933
    %2017 = vmatpush1.bf16.msra.mxu0 %v932
    %2018 = vmatprep.subr.bf16.mxu0 %v939
    %2019 = vmatpush1.bf16.msra.mxu0 %v938
    %2020 = vmatprep.subr.bf16.mxu0 %v945
    %2021 = vmatpush1.bf16.msra.mxu0 %v944
    %2022 = vmatprep.subr.bf16.mxu0 %v951
    %2023 = vmatpush1.bf16.msra.mxu0 %v950
    %2024 = vmatprep.subr.bf16.mxu0 %v957
    %2025 = vmatpush1.bf16.msra.mxu0 %v956
    %2026 = vmatprep.subr.bf16.mxu0 %v963
    %2027 = vmatpush1.bf16.msra.mxu0 %v962
    %2028 = vmatprep.subr.bf16.mxu0 %v969
    %2029 = vmatpush1.bf16.msra.mxu0 %v968
    %2030 = vmatprep.subr.bf16.mxu0 %v975
    %2031 = vmatpush1.bf16.msra.mxu0 %v974
    %2032 = vmatprep.mubr.bf16.mxu0 %v1958
    %2033 = vmatmul.mubr.bf16.gmra.mrb[0].mxu0 %v1957
    %v2034 = vpop.f32.mrb[0].mxu0
    %v2035 = vadd.f32 0.0, %v2034
    %v2036 = vpop.f32.mrb[0].mxu0
    %v2037 = vadd.f32 0.0, %v2036
    %v2038 = vpop.f32.mrb[0].mxu0
    %v2039 = vpop.f32.mrb[0].mxu0
    %2040 = vdwg.mxu0
    %2041 = vmatprep.subr.bf16.mxu0 %v887
    %2042 = vmatpush1.bf16.msra.mxu0 %v886
    %2043 = vmatprep.subr.bf16.mxu0 %v893
    %2044 = vmatpush1.bf16.msra.mxu0 %v892
    %2045 = vmatprep.subr.bf16.mxu0 %v899
    %2046 = vmatpush1.bf16.msra.mxu0 %v898
    %2047 = vmatprep.subr.bf16.mxu0 %v905
    %2048 = vmatpush1.bf16.msra.mxu0 %v904
    %2049 = vmatprep.subr.bf16.mxu0 %v911
    %2050 = vmatpush1.bf16.msra.mxu0 %v910
    %2051 = vmatprep.subr.bf16.mxu0 %v917
    %2052 = vmatpush1.bf16.msra.mxu0 %v916
    %2053 = vmatprep.subr.bf16.mxu0 %v923
    %2054 = vmatpush1.bf16.msra.mxu0 %v922
    %2055 = vmatprep.subr.bf16.mxu0 %v929
    %2056 = vmatpush1.bf16.msra.mxu0 %v928
    %2057 = vmatprep.subr.bf16.mxu0 %v935
    %2058 = vmatpush1.bf16.msra.mxu0 %v934
    %2059 = vmatprep.subr.bf16.mxu0 %v941
    %2060 = vmatpush1.bf16.msra.mxu0 %v940
    %2061 = vmatprep.subr.bf16.mxu0 %v947
    %2062 = vmatpush1.bf16.msra.mxu0 %v946
    %2063 = vmatprep.subr.bf16.mxu0 %v953
    %2064 = vmatpush1.bf16.msra.mxu0 %v952
    %2065 = vmatprep.subr.bf16.mxu0 %v959
    %2066 = vmatpush1.bf16.msra.mxu0 %v958
    %2067 = vmatprep.subr.bf16.mxu0 %v965
    %2068 = vmatpush1.bf16.msra.mxu0 %v964
    %2069 = vmatprep.subr.bf16.mxu0 %v971
    %2070 = vmatpush1.bf16.msra.mxu0 %v970
    %2071 = vmatprep.subr.bf16.mxu0 %v977
    %2072 = vmatpush1.bf16.msra.mxu0 %v976
    %2073 = vmatprep.mubr.bf16.mxu0 %v1958
    %2074 = vmatmul.mubr.bf16.gmra.mrb[0].mxu0 %v1957
    %v2075 = vpop.f32.mrb[0].mxu0
    %v2076 = vadd.f32 0.0, %v2075
    %v2077 = vpop.f32.mrb[0].mxu0
    %v2078 = vadd.f32 0.0, %v2077
    %v2079 = vpop.f32.mrb[0].mxu0
    %v2080 = vpop.f32.mrb[0].mxu0
    %2081 = vdwg.mxu0
    %v2082 = vld [vmem:[#allocation2 + $0xf0] sm:$0xff]
    %v2083 = vld [vmem:[#allocation2 + $0xf8] sm:$0xff]
    %v2084 = vld [vmem:[#allocation2 + $0x100] sm:$0xff]
    %v2085 = vadd.f32 %v2082, %v1994
    %v2086 = vxor.u32 %v2085, 2147483648
    %v2087 = vmul.f32 %v2086, 1.442695
    %v2088 = vpow.pop %v2087
    %v2089 = vadd.f32 %v2088, 1.0
    %v2090 = vrcp.pop %v2089
    %v2091 = vmul.f32 1.0, %v2090
    %v2092 = vadd.f32 %v2083, %v1996
    %v2093 = vxor.u32 %v2092, 2147483648
    %v2094 = vmul.f32 %v2093, 1.442695
    %v2095 = vpow.pop %v2094
    %v2096 = vadd.f32 %v2095, 1.0
    %v2097 = vrcp.pop %v2096
    %v2098 = vmul.f32 1.0, %v2097
    %v2099 = vadd.f32 %v2035, %v585
    %v2100 = vmul.f32 %v2091, %v2099
    %v2101 = vadd.f32 %v2084, %v2100
    %v2102 = vtanh.pop %v2101
    %v2103 = vsub.f32 1.0, %v2098
    %v2104 = vmul.f32 %v2103, %v2102
    %v2105 = vmul.f32 %v2098, %v1929
    %v2106 = vadd.f32 %v2104, %v2105
    %v2107 = vld [vmem:[#allocation2 + $0x78] sm:$0xff]
    %v2108 = vld [vmem:[#allocation2 + $0x80] sm:$0xff]
    %v2109 = vld [vmem:[#allocation2 + $0x88] sm:$0xff]
    %v2110 = vadd.f32 %v2107, %v2037
    %v2111 = vxor.u32 %v2110, 2147483648
    %v2112 = vmul.f32 %v2111, 1.442695
    %v2113 = vpow.pop %v2112
    %v2114 = vadd.f32 %v2113, 1.0
    %v2115 = vrcp.pop %v2114
    %v2116 = vmul.f32 1.0, %v2115
    %v2117 = vadd.f32 %v2108, %v2076
    %v2118 = vxor.u32 %v2117, 2147483648
    %v2119 = vmul.f32 %v2118, 1.442695
    %v2120 = vpow.pop %v2119
    %v2121 = vadd.f32 %v2120, 1.0
    %v2122 = vrcp.pop %v2121
    %v2123 = vmul.f32 1.0, %v2122
    %v2124 = vadd.f32 %v2078, %v592
    %v2125 = vmul.f32 %v2116, %v2124
    %v2126 = vadd.f32 %v2109, %v2125
    %v2127 = vtanh.pop %v2126
    %v2128 = vsub.f32 1.0, %v2123
    %v2129 = vmul.f32 %v2128, %v2127
    %v2130 = vmul.f32 %v2123, %v1954
    %v2131 = vadd.f32 %v2129, %v2130
    %2132 = vst [vmem:[#allocation9 + $0x50] sm:$0xff] %v2106
    %2133 = vst [vmem:[#allocation9 + $0x28] sm:$0xff] %v2131
    %v2134 = vpack.c.bf16 %v2106, %v2106
    %v2135 = vpack.c.bf16 %v2131, %v2131
    %2136 = vmatprep.subr.bf16.mxu0 %v883
    %2137 = vmatpush1.bf16.msra.mxu0 %v882
    %2138 = vmatprep.subr.bf16.mxu0 %v889
    %2139 = vmatpush1.bf16.msra.mxu0 %v888
    %2140 = vmatprep.subr.bf16.mxu0 %v895
    %2141 = vmatpush1.bf16.msra.mxu0 %v894
    %2142 = vmatprep.subr.bf16.mxu0 %v901
    %2143 = vmatpush1.bf16.msra.mxu0 %v900
    %2144 = vmatprep.subr.bf16.mxu0 %v907
    %2145 = vmatpush1.bf16.msra.mxu0 %v906
    %2146 = vmatprep.subr.bf16.mxu0 %v913
    %2147 = vmatpush1.bf16.msra.mxu0 %v912
    %2148 = vmatprep.subr.bf16.mxu0 %v919
    %2149 = vmatpush1.bf16.msra.mxu0 %v918
    %2150 = vmatprep.subr.bf16.mxu0 %v925
    %2151 = vmatpush1.bf16.msra.mxu0 %v924
    %2152 = vmatprep.subr.bf16.mxu0 %v931
    %2153 = vmatpush1.bf16.msra.mxu0 %v930
    %2154 = vmatprep.subr.bf16.mxu0 %v937
    %2155 = vmatpush1.bf16.msra.mxu0 %v936
    %2156 = vmatprep.subr.bf16.mxu0 %v943
    %2157 = vmatpush1.bf16.msra.mxu0 %v942
    %2158 = vmatprep.subr.bf16.mxu0 %v949
    %2159 = vmatpush1.bf16.msra.mxu0 %v948
    %2160 = vmatprep.subr.bf16.mxu0 %v955
    %2161 = vmatpush1.bf16.msra.mxu0 %v954
    %2162 = vmatprep.subr.bf16.mxu0 %v961
    %2163 = vmatpush1.bf16.msra.mxu0 %v960
    %2164 = vmatprep.subr.bf16.mxu0 %v967
    %2165 = vmatpush1.bf16.msra.mxu0 %v966
    %2166 = vmatprep.subr.bf16.mxu0 %v973
    %2167 = vmatpush1.bf16.msra.mxu0 %v972
    %2168 = vmatprep.mubr.bf16.mxu0 %v2135
    %2169 = vmatmul.mubr.bf16.gmra.mrb[0].mxu0 %v2134
    %v2170 = vpop.f32.mrb[0].mxu0
    %v2171 = vadd.f32 0.0, %v2170
    %v2172 = vpop.f32.mrb[0].mxu0
    %v2173 = vadd.f32 0.0, %v2172
    %v2174 = vpop.f32.mrb[0].mxu0
    %v2175 = vpop.f32.mrb[0].mxu0
    %2176 = vdwg.mxu0
    %2177 = vmatprep.subr.bf16.mxu0 %v885
    %2178 = vmatpush1.bf16.msra.mxu0 %v884
    %2179 = vmatprep.subr.bf16.mxu0 %v891
    %2180 = vmatpush1.bf16.msra.mxu0 %v890
    %2181 = vmatprep.subr.bf16.mxu0 %v897
    %2182 = vmatpush1.bf16.msra.mxu0 %v896
    %2183 = vmatprep.subr.bf16.mxu0 %v903
    %2184 = vmatpush1.bf16.msra.mxu0 %v902
    %2185 = vmatprep.subr.bf16.mxu0 %v909
    %2186 = vmatpush1.bf16.msra.mxu0 %v908
    %2187 = vmatprep.subr.bf16.mxu0 %v915
    %2188 = vmatpush1.bf16.msra.mxu0 %v914
    %2189 = vmatprep.subr.bf16.mxu0 %v921
    %2190 = vmatpush1.bf16.msra.mxu0 %v920
    %2191 = vmatprep.subr.bf16.mxu0 %v927
    %2192 = vmatpush1.bf16.msra.mxu0 %v926
    %2193 = vmatprep.subr.bf16.mxu0 %v933
    %2194 = vmatpush1.bf16.msra.mxu0 %v932
    %2195 = vmatprep.subr.bf16.mxu0 %v939
    %2196 = vmatpush1.bf16.msra.mxu0 %v938
    %2197 = vmatprep.subr.bf16.mxu0 %v945
    %2198 = vmatpush1.bf16.msra.mxu0 %v944
    %2199 = vmatprep.subr.bf16.mxu0 %v951
    %2200 = vmatpush1.bf16.msra.mxu0 %v950
    %2201 = vmatprep.subr.bf16.mxu0 %v957
    %2202 = vmatpush1.bf16.msra.mxu0 %v956
    %2203 = vmatprep.subr.bf16.mxu0 %v963
    %2204 = vmatpush1.bf16.msra.mxu0 %v962
    %2205 = vmatprep.subr.bf16.mxu0 %v969
    %2206 = vmatpush1.bf16.msra.mxu0 %v968
    %2207 = vmatprep.subr.bf16.mxu0 %v975
    %2208 = vmatpush1.bf16.msra.mxu0 %v974
    %2209 = vmatprep.mubr.bf16.mxu0 %v2135
    %2210 = vmatmul.mubr.bf16.gmra.mrb[0].mxu0 %v2134
    %v2211 = vpop.f32.mrb[0].mxu0
    %v2212 = vadd.f32 0.0, %v2211
    %v2213 = vpop.f32.mrb[0].mxu0
    %v2214 = vadd.f32 0.0, %v2213
    %v2215 = vpop.f32.mrb[0].mxu0
    %v2216 = vpop.f32.mrb[0].mxu0
    %2217 = vdwg.mxu0
    %2218 = vmatprep.subr.bf16.mxu0 %v887
    %2219 = vmatpush1.bf16.msra.mxu0 %v886
    %2220 = vmatprep.subr.bf16.mxu0 %v893
    %2221 = vmatpush1.bf16.msra.mxu0 %v892
    %2222 = vmatprep.subr.bf16.mxu0 %v899
    %2223 = vmatpush1.bf16.msra.mxu0 %v898
    %2224 = vmatprep.subr.bf16.mxu0 %v905
    %2225 = vmatpush1.bf16.msra.mxu0 %v904
    %2226 = vmatprep.subr.bf16.mxu0 %v911
    %2227 = vmatpush1.bf16.msra.mxu0 %v910
    %2228 = vmatprep.subr.bf16.mxu0 %v917
    %2229 = vmatpush1.bf16.msra.mxu0 %v916
    %2230 = vmatprep.subr.bf16.mxu0 %v923
    %2231 = vmatpush1.bf16.msra.mxu0 %v922
    %2232 = vmatprep.subr.bf16.mxu0 %v929
    %2233 = vmatpush1.bf16.msra.mxu0 %v928
    %2234 = vmatprep.subr.bf16.mxu0 %v935
    %2235 = vmatpush1.bf16.msra.mxu0 %v934
    %2236 = vmatprep.subr.bf16.mxu0 %v941
    %2237 = vmatpush1.bf16.msra.mxu0 %v940
    %2238 = vmatprep.subr.bf16.mxu0 %v947
    %2239 = vmatpush1.bf16.msra.mxu0 %v946
    %2240 = vmatprep.subr.bf16.mxu0 %v953
    %2241 = vmatpush1.bf16.msra.mxu0 %v952
    %2242 = vmatprep.subr.bf16.mxu0 %v959
    %2243 = vmatpush1.bf16.msra.mxu0 %v958
    %2244 = vmatprep.subr.bf16.mxu0 %v965
    %2245 = vmatpush1.bf16.msra.mxu0 %v964
    %2246 = vmatprep.subr.bf16.mxu0 %v971
    %2247 = vmatpush1.bf16.msra.mxu0 %v970
    %2248 = vmatprep.subr.bf16.mxu0 %v977
    %2249 = vmatpush1.bf16.msra.mxu0 %v976
    %2250 = vmatprep.mubr.bf16.mxu0 %v2135
    %2251 = vmatmul.mubr.bf16.gmra.mrb[0].mxu0 %v2134
    %v2252 = vpop.f32.mrb[0].mxu0
    %v2253 = vadd.f32 0.0, %v2252
    %v2254 = vpop.f32.mrb[0].mxu0
    %v2255 = vadd.f32 0.0, %v2254
    %v2256 = vpop.f32.mrb[0].mxu0
    %v2257 = vpop.f32.mrb[0].mxu0
    %2258 = vdwg.mxu0
    %v2259 = vld [vmem:[#allocation2 + $0x120] sm:$0xff]
    %v2260 = vld [vmem:[#allocation2 + $0x128] sm:$0xff]
    %v2261 = vld [vmem:[#allocation2 + $0x130] sm:$0xff]
    %v2262 = vadd.f32 %v2259, %v2171
    %v2263 = vxor.u32 %v2262, 2147483648
    %v2264 = vmul.f32 %v2263, 1.442695
    %v2265 = vpow.pop %v2264
    %v2266 = vadd.f32 %v2265, 1.0
    %v2267 = vrcp.pop %v2266
    %v2268 = vmul.f32 1.0, %v2267
    %v2269 = vadd.f32 %v2260, %v2173
    %v2270 = vxor.u32 %v2269, 2147483648
    %v2271 = vmul.f32 %v2270, 1.442695
    %v2272 = vpow.pop %v2271
    %v2273 = vadd.f32 %v2272, 1.0
    %v2274 = vrcp.pop %v2273
    %v2275 = vmul.f32 1.0, %v2274
    %v2276 = vadd.f32 %v2212, %v585
    %v2277 = vmul.f32 %v2268, %v2276
    %v2278 = vadd.f32 %v2261, %v2277
    %v2279 = vtanh.pop %v2278
    %v2280 = vsub.f32 1.0, %v2275
    %v2281 = vmul.f32 %v2280, %v2279
    %v2282 = vmul.f32 %v2275, %v2106
    %v2283 = vadd.f32 %v2281, %v2282
    %v2284 = vld [vmem:[#allocation2 + $0x48] sm:$0xff]
    %v2285 = vld [vmem:[#allocation2 + $0x50] sm:$0xff]
    %v2286 = vld [vmem:[#allocation2 + $0x58] sm:$0xff]
    %v2287 = vadd.f32 %v2284, %v2214
    %v2288 = vxor.u32 %v2287, 2147483648
    %v2289 = vmul.f32 %v2288, 1.442695
    %v2290 = vpow.pop %v2289
    %v2291 = vadd.f32 %v2290, 1.0
    %v2292 = vrcp.pop %v2291
    %v2293 = vmul.f32 1.0, %v2292
    %v2294 = vadd.f32 %v2285, %v2253
    %v2295 = vxor.u32 %v2294, 2147483648
    %v2296 = vmul.f32 %v2295, 1.442695
    %v2297 = vpow.pop %v2296
    %v2298 = vadd.f32 %v2297, 1.0
    %v2299 = vrcp.pop %v2298
    %v2300 = vmul.f32 1.0, %v2299
    %v2301 = vadd.f32 %v2255, %v592
    %v2302 = vmul.f32 %v2293, %v2301
    %v2303 = vadd.f32 %v2286, %v2302
    %v2304 = vtanh.pop %v2303
    %v2305 = vsub.f32 1.0, %v2300
    %v2306 = vmul.f32 %v2305, %v2304
    %v2307 = vmul.f32 %v2300, %v2131
    %v2308 = vadd.f32 %v2306, %v2307
    %2309 = vst [vmem:[#allocation9 + $0x60] sm:$0xff] %v2283
    %2310 = vst [vmem:[#allocation9 + $0x18] sm:$0xff] %v2308
    %v2311 = vpack.c.bf16 %v2283, %v2283
    %v2312 = vpack.c.bf16 %v2308, %v2308
    %2313 = vmatprep.subr.bf16.mxu0 %v883
    %2314 = vmatpush1.bf16.msra.mxu0 %v882
    %2315 = vmatprep.subr.bf16.mxu0 %v889
    %2316 = vmatpush1.bf16.msra.mxu0 %v888
    %2317 = vmatprep.subr.bf16.mxu0 %v895
    %2318 = vmatpush1.bf16.msra.mxu0 %v894
    %2319 = vmatprep.subr.bf16.mxu0 %v901
    %2320 = vmatpush1.bf16.msra.mxu0 %v900
    %2321 = vmatprep.subr.bf16.mxu0 %v907
    %2322 = vmatpush1.bf16.msra.mxu0 %v906
    %2323 = vmatprep.subr.bf16.mxu0 %v913
    %2324 = vmatpush1.bf16.msra.mxu0 %v912
    %2325 = vmatprep.subr.bf16.mxu0 %v919
    %2326 = vmatpush1.bf16.msra.mxu0 %v918
    %2327 = vmatprep.subr.bf16.mxu0 %v925
    %2328 = vmatpush1.bf16.msra.mxu0 %v924
    %2329 = vmatprep.subr.bf16.mxu0 %v931
    %2330 = vmatpush1.bf16.msra.mxu0 %v930
    %2331 = vmatprep.subr.bf16.mxu0 %v937
    %2332 = vmatpush1.bf16.msra.mxu0 %v936
    %2333 = vmatprep.subr.bf16.mxu0 %v943
    %2334 = vmatpush1.bf16.msra.mxu0 %v942
    %2335 = vmatprep.subr.bf16.mxu0 %v949
    %2336 = vmatpush1.bf16.msra.mxu0 %v948
    %2337 = vmatprep.subr.bf16.mxu0 %v955
    %2338 = vmatpush1.bf16.msra.mxu0 %v954
    %2339 = vmatprep.subr.bf16.mxu0 %v961
    %2340 = vmatpush1.bf16.msra.mxu0 %v960
    %2341 = vmatprep.subr.bf16.mxu0 %v967
    %2342 = vmatpush1.bf16.msra.mxu0 %v966
    %2343 = vmatprep.subr.bf16.mxu0 %v973
    %2344 = vmatpush1.bf16.msra.mxu0 %v972
    %2345 = vmatprep.mubr.bf16.mxu0 %v2312
    %2346 = vmatmul.mubr.bf16.gmra.mrb[0].mxu0 %v2311
    %v2347 = vpop.f32.mrb[0].mxu0
    %v2348 = vadd.f32 0.0, %v2347
    %v2349 = vpop.f32.mrb[0].mxu0
    %v2350 = vadd.f32 0.0, %v2349
    %v2351 = vpop.f32.mrb[0].mxu0
    %v2352 = vpop.f32.mrb[0].mxu0
    %2353 = vdwg.mxu0
    %2354 = vmatprep.subr.bf16.mxu0 %v885
    %2355 = vmatpush1.bf16.msra.mxu0 %v884
    %2356 = vmatprep.subr.bf16.mxu0 %v891
    %2357 = vmatpush1.bf16.msra.mxu0 %v890
    %2358 = vmatprep.subr.bf16.mxu0 %v897
    %2359 = vmatpush1.bf16.msra.mxu0 %v896
    %2360 = vmatprep.subr.bf16.mxu0 %v903
    %2361 = vmatpush1.bf16.msra.mxu0 %v902
    %2362 = vmatprep.subr.bf16.mxu0 %v909
    %2363 = vmatpush1.bf16.msra.mxu0 %v908
    %2364 = vmatprep.subr.bf16.mxu0 %v915
    %2365 = vmatpush1.bf16.msra.mxu0 %v914
    %2366 = vmatprep.subr.bf16.mxu0 %v921
    %2367 = vmatpush1.bf16.msra.mxu0 %v920
    %2368 = vmatprep.subr.bf16.mxu0 %v927
    %2369 = vmatpush1.bf16.msra.mxu0 %v926
    %2370 = vmatprep.subr.bf16.mxu0 %v933
    %2371 = vmatpush1.bf16.msra.mxu0 %v932
    %2372 = vmatprep.subr.bf16.mxu0 %v939
    %2373 = vmatpush1.bf16.msra.mxu0 %v938
    %2374 = vmatprep.subr.bf16.mxu0 %v945
    %2375 = vmatpush1.bf16.msra.mxu0 %v944
    %2376 = vmatprep.subr.bf16.mxu0 %v951
    %2377 = vmatpush1.bf16.msra.mxu0 %v950
    %2378 = vmatprep.subr.bf16.mxu0 %v957
    %2379 = vmatpush1.bf16.msra.mxu0 %v956
    %2380 = vmatprep.subr.bf16.mxu0 %v963
    %2381 = vmatpush1.bf16.msra.mxu0 %v962
    %2382 = vmatprep.subr.bf16.mxu0 %v969
    %2383 = vmatpush1.bf16.msra.mxu0 %v968
    %2384 = vmatprep.subr.bf16.mxu0 %v975
    %2385 = vmatpush1.bf16.msra.mxu0 %v974
    %2386 = vmatprep.mubr.bf16.mxu0 %v2312
    %2387 = vmatmul.mubr.bf16.gmra.mrb[0].mxu0 %v2311
    %v2388 = vpop.f32.mrb[0].mxu0
    %v2389 = vadd.f32 0.0, %v2388
    %v2390 = vpop.f32.mrb[0].mxu0
    %v2391 = vadd.f32 0.0, %v2390
    %v2392 = vpop.f32.mrb[0].mxu0
    %v2393 = vpop.f32.mrb[0].mxu0
    %2394 = vdwg.mxu0
    %2395 = vmatprep.subr.bf16.mxu0 %v887
    %2396 = vmatpush1.bf16.msra.mxu0 %v886
    %2397 = vmatprep.subr.bf16.mxu0 %v893
    %2398 = vmatpush1.bf16.msra.mxu0 %v892
    %2399 = vmatprep.subr.bf16.mxu0 %v899
    %2400 = vmatpush1.bf16.msra.mxu0 %v898
    %2401 = vmatprep.subr.bf16.mxu0 %v905
    %2402 = vmatpush1.bf16.msra.mxu0 %v904
    %2403 = vmatprep.subr.bf16.mxu0 %v911
    %2404 = vmatpush1.bf16.msra.mxu0 %v910
    %2405 = vmatprep.subr.bf16.mxu0 %v917
    %2406 = vmatpush1.bf16.msra.mxu0 %v916
    %2407 = vmatprep.subr.bf16.mxu0 %v923
    %2408 = vmatpush1.bf16.msra.mxu0 %v922
    %2409 = vmatprep.subr.bf16.mxu0 %v929
    %2410 = vmatpush1.bf16.msra.mxu0 %v928
    %2411 = vmatprep.subr.bf16.mxu0 %v935
    %2412 = vmatpush1.bf16.msra.mxu0 %v934
    %2413 = vmatprep.subr.bf16.mxu0 %v941
    %2414 = vmatpush1.bf16.msra.mxu0 %v940
    %2415 = vmatprep.subr.bf16.mxu0 %v947
    %2416 = vmatpush1.bf16.msra.mxu0 %v946
    %2417 = vmatprep.subr.bf16.mxu0 %v953
    %2418 = vmatpush1.bf16.msra.mxu0 %v952
    %2419 = vmatprep.subr.bf16.mxu0 %v959
    %2420 = vmatpush1.bf16.msra.mxu0 %v958
    %2421 = vmatprep.subr.bf16.mxu0 %v965
    %2422 = vmatpush1.bf16.msra.mxu0 %v964
    %2423 = vmatprep.subr.bf16.mxu0 %v971
    %2424 = vmatpush1.bf16.msra.mxu0 %v970
    %2425 = vmatprep.subr.bf16.mxu0 %v977
    %2426 = vmatpush1.bf16.msra.mxu0 %v976
    %2427 = vmatprep.mubr.bf16.mxu0 %v2312
    %2428 = vmatmul.mubr.bf16.gmra.mrb[0].mxu0 %v2311
    %v2429 = vpop.f32.mrb[0].mxu0
    %v2430 = vadd.f32 0.0, %v2429
    %v2431 = vpop.f32.mrb[0].mxu0
    %v2432 = vadd.f32 0.0, %v2431
    %v2433 = vpop.f32.mrb[0].mxu0
    %v2434 = vpop.f32.mrb[0].mxu0
    %2435 = vdwg.mxu0
    %v2436 = vld [vmem:[#allocation2 + $0x150] sm:$0xff]
    %v2437 = vld [vmem:[#allocation2 + $0x158] sm:$0xff]
    %v2438 = vld [vmem:[#allocation2 + $0x160] sm:$0xff]
    %v2439 = vadd.f32 %v2436, %v2348
    %v2440 = vxor.u32 %v2439, 2147483648
    %v2441 = vmul.f32 %v2440, 1.442695
    %v2442 = vpow.pop %v2441
    %v2443 = vadd.f32 %v2442, 1.0
    %v2444 = vrcp.pop %v2443
    %v2445 = vmul.f32 1.0, %v2444
    %v2446 = vadd.f32 %v2437, %v2350
    %v2447 = vxor.u32 %v2446, 2147483648
    %v2448 = vmul.f32 %v2447, 1.442695
    %v2449 = vpow.pop %v2448
    %v2450 = vadd.f32 %v2449, 1.0
    %v2451 = vrcp.pop %v2450
    %v2452 = vmul.f32 1.0, %v2451
    %v2453 = vadd.f32 %v2389, %v585
    %v2454 = vmul.f32 %v2445, %v2453
    %v2455 = vadd.f32 %v2438, %v2454
    %v2456 = vtanh.pop %v2455
    %v2457 = vsub.f32 1.0, %v2452
    %v2458 = vmul.f32 %v2457, %v2456
    %v2459 = vmul.f32 %v2452, %v2283
    %v2460 = vadd.f32 %v2458, %v2459
    %v2461 = vld [vmem:[#allocation2 + $0x18] sm:$0xff]
    %v2462 = vld [vmem:[#allocation2 + $0x20] sm:$0xff]
    %v2463 = vld [vmem:[#allocation2 + $0x28] sm:$0xff]
    %v2464 = vadd.f32 %v2461, %v2391
    %v2465 = vxor.u32 %v2464, 2147483648
    %v2466 = vmul.f32 %v2465, 1.442695
    %v2467 = vpow.pop %v2466
    %v2468 = vadd.f32 %v2467, 1.0
    %v2469 = vrcp.pop %v2468
    %v2470 = vmul.f32 1.0, %v2469
    %v2471 = vadd.f32 %v2462, %v2430
    %v2472 = vxor.u32 %v2471, 2147483648
    %v2473 = vmul.f32 %v2472, 1.442695
    %v2474 = vpow.pop %v2473
    %v2475 = vadd.f32 %v2474, 1.0
    %v2476 = vrcp.pop %v2475
    %v2477 = vmul.f32 1.0, %v2476
    %v2478 = vadd.f32 %v2432, %v592
    %v2479 = vmul.f32 %v2470, %v2478
    %v2480 = vadd.f32 %v2463, %v2479
    %v2481 = vtanh.pop %v2480
    %v2482 = vsub.f32 1.0, %v2477
    %v2483 = vmul.f32 %v2482, %v2481
    %v2484 = vmul.f32 %v2477, %v2308
    %v2485 = vadd.f32 %v2483, %v2484
    %2486 = vst [vmem:[#allocation9 + $0x70] sm:$0xff] %v2460
    %2487 = vst [vmem:[#allocation9 + $0x8] sm:$0xff] %v2485
    %v2488 = vpack.c.bf16 %v2460, %v2460
    %v2489 = vpack.c.bf16 %v2485, %v2485
    %v2490 = vld [vmem:[#allocation8] sm:$0xf]
    %v2491 = vld [vmem:[#allocation8 + $0x4] sm:$0xf]
    %v2492 = vld [vmem:[#allocation8 + $0x8] sm:$0xf]
    %v2493 = vld [vmem:[#allocation8 + $0xc] sm:$0xf]
    %v2494 = vld [vmem:[#allocation8 + $0x10] sm:$0xf]
    %v2495 = vld [vmem:[#allocation8 + $0x14] sm:$0xf]
    %v2496 = vld [vmem:[#allocation8 + $0x18] sm:$0xf]
    %v2497 = vld [vmem:[#allocation8 + $0x1c] sm:$0xf]
    %v2498 = vld [vmem:[#allocation8 + $0x20] sm:$0xf]
    %v2499 = vld [vmem:[#allocation8 + $0x24] sm:$0xf]
    %v2500 = vld [vmem:[#allocation8 + $0x28] sm:$0xf]
    %v2501 = vld [vmem:[#allocation8 + $0x2c] sm:$0xf]
    %v2502 = vld [vmem:[#allocation8 + $0x30] sm:$0xf]
    %v2503 = vld [vmem:[#allocation8 + $0x34] sm:$0xf]
    %v2504 = vld [vmem:[#allocation8 + $0x38] sm:$0xf]
    %v2505 = vld [vmem:[#allocation8 + $0x3c] sm:$0xf]
    %v2506 = vld [vmem:[#allocation8 + $0x40] sm:$0xf]
    %v2507 = vld [vmem:[#allocation8 + $0x44] sm:$0xf]
    %v2508 = vld [vmem:[#allocation8 + $0x48] sm:$0xf]
    %v2509 = vld [vmem:[#allocation8 + $0x4c] sm:$0xf]
    %v2510 = vld [vmem:[#allocation8 + $0x50] sm:$0xf]
    %v2511 = vld [vmem:[#allocation8 + $0x54] sm:$0xf]
    %v2512 = vld [vmem:[#allocation8 + $0x58] sm:$0xf]
    %v2513 = vld [vmem:[#allocation8 + $0x5c] sm:$0xf]
    %v2514 = vld [vmem:[#allocation8 + $0x60] sm:$0xf]
    %v2515 = vld [vmem:[#allocation8 + $0x64] sm:$0xf]
    %v2516 = vld [vmem:[#allocation8 + $0x68] sm:$0xf]
    %v2517 = vld [vmem:[#allocation8 + $0x6c] sm:$0xf]
    %v2518 = vld [vmem:[#allocation8 + $0x70] sm:$0xf]
    %v2519 = vld [vmem:[#allocation8 + $0x74] sm:$0xf]
    %v2520 = vld [vmem:[#allocation8 + $0x78] sm:$0xf]
    %v2521 = vld [vmem:[#allocation8 + $0x7c] sm:$0xf]
    %v2522 = vld [vmem:[%s6] sm:$0x1]
    %v2524 = vlaneseq
    %v2525 = vshrl.u32 %v2524, 7
    %v2526 = vsub.s32 0, %v2525
    %v2527 = vrot.slane %v2522, %v2526
    %v2561 = vunpack.c.l.b16 %v2490
    %v2562 = vunpack.c.l.b16 %v2491
    %v2563 = vunpack.c.l.b16 %v2492
    %v2564 = vunpack.c.l.b16 %v2493
    %v2565 = vunpack.c.l.b16 %v2494
    %v2566 = vunpack.c.l.b16 %v2495
    %v2567 = vunpack.c.l.b16 %v2496
    %v2568 = vunpack.c.l.b16 %v2497
    %v2569 = vunpack.c.l.b16 %v2498
    %v2570 = vunpack.c.l.b16 %v2499
    %v2571 = vunpack.c.l.b16 %v2500
    %v2572 = vunpack.c.l.b16 %v2501
    %v2573 = vunpack.c.l.b16 %v2502
    %v2574 = vunpack.c.l.b16 %v2503
    %v2575 = vunpack.c.l.b16 %v2504
    %v2576 = vunpack.c.l.b16 %v2505
    %v2577 = vunpack.c.l.b16 %v2506
    %v2578 = vunpack.c.l.b16 %v2507
    %v2579 = vunpack.c.l.b16 %v2508
    %v2580 = vunpack.c.l.b16 %v2509
    %v2581 = vunpack.c.l.b16 %v2510
    %v2582 = vunpack.c.l.b16 %v2511
    %v2583 = vunpack.c.l.b16 %v2512
    %v2584 = vunpack.c.l.b16 %v2513
    %v2585 = vunpack.c.l.b16 %v2514
    %v2586 = vunpack.c.l.b16 %v2515
    %v2587 = vunpack.c.l.b16 %v2516
    %v2588 = vunpack.c.l.b16 %v2517
    %v2589 = vunpack.c.l.b16 %v2518
    %v2590 = vunpack.c.l.b16 %v2519
    %v2591 = vunpack.c.l.b16 %v2520
    %v2592 = vunpack.c.l.b16 %v2521
    %v2593 = vpack.c.b16 %v2562, %v2561
    %v2594 = vpack.c.b16 %v2564, %v2563
    %v2595 = vpack.c.b16 %v2566, %v2565
    %v2596 = vpack.c.b16 %v2568, %v2567
    %v2597 = vpack.c.b16 %v2570, %v2569
    %v2598 = vpack.c.b16 %v2572, %v2571
    %v2599 = vpack.c.b16 %v2574, %v2573
    %v2600 = vpack.c.b16 %v2576, %v2575
    %v2601 = vpack.c.b16 %v2578, %v2577
    %v2602 = vpack.c.b16 %v2580, %v2579
    %v2603 = vpack.c.b16 %v2582, %v2581
    %v2604 = vpack.c.b16 %v2584, %v2583
    %v2605 = vpack.c.b16 %v2586, %v2585
    %v2606 = vpack.c.b16 %v2588, %v2587
    %v2607 = vpack.c.b16 %v2590, %v2589
    %v2608 = vpack.c.b16 %v2592, %v2591
    %2625 = vmatprep.subr.bf16.mxu0 0
    %2626 = vmatpush1.bf16.msra.mxu0 %v2593
    %2627 = vmatprep.subr.bf16.mxu0 0
    %2628 = vmatpush1.bf16.msra.mxu0 %v2594
    %2629 = vmatprep.subr.bf16.mxu0 0
    %2630 = vmatpush1.bf16.msra.mxu0 %v2595
    %2631 = vmatprep.subr.bf16.mxu0 0
    %2632 = vmatpush1.bf16.msra.mxu0 %v2596
    %2633 = vmatprep.subr.bf16.mxu0 0
    %2634 = vmatpush1.bf16.msra.mxu0 %v2597
    %2635 = vmatprep.subr.bf16.mxu0 0
    %2636 = vmatpush1.bf16.msra.mxu0 %v2598
    %2637 = vmatprep.subr.bf16.mxu0 0
    %2638 = vmatpush1.bf16.msra.mxu0 %v2599
    %2639 = vmatprep.subr.bf16.mxu0 0
    %2640 = vmatpush1.bf16.msra.mxu0 %v2600
    %2641 = vmatprep.subr.bf16.mxu0 0
    %2642 = vmatpush1.bf16.msra.mxu0 %v2601
    %2643 = vmatprep.subr.bf16.mxu0 0
    %2644 = vmatpush1.bf16.msra.mxu0 %v2602
    %2645 = vmatprep.subr.bf16.mxu0 0
    %2646 = vmatpush1.bf16.msra.mxu0 %v2603
    %2647 = vmatprep.subr.bf16.mxu0 0
    %2648 = vmatpush1.bf16.msra.mxu0 %v2604
    %2649 = vmatprep.subr.bf16.mxu0 0
    %2650 = vmatpush1.bf16.msra.mxu0 %v2605
    %2651 = vmatprep.subr.bf16.mxu0 0
    %2652 = vmatpush1.bf16.msra.mxu0 %v2606
    %2653 = vmatprep.subr.bf16.mxu0 0
    %2654 = vmatpush1.bf16.msra.mxu0 %v2607
    %2655 = vmatprep.subr.bf16.mxu0 0
    %2656 = vmatpush1.bf16.msra.mxu0 %v2608
    %2657 = vmatprep.mubr.bf16.mxu0 %v2489
    %2658 = vmatmul.mubr.bf16.gmra.mrb[0].mxu0 %v2488
    %v2659 = vpop.f32.mrb[0].mxu0
    %v2660 = vadd.f32 %v2527, %v2659
    %v2661 = vpop.f32.mrb[0].mxu0
    %v2662 = vpop.f32.mrb[0].mxu0
    %v2663 = vpop.f32.mrb[0].mxu0
    %2664 = vdwg.mxu0
    %v2665 = vtanh.pop %v2660
    %2666 = vst [vmem:[#allocation10] sm:$0xff] %v2665
    // Predicated region
    $region42: #{tpu_custom_call.1} parent=1 // pred_check
      _
    $region43: #{tpu_custom_call.1} parent=1 // pred_check_branch
      %2668 = sbr.rel (0) target = $region45
    $region44: #{tpu_custom_call.1} parent=1 // pred_region
      %s2670 = ssub.s32 2048, 2048
      %2671 = vsyncadd [#allocation5], %s2670
      %s2672 = sshll.u32 [#allocation9], 4
      %s2673 = int_to_ptr.vmem [resolvable:$true] %s2672
      %2678 = dma.vmem_to_hbm [thread:$0]  %s2673, 2048, %s7, [#allocation5], 256, 256, 16
    $region45: #{tpu_custom_call.1} parent=1 // pred_fallthru
      _
    // Predicated region
    $region46: #{tpu_custom_call.1} parent=1 // pred_check
      _
    $region47: #{tpu_custom_call.1} parent=1 // pred_check_branch
      %2680 = sbr.rel (0) target = $region49
    $region48: #{tpu_custom_call.1} parent=1 // pred_region
      %s2682 = ssub.s32 128, 128
      %2683 = vsyncadd [#allocation11], %s2682
      %s2685 = sshll.u32 [#allocation10], 4
      %s2686 = int_to_ptr.vmem [resolvable:$true] %s2685
      %2688 = dma.vmem_to_hbm [thread:$0]  %s2686, 128, %s8, [#allocation11]
    $region49: #{tpu_custom_call.1} parent=1 // pred_fallthru
      _
    // Predicated region
    $region50: #{tpu_custom_call.1} parent=1 // pred_check
      _
    $region51: #{tpu_custom_call.1} parent=1 // pred_check_branch
      %2690 = sbr.rel (0) target = $region53
    $region52: #{tpu_custom_call.1} parent=1 // pred_region
      %2691 = dma.done [#allocation5], 2048
    $region53: #{tpu_custom_call.1} parent=1 // pred_fallthru
      _
    // Predicated region
    $region54: #{tpu_custom_call.1} parent=1 // pred_check
      _
    $region55: #{tpu_custom_call.1} parent=1 // pred_check_branch
      %2693 = sbr.rel (0) target = $region57
    $region56: #{tpu_custom_call.1} parent=1 // pred_region
      %2694 = dma.done [#allocation11], 128
    $region57: #{tpu_custom_call.1} parent=1 // pred_fallthru
      _
    %2695 = vsyncpa [#allocation4], 1
    %2696 = vsyncpa [#allocation7], 1
    %2697 = vsyncpa [#allocation5], 1
    %2698 = vsyncpa [#allocation11], 1

</llo_original>
